<compile_context>
chip_gen: v7x
topology: tpu7x:2x2x1
jax: 0.10.0
libtpu: 0.0.40
codegen_flags: <defaults>
</compile_context>

<pallas_src>
import math

import jax
import jax.numpy as jnp
from jax.experimental import pallas as pl
from jax.experimental.pallas import tpu as pltpu

EPS = 1e-5


# ----------------------------------------------------------------------------
# Kernel 1: BN0 -> chunked Tucker contraction -> BN1   (grid over R chunks)
# ----------------------------------------------------------------------------
def _prologue_kernel(ent_ref, relc_ref, core_ref, g0_ref, b0_ref,
                     g1_ref, b1_ref, yn_ref, xbn_sc, z_sc, acc_sc):
    E = ent_ref.shape[1]
    rc = relc_ref.shape[1]            # relation components in this chunk

    @pl.when(pl.program_id(0) == 0)
    def _init():
        # BatchNorm1d #0 (train mode: batch mean, biased variance).
        x = ent_ref[...]                                           # (B, E)
        m0 = jnp.mean(x, axis=0, keepdims=True)
        v0 = jnp.mean((x - m0) ** 2, axis=0, keepdims=True)
        xbn_sc[...] = (x - m0) * jax.lax.rsqrt(v0 + EPS) * g0_ref[...] + b0_ref[...]
        acc_sc[...] = jnp.zeros_like(acc_sc)
        # TODO(synk): dropout p>0 not implemented (module defaults d1=d2=d3=0).

    # z[b, r*E + i] = rel[b, c*rc + r] * xbn[b, i]; one (B, rc*E)@(rc*E, E)
    # matmul then contracts this chunk's slice of the core in a single MXU op.
    xbn = xbn_sc[...]
    relc = relc_ref[...]                                           # (B, rc)
    for r in range(rc):                                            # static unroll, rc small
        z_sc[:, r * E:(r + 1) * E] = relc[:, r:r + 1] * xbn
    acc_sc[...] += jnp.dot(z_sc[...], core_ref[...],
                           preferred_element_type=jnp.float32)     # (B, E)

    @pl.when(pl.program_id(0) == pl.num_programs(0) - 1)
    def _finalize():
        # BatchNorm1d #1 (train mode).
        y = acc_sc[...]
        m1 = jnp.mean(y, axis=0, keepdims=True)
        v1 = jnp.mean((y - m1) ** 2, axis=0, keepdims=True)
        yn_ref[...] = (y - m1) * jax.lax.rsqrt(v1 + EPS) * g1_ref[...] + b1_ref[...]


# ----------------------------------------------------------------------------
# Kernel 2: stream the entity table (bf16, (E, N) layout), score + sigmoid
# ----------------------------------------------------------------------------
def _scoring_kernel(yn_ref, etab_ref, out_ref):
    yn = yn_ref[...].astype(jnp.bfloat16)                          # (B, E)
    logits = jnp.dot(yn, etab_ref[...],                            # (B,E)@(E,tn)
                     preferred_element_type=jnp.float32)
    out_ref[...] = jax.nn.sigmoid(logits)                          # lane-dense (B, tn)


# ----------------------------------------------------------------------------
# Wrapper
# ----------------------------------------------------------------------------
def _round_up(x, m):
    return (x + m - 1) // m * m


def _pick_rc(R, E, budget_bytes=4 * 1024 * 1024):
    """Largest divisor of R whose (rc*E, E) f32 core chunk fits the budget."""
    rc = max(1, min(R, budget_bytes // (E * E * 4)))
    while R % rc:
        rc -= 1
    return rc


def _pick_tn(N, E, B, budget_bytes=8 * 1024 * 1024, cap=2048):
    """Entity-table tile width: as big as the VMEM budget allows (tiles >=512
    reach ~85% of HBM roofline and amortize per-grid-step overhead), a multiple
    of 128, capped, and never much larger than N."""
    per_tn = 2 * (E * 2 + B * 4)      # double-buffered bf16 table tile + f32 out block
    tn = budget_bytes // per_tn
    tn = min(tn, cap, _round_up(N, 128))
    return max(128, tn // 128 * 128)


def tucker_forward(ent_w, rel_w, core, g0, b0, g1, b1, e_idx, r_idx,
                   *, ent_scoring_t=None, tn=None, rc=None):
    """JAX/Pallas forward of TuckER (train-mode BN, dropout p=0).

    ent_scoring_t: optional persistent bf16 (E, N) copy of the entity table
    used for scoring.  Callers scoring many batches should precompute it once;
    otherwise it is derived here (one extra pass over the table per call).
    """
    B = e_idx.shape[0]
    R, E, E2 = core.shape
    assert E == E2
    N, E3 = ent_w.shape
    assert E == E3

    # Tiny B-row embedding gathers (kept in f32 for BN fidelity).
    # TODO(synk): could move in-kernel via scalar-prefetched indices; negligible
    # next to streaming the entity table.
    ent_b = jnp.take(ent_w, e_idx, axis=0)                         # (B, E)
    rel_b = jnp.take(rel_w, r_idx, axis=0)                         # (B, R)

    # ---------------- kernel 1: prologue -> yn (B, E) ----------------
    if rc is None:
        rc = _pick_rc(R, E)
    assert R % rc == 0, (R, rc)
    nc = R // rc
    # (nc, B, rc) chunk layout keeps all in-kernel relation indexing static.
    rel_chunks = rel_b.reshape(B, nc, rc).transpose(1, 0, 2)       # (nc, B, rc)
    core_re = core.reshape(R * E, E)                               # free row-major view

    yn = pl.pallas_call(
        _prologue_kernel,
        out_shape=jax.ShapeDtypeStruct((B, E), jnp.float32),
        grid_spec=pltpu.PrefetchScalarGridSpec(
            num_scalar_prefetch=0,
            grid=(nc,),
            in_specs=[
                pl.BlockSpec((B, E), lambda c: (0, 0)),            # gathered entities
                pl.BlockSpec((None, B, rc), lambda c: (c, 0, 0)),  # relation chunk
                pl.BlockSpec((rc * E, E), lambda c: (c, 0)),       # core chunk (streamed)
                pl.BlockSpec((1, E), lambda c: (0, 0)),            # BN0 gamma
                pl.BlockSpec((1, E), lambda c: (0, 0)),            # BN0 beta
                pl.BlockSpec((1, E), lambda c: (0, 0)),            # BN1 gamma
                pl.BlockSpec((1, E), lambda c: (0, 0)),            # BN1 beta
            ],
            out_specs=pl.BlockSpec((B, E), lambda c: (0, 0)),
            scratch_shapes=[
                pltpu.VMEM((B, E), jnp.float32),                   # BN0-normalized entities
                pltpu.VMEM((B, rc * E), jnp.float32),              # z = rel (outer) xbn
                pltpu.VMEM((B, E), jnp.float32),                   # contraction accumulator
            ],
        ),
        compiler_params=pltpu.CompilerParams(
            dimension_semantics=("arbitrary",),                    # acc carried across chunks
            vmem_limit_bytes=32 * 1024 * 1024,
        ),
    )(ent_b, rel_chunks, core_re, g0, b0, g1, b1)

    # ---------------- kernel 2: streamed scoring ----------------
    if ent_scoring_t is None:
        # TODO(synk): persist this bf16 (E, N) copy outside the per-call path.
        ent_scoring_t = ent_w.T.astype(jnp.bfloat16)
    assert ent_scoring_t.shape == (E, N)

    if tn is None:
        tn = _pick_tn(N, E, B)
    assert tn % 128 == 0, tn
    grid_n = pl.cdiv(N, tn)            # ragged N: boundary blocks are clipped by Pallas

    out = pl.pallas_call(
        _scoring_kernel,
        out_shape=jax.ShapeDtypeStruct((B, N), jnp.float32),
        grid_spec=pltpu.PrefetchScalarGridSpec(
            num_scalar_prefetch=0,
            grid=(grid_n,),
            in_specs=[
                pl.BlockSpec((B, E), lambda n: (0, 0)),            # yn (resident, tiny)
                # Streamed bf16 (E, tn) table tile.  Default double-buffering
                # already hits ~85%+ of HBM roofline at tn>=512; a deeper
                # pipeline (pl.Buffered(3)) is the knob to sweep if DMA issue
                # latency shows up exposed.
                pl.BlockSpec((E, tn), lambda n: (0, n)),
            ],
            out_specs=pl.BlockSpec((B, tn), lambda n: (0, n)),
        ),
        compiler_params=pltpu.CompilerParams(
            # No cross-step state: safe to shard across v7x's two TensorCores.
            dimension_semantics=("parallel",),
            vmem_limit_bytes=32 * 1024 * 1024,
        ),
    )(yn, ent_scoring_t)
    return out


# ----------------------------------------------------------------------------
# Pure-JAX reference (train-mode BN, dropout p=0), full f32 precision
# ----------------------------------------------------------------------------
def _reference(ent_w, rel_w, core, g0, b0, g1, b1, e_idx, r_idx):
    R, E, _ = core.shape
    hi = jax.lax.Precision.HIGHEST
    x = ent_w[e_idx]
    r = rel_w[r_idx]
    m = x.mean(0, keepdims=True)
    v = ((x - m) ** 2).mean(0, keepdims=True)
    x = (x - m) / jnp.sqrt(v + EPS) * g0 + b0
    W = jnp.dot(r, core.reshape(R, E * E), precision=hi).reshape(-1, E, E)
    y = jnp.einsum('bi,bij->bj', x, W, precision=hi)
    m1 = y.mean(0, keepdims=True)
    v1 = ((y - m1) ** 2).mean(0, keepdims=True)
    y = (y - m1) / jnp.sqrt(v1 + EPS) * g1 + b1
    logits = jnp.dot(ent_w, y.T, precision=hi)                     # (N, B)
    return jax.nn.sigmoid(logits).T                                # (B, N)


if __name__ == "__main__":
    # Ragged N on purpose: exercises the cdiv grid + clipped boundary tiles.
    NUM_ENT, NUM_REL = 5000, 16
    E, R, B = 128, 32, 32

    key = jax.random.PRNGKey(0)
    k1, k2, k3, k4, k5 = jax.random.split(key, 5)
    # xavier_normal_ on embedding tables (deterministic, in-script)
    ent_w = jax.random.normal(k1, (NUM_ENT, E), jnp.float32) * math.sqrt(
        2.0 / (NUM_ENT + E))
    rel_w = jax.random.normal(k2, (NUM_REL, R), jnp.float32) * math.sqrt(
        2.0 / (NUM_REL + R))
    core = jax.random.normal(k3, (R, E, E), jnp.float32) * 0.1     # initial_tensor
    # BatchNorm1d default affine params
    g0 = jnp.ones((1, E), jnp.float32)
    b0 = jnp.zeros((1, E), jnp.float32)
    g1 = jnp.ones((1, E), jnp.float32)
    b1 = jnp.zeros((1, E), jnp.float32)
    # batched entity / relation index inputs
    e_idx = jax.random.randint(k4, (B,), 0, NUM_ENT, dtype=jnp.int32)
    r_idx = jax.random.randint(k5, (B,), 0, NUM_REL, dtype=jnp.int32)

    # Persistent bf16, (E, N) scoring copy of the entity table (built once,
    # outside the per-call path, as real callers should).
    ent_scoring_t = jnp.asarray(ent_w.T, dtype=jnp.bfloat16)

    fwd = jax.jit(tucker_forward)
    probs = fwd(ent_w, rel_w, core, g0, b0, g1, b1, e_idx, r_idx,
                ent_scoring_t=ent_scoring_t)
    probs = jax.block_until_ready(probs)

    ref = _reference(ent_w, rel_w, core, g0, b0, g1, b1, e_idx, r_idx)
    assert probs.shape == (B, NUM_ENT), probs.shape
    max_err = float(jnp.max(jnp.abs(probs - ref)))
    assert max_err < 3e-3, max_err   # bf16-streamed scoring vs f32 HIGHEST reference
    print("KERNEL_OK")
</pallas_src>

<mosaic_0001>
module attributes {stable_mosaic.version = 11 : i64} {
  func.func @_prologue_kernel(%arg0: i32, %arg1: memref<32x128xf32, #tpu.memory_space<vmem>>, %arg2: memref<1x32x32xf32, #tpu.memory_space<vmem>>, %arg3: memref<4096x128xf32, #tpu.memory_space<vmem>>, %arg4: memref<1x128xf32, #tpu.memory_space<vmem>>, %arg5: memref<1x128xf32, #tpu.memory_space<vmem>>, %arg6: memref<1x128xf32, #tpu.memory_space<vmem>>, %arg7: memref<1x128xf32, #tpu.memory_space<vmem>>, %arg8: memref<32x128xf32, #tpu.memory_space<vmem>>, %arg9: memref<32x128xf32, #tpu.memory_space<vmem>>, %arg10: memref<32x4096xf32, #tpu.memory_space<vmem>>, %arg11: memref<32x128xf32, #tpu.memory_space<vmem>>) attributes {dimension_semantics = [#tpu.dimension_semantics<arbitrary>], iteration_bounds = array<i64: 1>, scalar_prefetch = 0 : i64, scratch_operands = 3 : i64, tpu.core_type = #tpu.core_type<tc>, window_params = [{pipeline_mode = #tpu.pipeline_mode<synchronous>, transform_indices = @transform_0, window_bounds = array<i64: 32, 128>}, {transform_indices = @transform_1, window_bounds = array<i64: 1, 32, 32>}, {transform_indices = @transform_2, window_bounds = array<i64: 4096, 128>}, {pipeline_mode = #tpu.pipeline_mode<synchronous>, transform_indices = @transform_3, window_bounds = array<i64: 1, 128>}, {pipeline_mode = #tpu.pipeline_mode<synchronous>, transform_indices = @transform_4, window_bounds = array<i64: 1, 128>}, {pipeline_mode = #tpu.pipeline_mode<synchronous>, transform_indices = @transform_5, window_bounds = array<i64: 1, 128>}, {pipeline_mode = #tpu.pipeline_mode<synchronous>, transform_indices = @transform_6, window_bounds = array<i64: 1, 128>}, {pipeline_mode = #tpu.pipeline_mode<synchronous>, transform_indices = @transform_7, window_bounds = array<i64: 32, 128>}]} {
    %c0_i32 = arith.constant 0 : i32
    %0 = arith.cmpi eq, %arg0, %c0_i32 : i32
    %1 = arith.extui %0 : i1 to i32
    %c0_i32_0 = arith.constant 0 : i32
    %2 = arith.cmpi ne, %1, %c0_i32_0 : i32
    scf.if %2 {
      %c0_48 = arith.constant 0 : index
      %c0_49 = arith.constant 0 : index
      %143 = vector.load %arg1[%c0_48, %c0_49] : memref<32x128xf32, #tpu.memory_space<vmem>>, vector<32x128xf32>
      %cst_50 = arith.constant dense<0.000000e+00> : vector<128xf32>
      %144 = vector.multi_reduction <add>, %143, %cst_50 [0] : vector<32x128xf32> to vector<128xf32>
      %145 = vector.shape_cast %144 : vector<128xf32> to vector<1x128xf32>
      %cst_51 = arith.constant 3.200000e+01 : f32
      %146 = vector.broadcast %cst_51 : f32 to vector<1x128xf32>
      %147 = arith.divf %145, %146 : vector<1x128xf32>
      %148 = vector.broadcast %147 : vector<1x128xf32> to vector<32x128xf32>
      %149 = arith.subf %143, %148 : vector<32x128xf32>
      %150 = arith.mulf %149, %149 : vector<32x128xf32>
      %cst_52 = arith.constant dense<0.000000e+00> : vector<128xf32>
      %151 = vector.multi_reduction <add>, %150, %cst_52 [0] : vector<32x128xf32> to vector<128xf32>
      %152 = vector.shape_cast %151 : vector<128xf32> to vector<1x128xf32>
      %cst_53 = arith.constant 3.200000e+01 : f32
      %153 = vector.broadcast %cst_53 : f32 to vector<1x128xf32>
      %154 = arith.divf %152, %153 : vector<1x128xf32>
      %155 = vector.broadcast %147 : vector<1x128xf32> to vector<32x128xf32>
      %156 = arith.subf %143, %155 : vector<32x128xf32>
      %cst_54 = arith.constant 9.99999974E-6 : f32
      %157 = vector.broadcast %cst_54 : f32 to vector<1x128xf32>
      %158 = arith.addf %154, %157 : vector<1x128xf32>
      %159 = math.rsqrt %158 : vector<1x128xf32>
      %160 = vector.broadcast %159 : vector<1x128xf32> to vector<32x128xf32>
      %161 = arith.mulf %156, %160 : vector<32x128xf32>
      %c0_55 = arith.constant 0 : index
      %c0_56 = arith.constant 0 : index
      %162 = vector.load %arg4[%c0_55, %c0_56] : memref<1x128xf32, #tpu.memory_space<vmem>>, vector<1x128xf32>
      %163 = vector.broadcast %162 : vector<1x128xf32> to vector<32x128xf32>
      %164 = arith.mulf %161, %163 : vector<32x128xf32>
      %c0_57 = arith.constant 0 : index
      %c0_58 = arith.constant 0 : index
      %165 = vector.load %arg5[%c0_57, %c0_58] : memref<1x128xf32, #tpu.memory_space<vmem>>, vector<1x128xf32>
      %166 = vector.broadcast %165 : vector<1x128xf32> to vector<32x128xf32>
      %167 = arith.addf %164, %166 : vector<32x128xf32>
      %c0_59 = arith.constant 0 : index
      %c0_60 = arith.constant 0 : index
      %168 = vector.load %arg9[%c0_59, %c0_60] : memref<32x128xf32, #tpu.memory_space<vmem>>, vector<32x128xf32>
      tpu.vector_store %arg9[%c0_59, %c0_60], %167 {strides = array<i32>} : memref<32x128xf32, #tpu.memory_space<vmem>>, vector<32x128xf32>,
      %cst_61 = arith.constant 0.000000e+00 : f32
      %169 = vector.broadcast %cst_61 : f32 to vector<32x128xf32>
      %c0_62 = arith.constant 0 : index
      %c0_63 = arith.constant 0 : index
      %170 = vector.load %arg11[%c0_62, %c0_63] : memref<32x128xf32, #tpu.memory_space<vmem>>, vector<32x128xf32>
      tpu.vector_store %arg11[%c0_62, %c0_63], %169 {strides = array<i32>} : memref<32x128xf32, #tpu.memory_space<vmem>>, vector<32x128xf32>,
    } else {
    }
    %c0 = arith.constant 0 : index
    %c0_1 = arith.constant 0 : index
    %3 = vector.load %arg9[%c0, %c0_1] : memref<32x128xf32, #tpu.memory_space<vmem>>, vector<32x128xf32>
    %c0_2 = arith.constant 0 : index
    %c0_3 = arith.constant 0 : index
    %c0_4 = arith.constant 0 : index
    %4 = vector.load %arg2[%c0_2, %c0_3, %c0_4] : memref<1x32x32xf32, #tpu.memory_space<vmem>>, vector<1x32x32xf32>
    %5 = vector.shape_cast %4 : vector<1x32x32xf32> to vector<32x32xf32>
    %6 = vector.extract_strided_slice %5 {offsets = [0, 0], sizes = [32, 1], strides = [1, 1]} : vector<32x32xf32> to vector<32x1xf32>
    %7 = vector.broadcast %6 : vector<32x1xf32> to vector<32x128xf32>
    %8 = arith.mulf %7, %3 : vector<32x128xf32>
    %c0_5 = arith.constant 0 : index
    %c0_6 = arith.constant 0 : index
    %9 = vector.load %arg10[%c0_5, %c0_6] : memref<32x4096xf32, #tpu.memory_space<vmem>>, vector<32x128xf32>
    tpu.vector_store %arg10[%c0_5, %c0_6], %8 {strides = array<i32>} : memref<32x4096xf32, #tpu.memory_space<vmem>>, vector<32x128xf32>,
    %10 = vector.extract_strided_slice %5 {offsets = [0, 1], sizes = [32, 1], strides = [1, 1]} : vector<32x32xf32> to vector<32x1xf32>
    %11 = vector.broadcast %10 : vector<32x1xf32> to vector<32x128xf32>
    %12 = arith.mulf %11, %3 : vector<32x128xf32>
    %c0_7 = arith.constant 0 : index
    %c128 = arith.constant 128 : index
    %13 = vector.load %arg10[%c0_7, %c128] : memref<32x4096xf32, #tpu.memory_space<vmem>>, vector<32x128xf32>
    tpu.vector_store %arg10[%c0_7, %c128], %12 {strides = array<i32>} : memref<32x4096xf32, #tpu.memory_space<vmem>>, vector<32x128xf32>,
    %14 = vector.extract_strided_slice %5 {offsets = [0, 2], sizes = [32, 1], strides = [1, 1]} : vector<32x32xf32> to vector<32x1xf32>
    %15 = vector.broadcast %14 : vector<32x1xf32> to vector<32x128xf32>
    %16 = arith.mulf %15, %3 : vector<32x128xf32>
    %c0_8 = arith.constant 0 : index
    %c256 = arith.constant 256 : index
    %17 = vector.load %arg10[%c0_8, %c256] : memref<32x4096xf32, #tpu.memory_space<vmem>>, vector<32x128xf32>
    tpu.vector_store %arg10[%c0_8, %c256], %16 {strides = array<i32>} : memref<32x4096xf32, #tpu.memory_space<vmem>>, vector<32x128xf32>,
    %18 = vector.extract_strided_slice %5 {offsets = [0, 3], sizes = [32, 1], strides = [1, 1]} : vector<32x32xf32> to vector<32x1xf32>
    %19 = vector.broadcast %18 : vector<32x1xf32> to vector<32x128xf32>
    %20 = arith.mulf %19, %3 : vector<32x128xf32>
    %c0_9 = arith.constant 0 : index
    %c384 = arith.constant 384 : index
    %21 = vector.load %arg10[%c0_9, %c384] : memref<32x4096xf32, #tpu.memory_space<vmem>>, vector<32x128xf32>
    tpu.vector_store %arg10[%c0_9, %c384], %20 {strides = array<i32>} : memref<32x4096xf32, #tpu.memory_space<vmem>>, vector<32x128xf32>,
    %22 = vector.extract_strided_slice %5 {offsets = [0, 4], sizes = [32, 1], strides = [1, 1]} : vector<32x32xf32> to vector<32x1xf32>
    %23 = vector.broadcast %22 : vector<32x1xf32> to vector<32x128xf32>
    %24 = arith.mulf %23, %3 : vector<32x128xf32>
    %c0_10 = arith.constant 0 : index
    %c512 = arith.constant 512 : index
    %25 = vector.load %arg10[%c0_10, %c512] : memref<32x4096xf32, #tpu.memory_space<vmem>>, vector<32x128xf32>
    tpu.vector_store %arg10[%c0_10, %c512], %24 {strides = array<i32>} : memref<32x4096xf32, #tpu.memory_space<vmem>>, vector<32x128xf32>,
    %26 = vector.extract_strided_slice %5 {offsets = [0, 5], sizes = [32, 1], strides = [1, 1]} : vector<32x32xf32> to vector<32x1xf32>
    %27 = vector.broadcast %26 : vector<32x1xf32> to vector<32x128xf32>
    %28 = arith.mulf %27, %3 : vector<32x128xf32>
    %c0_11 = arith.constant 0 : index
    %c640 = arith.constant 640 : index
    %29 = vector.load %arg10[%c0_11, %c640] : memref<32x4096xf32, #tpu.memory_space<vmem>>, vector<32x128xf32>
    tpu.vector_store %arg10[%c0_11, %c640], %28 {strides = array<i32>} : memref<32x4096xf32, #tpu.memory_space<vmem>>, vector<32x128xf32>,
    %30 = vector.extract_strided_slice %5 {offsets = [0, 6], sizes = [32, 1], strides = [1, 1]} : vector<32x32xf32> to vector<32x1xf32>
    %31 = vector.broadcast %30 : vector<32x1xf32> to vector<32x128xf32>
    %32 = arith.mulf %31, %3 : vector<32x128xf32>
    %c0_12 = arith.constant 0 : index
    %c768 = arith.constant 768 : index
    %33 = vector.load %arg10[%c0_12, %c768] : memref<32x4096xf32, #tpu.memory_space<vmem>>, vector<32x128xf32>
    tpu.vector_store %arg10[%c0_12, %c768], %32 {strides = array<i32>} : memref<32x4096xf32, #tpu.memory_space<vmem>>, vector<32x128xf32>,
    %34 = vector.extract_strided_slice %5 {offsets = [0, 7], sizes = [32, 1], strides = [1, 1]} : vector<32x32xf32> to vector<32x1xf32>
    %35 = vector.broadcast %34 : vector<32x1xf32> to vector<32x128xf32>
    %36 = arith.mulf %35, %3 : vector<32x128xf32>
    %c0_13 = arith.constant 0 : index
    %c896 = arith.constant 896 : index
    %37 = vector.load %arg10[%c0_13, %c896] : memref<32x4096xf32, #tpu.memory_space<vmem>>, vector<32x128xf32>
    tpu.vector_store %arg10[%c0_13, %c896], %36 {strides = array<i32>} : memref<32x4096xf32, #tpu.memory_space<vmem>>, vector<32x128xf32>,
    %38 = vector.extract_strided_slice %5 {offsets = [0, 8], sizes = [32, 1], strides = [1, 1]} : vector<32x32xf32> to vector<32x1xf32>
    %39 = vector.broadcast %38 : vector<32x1xf32> to vector<32x128xf32>
    %40 = arith.mulf %39, %3 : vector<32x128xf32>
    %c0_14 = arith.constant 0 : index
    %c1024 = arith.constant 1024 : index
    %41 = vector.load %arg10[%c0_14, %c1024] : memref<32x4096xf32, #tpu.memory_space<vmem>>, vector<32x128xf32>
    tpu.vector_store %arg10[%c0_14, %c1024], %40 {strides = array<i32>} : memref<32x4096xf32, #tpu.memory_space<vmem>>, vector<32x128xf32>,
    %42 = vector.extract_strided_slice %5 {offsets = [0, 9], sizes = [32, 1], strides = [1, 1]} : vector<32x32xf32> to vector<32x1xf32>
    %43 = vector.broadcast %42 : vector<32x1xf32> to vector<32x128xf32>
    %44 = arith.mulf %43, %3 : vector<32x128xf32>
    %c0_15 = arith.constant 0 : index
    %c1152 = arith.constant 1152 : index
    %45 = vector.load %arg10[%c0_15, %c1152] : memref<32x4096xf32, #tpu.memory_space<vmem>>, vector<32x128xf32>
    tpu.vector_store %arg10[%c0_15, %c1152], %44 {strides = array<i32>} : memref<32x4096xf32, #tpu.memory_space<vmem>>, vector<32x128xf32>,
    %46 = vector.extract_strided_slice %5 {offsets = [0, 10], sizes = [32, 1], strides = [1, 1]} : vector<32x32xf32> to vector<32x1xf32>
    %47 = vector.broadcast %46 : vector<32x1xf32> to vector<32x128xf32>
    %48 = arith.mulf %47, %3 : vector<32x128xf32>
    %c0_16 = arith.constant 0 : index
    %c1280 = arith.constant 1280 : index
    %49 = vector.load %arg10[%c0_16, %c1280] : memref<32x4096xf32, #tpu.memory_space<vmem>>, vector<32x128xf32>
    tpu.vector_store %arg10[%c0_16, %c1280], %48 {strides = array<i32>} : memref<32x4096xf32, #tpu.memory_space<vmem>>, vector<32x128xf32>,
    %50 = vector.extract_strided_slice %5 {offsets = [0, 11], sizes = [32, 1], strides = [1, 1]} : vector<32x32xf32> to vector<32x1xf32>
    %51 = vector.broadcast %50 : vector<32x1xf32> to vector<32x128xf32>
    %52 = arith.mulf %51, %3 : vector<32x128xf32>
    %c0_17 = arith.constant 0 : index
    %c1408 = arith.constant 1408 : index
    %53 = vector.load %arg10[%c0_17, %c1408] : memref<32x4096xf32, #tpu.memory_space<vmem>>, vector<32x128xf32>
    tpu.vector_store %arg10[%c0_17, %c1408], %52 {strides = array<i32>} : memref<32x4096xf32, #tpu.memory_space<vmem>>, vector<32x128xf32>,
    %54 = vector.extract_strided_slice %5 {offsets = [0, 12], sizes = [32, 1], strides = [1, 1]} : vector<32x32xf32> to vector<32x1xf32>
    %55 = vector.broadcast %54 : vector<32x1xf32> to vector<32x128xf32>
    %56 = arith.mulf %55, %3 : vector<32x128xf32>
    %c0_18 = arith.constant 0 : index
    %c1536 = arith.constant 1536 : index
    %57 = vector.load %arg10[%c0_18, %c1536] : memref<32x4096xf32, #tpu.memory_space<vmem>>, vector<32x128xf32>
    tpu.vector_store %arg10[%c0_18, %c1536], %56 {strides = array<i32>} : memref<32x4096xf32, #tpu.memory_space<vmem>>, vector<32x128xf32>,
    %58 = vector.extract_strided_slice %5 {offsets = [0, 13], sizes = [32, 1], strides = [1, 1]} : vector<32x32xf32> to vector<32x1xf32>
    %59 = vector.broadcast %58 : vector<32x1xf32> to vector<32x128xf32>
    %60 = arith.mulf %59, %3 : vector<32x128xf32>
    %c0_19 = arith.constant 0 : index
    %c1664 = arith.constant 1664 : index
    %61 = vector.load %arg10[%c0_19, %c1664] : memref<32x4096xf32, #tpu.memory_space<vmem>>, vector<32x128xf32>
    tpu.vector_store %arg10[%c0_19, %c1664], %60 {strides = array<i32>} : memref<32x4096xf32, #tpu.memory_space<vmem>>, vector<32x128xf32>,
    %62 = vector.extract_strided_slice %5 {offsets = [0, 14], sizes = [32, 1], strides = [1, 1]} : vector<32x32xf32> to vector<32x1xf32>
    %63 = vector.broadcast %62 : vector<32x1xf32> to vector<32x128xf32>
    %64 = arith.mulf %63, %3 : vector<32x128xf32>
    %c0_20 = arith.constant 0 : index
    %c1792 = arith.constant 1792 : index
    %65 = vector.load %arg10[%c0_20, %c1792] : memref<32x4096xf32, #tpu.memory_space<vmem>>, vector<32x128xf32>
    tpu.vector_store %arg10[%c0_20, %c1792], %64 {strides = array<i32>} : memref<32x4096xf32, #tpu.memory_space<vmem>>, vector<32x128xf32>,
    %66 = vector.extract_strided_slice %5 {offsets = [0, 15], sizes = [32, 1], strides = [1, 1]} : vector<32x32xf32> to vector<32x1xf32>
    %67 = vector.broadcast %66 : vector<32x1xf32> to vector<32x128xf32>
    %68 = arith.mulf %67, %3 : vector<32x128xf32>
    %c0_21 = arith.constant 0 : index
    %c1920 = arith.constant 1920 : index
    %69 = vector.load %arg10[%c0_21, %c1920] : memref<32x4096xf32, #tpu.memory_space<vmem>>, vector<32x128xf32>
    tpu.vector_store %arg10[%c0_21, %c1920], %68 {strides = array<i32>} : memref<32x4096xf32, #tpu.memory_space<vmem>>, vector<32x128xf32>,
    %70 = vector.extract_strided_slice %5 {offsets = [0, 16], sizes = [32, 1], strides = [1, 1]} : vector<32x32xf32> to vector<32x1xf32>
    %71 = vector.broadcast %70 : vector<32x1xf32> to vector<32x128xf32>
    %72 = arith.mulf %71, %3 : vector<32x128xf32>
    %c0_22 = arith.constant 0 : index
    %c2048 = arith.constant 2048 : index
    %73 = vector.load %arg10[%c0_22, %c2048] : memref<32x4096xf32, #tpu.memory_space<vmem>>, vector<32x128xf32>
    tpu.vector_store %arg10[%c0_22, %c2048], %72 {strides = array<i32>} : memref<32x4096xf32, #tpu.memory_space<vmem>>, vector<32x128xf32>,
    %74 = vector.extract_strided_slice %5 {offsets = [0, 17], sizes = [32, 1], strides = [1, 1]} : vector<32x32xf32> to vector<32x1xf32>
    %75 = vector.broadcast %74 : vector<32x1xf32> to vector<32x128xf32>
    %76 = arith.mulf %75, %3 : vector<32x128xf32>
    %c0_23 = arith.constant 0 : index
    %c2176 = arith.constant 2176 : index
    %77 = vector.load %arg10[%c0_23, %c2176] : memref<32x4096xf32, #tpu.memory_space<vmem>>, vector<32x128xf32>
    tpu.vector_store %arg10[%c0_23, %c2176], %76 {strides = array<i32>} : memref<32x4096xf32, #tpu.memory_space<vmem>>, vector<32x128xf32>,
    %78 = vector.extract_strided_slice %5 {offsets = [0, 18], sizes = [32, 1], strides = [1, 1]} : vector<32x32xf32> to vector<32x1xf32>
    %79 = vector.broadcast %78 : vector<32x1xf32> to vector<32x128xf32>
    %80 = arith.mulf %79, %3 : vector<32x128xf32>
    %c0_24 = arith.constant 0 : index
    %c2304 = arith.constant 2304 : index
    %81 = vector.load %arg10[%c0_24, %c2304] : memref<32x4096xf32, #tpu.memory_space<vmem>>, vector<32x128xf32>
    tpu.vector_store %arg10[%c0_24, %c2304], %80 {strides = array<i32>} : memref<32x4096xf32, #tpu.memory_space<vmem>>, vector<32x128xf32>,
    %82 = vector.extract_strided_slice %5 {offsets = [0, 19], sizes = [32, 1], strides = [1, 1]} : vector<32x32xf32> to vector<32x1xf32>
    %83 = vector.broadcast %82 : vector<32x1xf32> to vector<32x128xf32>
    %84 = arith.mulf %83, %3 : vector<32x128xf32>
    %c0_25 = arith.constant 0 : index
    %c2432 = arith.constant 2432 : index
    %85 = vector.load %arg10[%c0_25, %c2432] : memref<32x4096xf32, #tpu.memory_space<vmem>>, vector<32x128xf32>
    tpu.vector_store %arg10[%c0_25, %c2432], %84 {strides = array<i32>} : memref<32x4096xf32, #tpu.memory_space<vmem>>, vector<32x128xf32>,
    %86 = vector.extract_strided_slice %5 {offsets = [0, 20], sizes = [32, 1], strides = [1, 1]} : vector<32x32xf32> to vector<32x1xf32>
    %87 = vector.broadcast %86 : vector<32x1xf32> to vector<32x128xf32>
    %88 = arith.mulf %87, %3 : vector<32x128xf32>
    %c0_26 = arith.constant 0 : index
    %c2560 = arith.constant 2560 : index
    %89 = vector.load %arg10[%c0_26, %c2560] : memref<32x4096xf32, #tpu.memory_space<vmem>>, vector<32x128xf32>
    tpu.vector_store %arg10[%c0_26, %c2560], %88 {strides = array<i32>} : memref<32x4096xf32, #tpu.memory_space<vmem>>, vector<32x128xf32>,
    %90 = vector.extract_strided_slice %5 {offsets = [0, 21], sizes = [32, 1], strides = [1, 1]} : vector<32x32xf32> to vector<32x1xf32>
    %91 = vector.broadcast %90 : vector<32x1xf32> to vector<32x128xf32>
    %92 = arith.mulf %91, %3 : vector<32x128xf32>
    %c0_27 = arith.constant 0 : index
    %c2688 = arith.constant 2688 : index
    %93 = vector.load %arg10[%c0_27, %c2688] : memref<32x4096xf32, #tpu.memory_space<vmem>>, vector<32x128xf32>
    tpu.vector_store %arg10[%c0_27, %c2688], %92 {strides = array<i32>} : memref<32x4096xf32, #tpu.memory_space<vmem>>, vector<32x128xf32>,
    %94 = vector.extract_strided_slice %5 {offsets = [0, 22], sizes = [32, 1], strides = [1, 1]} : vector<32x32xf32> to vector<32x1xf32>
    %95 = vector.broadcast %94 : vector<32x1xf32> to vector<32x128xf32>
    %96 = arith.mulf %95, %3 : vector<32x128xf32>
    %c0_28 = arith.constant 0 : index
    %c2816 = arith.constant 2816 : index
    %97 = vector.load %arg10[%c0_28, %c2816] : memref<32x4096xf32, #tpu.memory_space<vmem>>, vector<32x128xf32>
    tpu.vector_store %arg10[%c0_28, %c2816], %96 {strides = array<i32>} : memref<32x4096xf32, #tpu.memory_space<vmem>>, vector<32x128xf32>,
    %98 = vector.extract_strided_slice %5 {offsets = [0, 23], sizes = [32, 1], strides = [1, 1]} : vector<32x32xf32> to vector<32x1xf32>
    %99 = vector.broadcast %98 : vector<32x1xf32> to vector<32x128xf32>
    %100 = arith.mulf %99, %3 : vector<32x128xf32>
    %c0_29 = arith.constant 0 : index
    %c2944 = arith.constant 2944 : index
    %101 = vector.load %arg10[%c0_29, %c2944] : memref<32x4096xf32, #tpu.memory_space<vmem>>, vector<32x128xf32>
    tpu.vector_store %arg10[%c0_29, %c2944], %100 {strides = array<i32>} : memref<32x4096xf32, #tpu.memory_space<vmem>>, vector<32x128xf32>,
    %102 = vector.extract_strided_slice %5 {offsets = [0, 24], sizes = [32, 1], strides = [1, 1]} : vector<32x32xf32> to vector<32x1xf32>
    %103 = vector.broadcast %102 : vector<32x1xf32> to vector<32x128xf32>
    %104 = arith.mulf %103, %3 : vector<32x128xf32>
    %c0_30 = arith.constant 0 : index
    %c3072 = arith.constant 3072 : index
    %105 = vector.load %arg10[%c0_30, %c3072] : memref<32x4096xf32, #tpu.memory_space<vmem>>, vector<32x128xf32>
    tpu.vector_store %arg10[%c0_30, %c3072], %104 {strides = array<i32>} : memref<32x4096xf32, #tpu.memory_space<vmem>>, vector<32x128xf32>,
    %106 = vector.extract_strided_slice %5 {offsets = [0, 25], sizes = [32, 1], strides = [1, 1]} : vector<32x32xf32> to vector<32x1xf32>
    %107 = vector.broadcast %106 : vector<32x1xf32> to vector<32x128xf32>
    %108 = arith.mulf %107, %3 : vector<32x128xf32>
    %c0_31 = arith.constant 0 : index
    %c3200 = arith.constant 3200 : index
    %109 = vector.load %arg10[%c0_31, %c3200] : memref<32x4096xf32, #tpu.memory_space<vmem>>, vector<32x128xf32>
    tpu.vector_store %arg10[%c0_31, %c3200], %108 {strides = array<i32>} : memref<32x4096xf32, #tpu.memory_space<vmem>>, vector<32x128xf32>,
    %110 = vector.extract_strided_slice %5 {offsets = [0, 26], sizes = [32, 1], strides = [1, 1]} : vector<32x32xf32> to vector<32x1xf32>
    %111 = vector.broadcast %110 : vector<32x1xf32> to vector<32x128xf32>
    %112 = arith.mulf %111, %3 : vector<32x128xf32>
    %c0_32 = arith.constant 0 : index
    %c3328 = arith.constant 3328 : index
    %113 = vector.load %arg10[%c0_32, %c3328] : memref<32x4096xf32, #tpu.memory_space<vmem>>, vector<32x128xf32>
    tpu.vector_store %arg10[%c0_32, %c3328], %112 {strides = array<i32>} : memref<32x4096xf32, #tpu.memory_space<vmem>>, vector<32x128xf32>,
    %114 = vector.extract_strided_slice %5 {offsets = [0, 27], sizes = [32, 1], strides = [1, 1]} : vector<32x32xf32> to vector<32x1xf32>
    %115 = vector.broadcast %114 : vector<32x1xf32> to vector<32x128xf32>
    %116 = arith.mulf %115, %3 : vector<32x128xf32>
    %c0_33 = arith.constant 0 : index
    %c3456 = arith.constant 3456 : index
    %117 = vector.load %arg10[%c0_33, %c3456] : memref<32x4096xf32, #tpu.memory_space<vmem>>, vector<32x128xf32>
    tpu.vector_store %arg10[%c0_33, %c3456], %116 {strides = array<i32>} : memref<32x4096xf32, #tpu.memory_space<vmem>>, vector<32x128xf32>,
    %118 = vector.extract_strided_slice %5 {offsets = [0, 28], sizes = [32, 1], strides = [1, 1]} : vector<32x32xf32> to vector<32x1xf32>
    %119 = vector.broadcast %118 : vector<32x1xf32> to vector<32x128xf32>
    %120 = arith.mulf %119, %3 : vector<32x128xf32>
    %c0_34 = arith.constant 0 : index
    %c3584 = arith.constant 3584 : index
    %121 = vector.load %arg10[%c0_34, %c3584] : memref<32x4096xf32, #tpu.memory_space<vmem>>, vector<32x128xf32>
    tpu.vector_store %arg10[%c0_34, %c3584], %120 {strides = array<i32>} : memref<32x4096xf32, #tpu.memory_space<vmem>>, vector<32x128xf32>,
    %122 = vector.extract_strided_slice %5 {offsets = [0, 29], sizes = [32, 1], strides = [1, 1]} : vector<32x32xf32> to vector<32x1xf32>
    %123 = vector.broadcast %122 : vector<32x1xf32> to vector<32x128xf32>
    %124 = arith.mulf %123, %3 : vector<32x128xf32>
    %c0_35 = arith.constant 0 : index
    %c3712 = arith.constant 3712 : index
    %125 = vector.load %arg10[%c0_35, %c3712] : memref<32x4096xf32, #tpu.memory_space<vmem>>, vector<32x128xf32>
    tpu.vector_store %arg10[%c0_35, %c3712], %124 {strides = array<i32>} : memref<32x4096xf32, #tpu.memory_space<vmem>>, vector<32x128xf32>,
    %126 = vector.extract_strided_slice %5 {offsets = [0, 30], sizes = [32, 1], strides = [1, 1]} : vector<32x32xf32> to vector<32x1xf32>
    %127 = vector.broadcast %126 : vector<32x1xf32> to vector<32x128xf32>
    %128 = arith.mulf %127, %3 : vector<32x128xf32>
    %c0_36 = arith.constant 0 : index
    %c3840 = arith.constant 3840 : index
    %129 = vector.load %arg10[%c0_36, %c3840] : memref<32x4096xf32, #tpu.memory_space<vmem>>, vector<32x128xf32>
    tpu.vector_store %arg10[%c0_36, %c3840], %128 {strides = array<i32>} : memref<32x4096xf32, #tpu.memory_space<vmem>>, vector<32x128xf32>,
    %130 = vector.extract_strided_slice %5 {offsets = [0, 31], sizes = [32, 1], strides = [1, 1]} : vector<32x32xf32> to vector<32x1xf32>
    %131 = vector.broadcast %130 : vector<32x1xf32> to vector<32x128xf32>
    %132 = arith.mulf %131, %3 : vector<32x128xf32>
    %c0_37 = arith.constant 0 : index
    %c3968 = arith.constant 3968 : index
    %133 = vector.load %arg10[%c0_37, %c3968] : memref<32x4096xf32, #tpu.memory_space<vmem>>, vector<32x128xf32>
    tpu.vector_store %arg10[%c0_37, %c3968], %132 {strides = array<i32>} : memref<32x4096xf32, #tpu.memory_space<vmem>>, vector<32x128xf32>,
    %c0_38 = arith.constant 0 : index
    %c0_39 = arith.constant 0 : index
    %134 = vector.load %arg11[%c0_38, %c0_39] : memref<32x128xf32, #tpu.memory_space<vmem>>, vector<32x128xf32>
    %c0_40 = arith.constant 0 : index
    %c0_41 = arith.constant 0 : index
    %135 = vector.load %arg10[%c0_40, %c0_41] : memref<32x4096xf32, #tpu.memory_space<vmem>>, vector<32x4096xf32>
    %c0_42 = arith.constant 0 : index
    %c0_43 = arith.constant 0 : index
    %136 = vector.load %arg3[%c0_42, %c0_43] : memref<4096x128xf32, #tpu.memory_space<vmem>>, vector<4096x128xf32>
    %cst = arith.constant dense<0.000000e+00> : vector<32x128xf32>
    %137 = tpu.matmul %135, %136, %cst {dimension_numbers = #tpu.dot_dimension_numbers<[1], [0], [0], [1], [0, 0, 1, 1], [], []>} : vector<32x4096xf32>, vector<4096x128xf32>, vector<32x128xf32> -> vector<32x128xf32>
    %138 = arith.addf %134, %137 : vector<32x128xf32>
    %c0_44 = arith.constant 0 : index
    %c0_45 = arith.constant 0 : index
    %139 = vector.load %arg11[%c0_44, %c0_45] : memref<32x128xf32, #tpu.memory_space<vmem>>, vector<32x128xf32>
    tpu.vector_store %arg11[%c0_44, %c0_45], %138 {strides = array<i32>} : memref<32x128xf32, #tpu.memory_space<vmem>>, vector<32x128xf32>,
    %c0_i32_46 = arith.constant 0 : i32
    %140 = arith.cmpi eq, %arg0, %c0_i32_46 : i32
    %141 = arith.extui %140 : i1 to i32
    %c0_i32_47 = arith.constant 0 : i32
    %142 = arith.cmpi ne, %141, %c0_i32_47 : i32
    scf.if %142 {
      %c0_48 = arith.constant 0 : index
      %c0_49 = arith.constant 0 : index
      %143 = vector.load %arg11[%c0_48, %c0_49] : memref<32x128xf32, #tpu.memory_space<vmem>>, vector<32x128xf32>
      %cst_50 = arith.constant dense<0.000000e+00> : vector<128xf32>
      %144 = vector.multi_reduction <add>, %143, %cst_50 [0] : vector<32x128xf32> to vector<128xf32>
      %145 = vector.shape_cast %144 : vector<128xf32> to vector<1x128xf32>
      %cst_51 = arith.constant 3.200000e+01 : f32
      %146 = vector.broadcast %cst_51 : f32 to vector<1x128xf32>
      %147 = arith.divf %145, %146 : vector<1x128xf32>
      %148 = vector.broadcast %147 : vector<1x128xf32> to vector<32x128xf32>
      %149 = arith.subf %143, %148 : vector<32x128xf32>
      %150 = arith.mulf %149, %149 : vector<32x128xf32>
      %cst_52 = arith.constant dense<0.000000e+00> : vector<128xf32>
      %151 = vector.multi_reduction <add>, %150, %cst_52 [0] : vector<32x128xf32> to vector<128xf32>
      %152 = vector.shape_cast %151 : vector<128xf32> to vector<1x128xf32>
      %cst_53 = arith.constant 3.200000e+01 : f32
      %153 = vector.broadcast %cst_53 : f32 to vector<1x128xf32>
      %154 = arith.divf %152, %153 : vector<1x128xf32>
      %155 = vector.broadcast %147 : vector<1x128xf32> to vector<32x128xf32>
      %156 = arith.subf %143, %155 : vector<32x128xf32>
      %cst_54 = arith.constant 9.99999974E-6 : f32
      %157 = vector.broadcast %cst_54 : f32 to vector<1x128xf32>
      %158 = arith.addf %154, %157 : vector<1x128xf32>
      %159 = math.rsqrt %158 : vector<1x128xf32>
      %160 = vector.broadcast %159 : vector<1x128xf32> to vector<32x128xf32>
      %161 = arith.mulf %156, %160 : vector<32x128xf32>
      %c0_55 = arith.constant 0 : index
      %c0_56 = arith.constant 0 : index
      %162 = vector.load %arg6[%c0_55, %c0_56] : memref<1x128xf32, #tpu.memory_space<vmem>>, vector<1x128xf32>
      %163 = vector.broadcast %162 : vector<1x128xf32> to vector<32x128xf32>
      %164 = arith.mulf %161, %163 : vector<32x128xf32>
      %c0_57 = arith.constant 0 : index
      %c0_58 = arith.constant 0 : index
      %165 = vector.load %arg7[%c0_57, %c0_58] : memref<1x128xf32, #tpu.memory_space<vmem>>, vector<1x128xf32>
      %166 = vector.broadcast %165 : vector<1x128xf32> to vector<32x128xf32>
      %167 = arith.addf %164, %166 : vector<32x128xf32>
      %c0_59 = arith.constant 0 : index
      %c0_60 = arith.constant 0 : index
      %168 = vector.load %arg8[%c0_59, %c0_60] : memref<32x128xf32, #tpu.memory_space<vmem>>, vector<32x128xf32>
      tpu.vector_store %arg8[%c0_59, %c0_60], %167 {strides = array<i32>} : memref<32x128xf32, #tpu.memory_space<vmem>>, vector<32x128xf32>,
    } else {
    }
    return
  }
  func.func @transform_0(%arg0: i32) -> (i32, i32) {
    %c0_i32 = arith.constant 0 : i32
    %c0_i32_0 = arith.constant 0 : i32
    %c0_i32_1 = arith.constant 0 : i32
    return %c0_i32, %c0_i32_0 : i32, i32
  }
  func.func @transform_1(%arg0: i32) -> (i32, i32, i32) {
    %c0_i32 = arith.constant 0 : i32
    %c0_i32_0 = arith.constant 0 : i32
    %c0_i32_1 = arith.constant 0 : i32
    return %arg0, %c0_i32, %c0_i32_0 : i32, i32, i32
  }
  func.func @transform_2(%arg0: i32) -> (i32, i32) {
    %c0_i32 = arith.constant 0 : i32
    %c0_i32_0 = arith.constant 0 : i32
    return %arg0, %c0_i32 : i32, i32
  }
  func.func @transform_3(%arg0: i32) -> (i32, i32) {
    %c0_i32 = arith.constant 0 : i32
    %c0_i32_0 = arith.constant 0 : i32
    %c0_i32_1 = arith.constant 0 : i32
    return %c0_i32, %c0_i32_0 : i32, i32
  }
  func.func @transform_4(%arg0: i32) -> (i32, i32) {
    %c0_i32 = arith.constant 0 : i32
    %c0_i32_0 = arith.constant 0 : i32
    %c0_i32_1 = arith.constant 0 : i32
    return %c0_i32, %c0_i32_0 : i32, i32
  }
  func.func @transform_5(%arg0: i32) -> (i32, i32) {
    %c0_i32 = arith.constant 0 : i32
    %c0_i32_0 = arith.constant 0 : i32
    %c0_i32_1 = arith.constant 0 : i32
    return %c0_i32, %c0_i32_0 : i32, i32
  }
  func.func @transform_6(%arg0: i32) -> (i32, i32) {
    %c0_i32 = arith.constant 0 : i32
    %c0_i32_0 = arith.constant 0 : i32
    %c0_i32_1 = arith.constant 0 : i32
    return %c0_i32, %c0_i32_0 : i32, i32
  }
  func.func @transform_7(%arg0: i32) -> (i32, i32) {
    %c0_i32 = arith.constant 0 : i32
    %c0_i32_0 = arith.constant 0 : i32
    %c0_i32_1 = arith.constant 0 : i32
    return %c0_i32, %c0_i32_0 : i32, i32
  }
}

module attributes {stable_mosaic.version = 11 : i64} {
  func.func @_scoring_kernel(%arg0: i32, %arg1: memref<32x128xf32, #tpu.memory_space<vmem>>, %arg2: memref<128x2048xbf16, #tpu.memory_space<vmem>>, %arg3: memref<32x2048xf32, #tpu.memory_space<vmem>>) attributes {dimension_semantics = [#tpu.dimension_semantics<parallel>], iteration_bounds = array<i64: 3>, scalar_prefetch = 0 : i64, scratch_operands = 0 : i64, tpu.core_type = #tpu.core_type<tc>, window_params = [{pipeline_mode = #tpu.pipeline_mode<synchronous>, transform_indices = @transform_0, window_bounds = array<i64: 32, 128>}, {transform_indices = @transform_1, window_bounds = array<i64: 128, 2048>}, {transform_indices = @transform_2, window_bounds = array<i64: 32, 2048>}]} {
    %c0 = arith.constant 0 : index
    %c0_0 = arith.constant 0 : index
    %0 = vector.load %arg1[%c0, %c0_0] : memref<32x128xf32, #tpu.memory_space<vmem>>, vector<32x128xf32>
    %1 = arith.truncf %0 : vector<32x128xf32> to vector<32x128xbf16>
    %c0_1 = arith.constant 0 : index
    %c0_2 = arith.constant 0 : index
    %2 = vector.load %arg2[%c0_1, %c0_2] : memref<128x2048xbf16, #tpu.memory_space<vmem>>, vector<128x2048xbf16>
    %cst = arith.constant dense<0.000000e+00> : vector<32x2048xf32>
    %3 = tpu.matmul %1, %2, %cst {dimension_numbers = #tpu.dot_dimension_numbers<[1], [0], [0], [1], [0, 0, 1, 1], [], []>} : vector<32x128xbf16>, vector<128x2048xbf16>, vector<32x2048xf32> -> vector<32x2048xf32>
    %4 = arith.negf %3 : vector<32x2048xf32>
    %5 = math.exp %4 : vector<32x2048xf32>
    %cst_3 = arith.constant 1.000000e+00 : f32
    %6 = vector.broadcast %cst_3 : f32 to vector<32x2048xf32>
    %7 = arith.addf %6, %5 : vector<32x2048xf32>
    %8 = arith.divf %6, %7 : vector<32x2048xf32>
    %c0_4 = arith.constant 0 : index
    %c0_5 = arith.constant 0 : index
    %9 = vector.load %arg3[%c0_4, %c0_5] : memref<32x2048xf32, #tpu.memory_space<vmem>>, vector<32x2048xf32>
    tpu.vector_store %arg3[%c0_4, %c0_5], %8 {strides = array<i32>} : memref<32x2048xf32, #tpu.memory_space<vmem>>, vector<32x2048xf32>,
    return
  }
  func.func @transform_0(%arg0: i32) -> (i32, i32) {
    %c0_i32 = arith.constant 0 : i32
    %c0_i32_0 = arith.constant 0 : i32
    %c0_i32_1 = arith.constant 0 : i32
    return %c0_i32, %c0_i32_0 : i32, i32
  }
  func.func @transform_1(%arg0: i32) -> (i32, i32) {
    %c0_i32 = arith.constant 0 : i32
    %c0_i32_0 = arith.constant 0 : i32
    return %c0_i32, %arg0 : i32, i32
  }
  func.func @transform_2(%arg0: i32) -> (i32, i32) {
    %c0_i32 = arith.constant 0 : i32
    %c0_i32_0 = arith.constant 0 : i32
    return %c0_i32, %arg0 : i32, i32
  }
}

</mosaic_0001>

<llo_original>
// kernel: tucker_forward.3
$region0: #{tucker_forward.3}
  #allocation0 [shape = 'u32[]', space=smem, size = 0x4, offset = 0x4, fixed_abs, tag = 'smem constant byte address 0x4 - core index']
  #allocation1 [shape = 'u32[144,128]{1,0:T(1,128)}', space=vmem, size = 0x12000, scoped, tag = 'internal scratch']
  %s0 = inlined_call_operand.vmem [shape: f32[32,128], index: 0, kind: input, shape index: {}]
  %s1 = inlined_call_operand.vmem [shape: bf16[128,5000], index: 1, kind: input, shape index: {}]
  %s2 = inlined_call_operand.hbm [shape: f32[32,5000], index: 2, kind: output, shape index: {}]
  %s3 = sld [smem:[#allocation0]]
  $region107: #{tucker_forward.3} parent=0
    _
  %s5 = ssub.s32 1, %s3
  %s6 = scalar_select 0, %s5, %s3
  $region1: #{tucker_forward.3} parent=0
    #allocation2 [shape = 'u8[1048576]{0}', space=vmem, size = 0x100000, scoped, tag = 'input window, operand 1']
    #allocation3 [shape = 'u8[524288]{0}', space=vmem, size = 0x80000, scoped, tag = 'output window, operand 0']
    #allocation4 [shape = 's32[2]{0}', space=sflag, size = 0x8, scoped, tag = 'scoped memory for tucker_forward.3']
    %7 = vsyncpa [#allocation4], 0
    %s8 = scalar_lea.sflag [#allocation4], 1
    %9 = vsyncpa %s8, 0
    loop: start=0, step=1, limit=5
    $region2: #{tucker_forward.3} parent=1 // loop_pre_header
      _
    $region3: #{tucker_forward.3} parent=1 // loop_header
      %s11 = sphi 0, %s15
      %p12 = scmp.ge.s32.totalorder %s11, 5
      %s19 = sphi 0, %s19
      %s21 = sphi 0, %s19
      %s22 = sphi 0, %s21
      %s36 = sphi 0, %s22
      %s42 = sphi 0, %s44
      %s45 = sphi 0, %s42
      %s46 = sphi 0, %s45
      %s62 = sphi 0, %s46
      %s68 = sphi 0, %s70
      %s71 = sphi 0, %s68
      %s72 = sphi 0, %s71
      %s88 = sphi 0, %s72
    $region4: #{tucker_forward.3} parent=1 // loop_header_branch
      %14 = sbr.rel (%p12) target = $region8
    $region5: #{tucker_forward.3} parent=1 // loop_body
      %s16 = ssub.s32 %s11, 1
      %s17 = ssub.s32 %s11, 2
      %s18 = sadd.s32 %s11, 1
      %s20 = sadd.s32 %s19, 1
      %p23 = scmp.eq.s32.totalorder %s11, 2
      %p24 = scmp.ne.s32.totalorder %s19, %s21
      %p25 = scmp.eq.s32.totalorder %s11, 0
      %p26 = por %p24, %p25
      %p27 = scmp.ne.s32.totalorder %s19, %s21
      %p28 = scmp.eq.s32.totalorder %s16, 2
      %p29 = por %p27, %p28
      %p30 = scmp.ne.s32.totalorder %s21, %s22
      %p31 = scmp.eq.s32.totalorder %s16, 0
      %p32 = por %p30, %p31
      %p33 = scmp.ne.s32.totalorder %s21, %s22
      %p34 = scmp.eq.s32.totalorder %s17, 2
      %p35 = por %p33, %p34
      %p37 = scmp.ne.s32.totalorder %s22, %s36
      %p38 = scmp.eq.s32.totalorder %s17, 0
      %p39 = por %p37, %p38
      %s40 = ssub.s32 %s11, %s18
      %p41 = scmp.eq.s32.totalorder %s40, 0
      %s43 = sadd.s32 %s42, 1
      %s44 = scalar_select %p41, %s42, %s43
      %p47 = pneg %p41
      %p48 = scmp.eq.s32.totalorder %s11, 2
      %p49 = por %p47, %p48
      %p50 = scmp.ne.s32.totalorder %s42, %s45
      %p51 = scmp.eq.s32.totalorder %s11, 0
      %p52 = por %p50, %p51
      %p53 = scmp.ne.s32.totalorder %s42, %s45
      %p54 = scmp.eq.s32.totalorder %s16, 2
      %p55 = por %p53, %p54
      %p56 = scmp.ne.s32.totalorder %s45, %s46
      %p57 = scmp.eq.s32.totalorder %s16, 0
      %p58 = por %p56, %p57
      %p59 = scmp.ne.s32.totalorder %s45, %s46
      %p60 = scmp.eq.s32.totalorder %s17, 2
      %p61 = por %p59, %p60
      %p63 = scmp.ne.s32.totalorder %s46, %s62
      %p64 = scmp.eq.s32.totalorder %s17, 0
      %p65 = por %p63, %p64
      %s66 = ssub.s32 %s11, %s18
      %p67 = scmp.eq.s32.totalorder %s66, 0
      %s69 = sadd.s32 %s68, 1
      %s70 = scalar_select %p67, %s68, %s69
      %p73 = pneg %p67
      %p74 = scmp.eq.s32.totalorder %s11, 2
      %p75 = por %p73, %p74
      %p76 = scmp.ne.s32.totalorder %s68, %s71
      %p77 = scmp.eq.s32.totalorder %s11, 0
      %p78 = por %p76, %p77
      %p79 = scmp.ne.s32.totalorder %s68, %s71
      %p80 = scmp.eq.s32.totalorder %s16, 2
      %p81 = por %p79, %p80
      %p82 = scmp.ne.s32.totalorder %s71, %s72
      %p83 = scmp.eq.s32.totalorder %s16, 0
      %p84 = por %p82, %p83
      %p85 = scmp.ne.s32.totalorder %s71, %s72
      %p86 = scmp.eq.s32.totalorder %s17, 2
      %p87 = por %p85, %p86
      %p89 = scmp.ne.s32.totalorder %s72, %s88
      %p90 = scmp.eq.s32.totalorder %s17, 0
      %p91 = por %p89, %p90
      %p92 = scmp.le.s32.totalorder 1, %s11
      %p93 = scmp.lt.s32.totalorder %s11, 4
      %p94 = pnand %p92, %p93
      %p95 = pneg %p94
      // Predicated region
      $region9: #{tucker_forward.3} parent=5 // pred_check
        _
      $region10: #{tucker_forward.3} parent=5 // pred_check_branch
        %97 = sbr.rel (%p94) target = $region12
      $region11: #{tucker_forward.3} parent=5 // pred_region
        %s98 = ssub.s32 %s11, 1
        // Predicated region
        $region13: #{tucker_forward.3} parent=11 // pred_check
          %p99 = pneg %p32
        $region14: #{tucker_forward.3} parent=11 // pred_check_branch
          %101 = sbr.rel (%p99) target = $region16
        $region15: #{tucker_forward.3} parent=11 // pred_region
          _
        $region16: #{tucker_forward.3} parent=11 // pred_fallthru
          _
      $region12: #{tucker_forward.3} parent=5 // pred_fallthru
        _
      %p102 = scmp.lt.s32.totalorder %s11, 3
      // Predicated region
      $region17: #{tucker_forward.3} parent=5 // pred_check
        %p103 = pneg %p102
      $region18: #{tucker_forward.3} parent=5 // pred_check_branch
        %105 = sbr.rel (%p103) target = $region20
      $region19: #{tucker_forward.3} parent=5 // pred_region
        // Predicated region
        $region21: #{tucker_forward.3} parent=19 // pred_check
          %p106 = pneg %p52
        $region22: #{tucker_forward.3} parent=19 // pred_check_branch
          %108 = sbr.rel (%p106) target = $region24
        $region23: #{tucker_forward.3} parent=19 // pred_region
          %s109 = sand.u32 %s42, 1
          %s110 = sand.u32 %s42, 1
          %s111 = smul.addr %s110, 1024
          %s112 = scalar_lea.vmem [#allocation2], %s111
          %s113 = smul.u32 16, %s11
          %s114 = ssub.s32 40, %s113
          %p115 = scmp.lt.s32.totalorder %s114, 16
          %s116 = scalar_select %p115, %s114, 16
          %s117 = smul.u32 1024, %s116
          %p118 = scmp.ne.s32.totalorder 0, %s117
          %s119 = smul.addr %s113, 4
          %s120 = scalar_lea.vmem %s1, %s119
          %s121 = smul.u32 %s116, 4
          // Predicated region
          $region25: #{tucker_forward.3} parent=23 // pred_check
            %p122 = pneg %p118
          $region26: #{tucker_forward.3} parent=23 // pred_check_branch
            %124 = sbr.rel (%p122) target = $region28
          $region27: #{tucker_forward.3} parent=23 // pred_region
            %p125 = scmp.lt.u32.totalorder %s121, 8
            %p126 = pneg %p125
            // Predicated region
            $region29: #{tucker_forward.3} parent=27 // pred_check
              _
            $region30: #{tucker_forward.3} parent=27 // pred_check_branch
              %128 = sbr.rel (%p125) target = $region32
            $region31: #{tucker_forward.3} parent=27 // pred_region
              %s173 = sand.u32 %s121, 7
              %p174 = scmp.eq.s32.totalorder %s173, 0
              // Predicated region
              $region44: #{tucker_forward.3} parent=31 // pred_check
                %p175 = pneg %p174
              $region45: #{tucker_forward.3} parent=31 // pred_check_branch
                %177 = sbr.rel (%p175) target = $region47
              $region46: #{tucker_forward.3} parent=31 // pred_region
                %s178 = sshrl.u32 %s121, 3
                %s179 = sshrl.u32 %s178, 2
                // While loop
                $region48: #{tucker_forward.3} parent=46 // loop_pre_header
                  _
                $region49: #{tucker_forward.3} parent=46 // loop_header
                  %s183 = sphi 0, %s185
                  %p184 = scmp.ge.s32.totalorder %s183, %s179
                  %s188 = sphi 0, %s321
                  %s189 = sphi %s120, %s324
                  %s190 = sphi %s112, %s325
                $region50: #{tucker_forward.3} parent=46 // loop_header_branch
                  %187 = sbr.rel (%p184) target = $region54
                $region51: #{tucker_forward.3} parent=46 // loop_body
                  %v191 = vld [vmem:[%s189] sm:$0xff]
                  %192 = vst [vmem:[%s190] sm:$0xff] %v191
                  %v193 = vld [vmem:[%s189 + $0x8] sm:$0xff]
                  %194 = vst [vmem:[%s190 + $0x8] sm:$0xff] %v193
                  %v195 = vld [vmem:[%s189 + $0x10] sm:$0xff]
                  %196 = vst [vmem:[%s190 + $0x10] sm:$0xff] %v195
                  %v197 = vld [vmem:[%s189 + $0x18] sm:$0xff]
                  %198 = vst [vmem:[%s190 + $0x18] sm:$0xff] %v197
                  %v199 = vld [vmem:[%s189 + $0xa0] sm:$0xff]
                  %200 = vst [vmem:[%s190 + $0x40] sm:$0xff] %v199
                  %v201 = vld [vmem:[%s189 + $0xa8] sm:$0xff]
                  %202 = vst [vmem:[%s190 + $0x48] sm:$0xff] %v201
                  %v203 = vld [vmem:[%s189 + $0xb0] sm:$0xff]
                  %204 = vst [vmem:[%s190 + $0x50] sm:$0xff] %v203
                  %v205 = vld [vmem:[%s189 + $0xb8] sm:$0xff]
                  %206 = vst [vmem:[%s190 + $0x58] sm:$0xff] %v205
                  %v207 = vld [vmem:[%s189 + $0x140] sm:$0xff]
                  %208 = vst [vmem:[%s190 + $0x80] sm:$0xff] %v207
                  %v209 = vld [vmem:[%s189 + $0x148] sm:$0xff]
                  %210 = vst [vmem:[%s190 + $0x88] sm:$0xff] %v209
                  %v211 = vld [vmem:[%s189 + $0x150] sm:$0xff]
                  %212 = vst [vmem:[%s190 + $0x90] sm:$0xff] %v211
                  %v213 = vld [vmem:[%s189 + $0x158] sm:$0xff]
                  %214 = vst [vmem:[%s190 + $0x98] sm:$0xff] %v213
                  %v215 = vld [vmem:[%s189 + $0x1e0] sm:$0xff]
                  %216 = vst [vmem:[%s190 + $0xc0] sm:$0xff] %v215
                  %v217 = vld [vmem:[%s189 + $0x1e8] sm:$0xff]
                  %218 = vst [vmem:[%s190 + $0xc8] sm:$0xff] %v217
                  %v219 = vld [vmem:[%s189 + $0x1f0] sm:$0xff]
                  %220 = vst [vmem:[%s190 + $0xd0] sm:$0xff] %v219
                  %v221 = vld [vmem:[%s189 + $0x1f8] sm:$0xff]
                  %222 = vst [vmem:[%s190 + $0xd8] sm:$0xff] %v221
                  %v223 = vld [vmem:[%s189 + $0x280] sm:$0xff]
                  %224 = vst [vmem:[%s190 + $0x100] sm:$0xff] %v223
                  %v225 = vld [vmem:[%s189 + $0x288] sm:$0xff]
                  %226 = vst [vmem:[%s190 + $0x108] sm:$0xff] %v225
                  %v227 = vld [vmem:[%s189 + $0x290] sm:$0xff]
                  %228 = vst [vmem:[%s190 + $0x110] sm:$0xff] %v227
                  %v229 = vld [vmem:[%s189 + $0x298] sm:$0xff]
                  %230 = vst [vmem:[%s190 + $0x118] sm:$0xff] %v229
                  %v231 = vld [vmem:[%s189 + $0x320] sm:$0xff]
                  %232 = vst [vmem:[%s190 + $0x140] sm:$0xff] %v231
                  %v233 = vld [vmem:[%s189 + $0x328] sm:$0xff]
                  %234 = vst [vmem:[%s190 + $0x148] sm:$0xff] %v233
                  %v235 = vld [vmem:[%s189 + $0x330] sm:$0xff]
                  %236 = vst [vmem:[%s190 + $0x150] sm:$0xff] %v235
                  %v237 = vld [vmem:[%s189 + $0x338] sm:$0xff]
                  %238 = vst [vmem:[%s190 + $0x158] sm:$0xff] %v237
                  %v239 = vld [vmem:[%s189 + $0x3c0] sm:$0xff]
                  %240 = vst [vmem:[%s190 + $0x180] sm:$0xff] %v239
                  %v241 = vld [vmem:[%s189 + $0x3c8] sm:$0xff]
                  %242 = vst [vmem:[%s190 + $0x188] sm:$0xff] %v241
                  %v243 = vld [vmem:[%s189 + $0x3d0] sm:$0xff]
                  %244 = vst [vmem:[%s190 + $0x190] sm:$0xff] %v243
                  %v245 = vld [vmem:[%s189 + $0x3d8] sm:$0xff]
                  %246 = vst [vmem:[%s190 + $0x198] sm:$0xff] %v245
                  %v247 = vld [vmem:[%s189 + $0x460] sm:$0xff]
                  %248 = vst [vmem:[%s190 + $0x1c0] sm:$0xff] %v247
                  %v249 = vld [vmem:[%s189 + $0x468] sm:$0xff]
                  %250 = vst [vmem:[%s190 + $0x1c8] sm:$0xff] %v249
                  %v251 = vld [vmem:[%s189 + $0x470] sm:$0xff]
                  %252 = vst [vmem:[%s190 + $0x1d0] sm:$0xff] %v251
                  %v253 = vld [vmem:[%s189 + $0x478] sm:$0xff]
                  %254 = vst [vmem:[%s190 + $0x1d8] sm:$0xff] %v253
                  %v255 = vld [vmem:[%s189 + $0x500] sm:$0xff]
                  %256 = vst [vmem:[%s190 + $0x200] sm:$0xff] %v255
                  %v257 = vld [vmem:[%s189 + $0x508] sm:$0xff]
                  %258 = vst [vmem:[%s190 + $0x208] sm:$0xff] %v257
                  %v259 = vld [vmem:[%s189 + $0x510] sm:$0xff]
                  %260 = vst [vmem:[%s190 + $0x210] sm:$0xff] %v259
                  %v261 = vld [vmem:[%s189 + $0x518] sm:$0xff]
                  %262 = vst [vmem:[%s190 + $0x218] sm:$0xff] %v261
                  %v263 = vld [vmem:[%s189 + $0x5a0] sm:$0xff]
                  %264 = vst [vmem:[%s190 + $0x240] sm:$0xff] %v263
                  %v265 = vld [vmem:[%s189 + $0x5a8] sm:$0xff]
                  %266 = vst [vmem:[%s190 + $0x248] sm:$0xff] %v265
                  %v267 = vld [vmem:[%s189 + $0x5b0] sm:$0xff]
                  %268 = vst [vmem:[%s190 + $0x250] sm:$0xff] %v267
                  %v269 = vld [vmem:[%s189 + $0x5b8] sm:$0xff]
                  %270 = vst [vmem:[%s190 + $0x258] sm:$0xff] %v269
                  %v271 = vld [vmem:[%s189 + $0x640] sm:$0xff]
                  %272 = vst [vmem:[%s190 + $0x280] sm:$0xff] %v271
                  %v273 = vld [vmem:[%s189 + $0x648] sm:$0xff]
                  %274 = vst [vmem:[%s190 + $0x288] sm:$0xff] %v273
                  %v275 = vld [vmem:[%s189 + $0x650] sm:$0xff]
                  %276 = vst [vmem:[%s190 + $0x290] sm:$0xff] %v275
                  %v277 = vld [vmem:[%s189 + $0x658] sm:$0xff]
                  %278 = vst [vmem:[%s190 + $0x298] sm:$0xff] %v277
                  %v279 = vld [vmem:[%s189 + $0x6e0] sm:$0xff]
                  %280 = vst [vmem:[%s190 + $0x2c0] sm:$0xff] %v279
                  %v281 = vld [vmem:[%s189 + $0x6e8] sm:$0xff]
                  %282 = vst [vmem:[%s190 + $0x2c8] sm:$0xff] %v281
                  %v283 = vld [vmem:[%s189 + $0x6f0] sm:$0xff]
                  %284 = vst [vmem:[%s190 + $0x2d0] sm:$0xff] %v283
                  %v285 = vld [vmem:[%s189 + $0x6f8] sm:$0xff]
                  %286 = vst [vmem:[%s190 + $0x2d8] sm:$0xff] %v285
                  %v287 = vld [vmem:[%s189 + $0x780] sm:$0xff]
                  %288 = vst [vmem:[%s190 + $0x300] sm:$0xff] %v287
                  %v289 = vld [vmem:[%s189 + $0x788] sm:$0xff]
                  %290 = vst [vmem:[%s190 + $0x308] sm:$0xff] %v289
                  %v291 = vld [vmem:[%s189 + $0x790] sm:$0xff]
                  %292 = vst [vmem:[%s190 + $0x310] sm:$0xff] %v291
                  %v293 = vld [vmem:[%s189 + $0x798] sm:$0xff]
                  %294 = vst [vmem:[%s190 + $0x318] sm:$0xff] %v293
                  %v295 = vld [vmem:[%s189 + $0x820] sm:$0xff]
                  %296 = vst [vmem:[%s190 + $0x340] sm:$0xff] %v295
                  %v297 = vld [vmem:[%s189 + $0x828] sm:$0xff]
                  %298 = vst [vmem:[%s190 + $0x348] sm:$0xff] %v297
                  %v299 = vld [vmem:[%s189 + $0x830] sm:$0xff]
                  %300 = vst [vmem:[%s190 + $0x350] sm:$0xff] %v299
                  %v301 = vld [vmem:[%s189 + $0x838] sm:$0xff]
                  %302 = vst [vmem:[%s190 + $0x358] sm:$0xff] %v301
                  %v303 = vld [vmem:[%s189 + $0x8c0] sm:$0xff]
                  %304 = vst [vmem:[%s190 + $0x380] sm:$0xff] %v303
                  %v305 = vld [vmem:[%s189 + $0x8c8] sm:$0xff]
                  %306 = vst [vmem:[%s190 + $0x388] sm:$0xff] %v305
                  %v307 = vld [vmem:[%s189 + $0x8d0] sm:$0xff]
                  %308 = vst [vmem:[%s190 + $0x390] sm:$0xff] %v307
                  %v309 = vld [vmem:[%s189 + $0x8d8] sm:$0xff]
                  %310 = vst [vmem:[%s190 + $0x398] sm:$0xff] %v309
                  %v311 = vld [vmem:[%s189 + $0x960] sm:$0xff]
                  %312 = vst [vmem:[%s190 + $0x3c0] sm:$0xff] %v311
                  %v313 = vld [vmem:[%s189 + $0x968] sm:$0xff]
                  %314 = vst [vmem:[%s190 + $0x3c8] sm:$0xff] %v313
                  %v315 = vld [vmem:[%s189 + $0x970] sm:$0xff]
                  %316 = vst [vmem:[%s190 + $0x3d0] sm:$0xff] %v315
                  %v317 = vld [vmem:[%s189 + $0x978] sm:$0xff]
                  %318 = vst [vmem:[%s190 + $0x3d8] sm:$0xff] %v317
                  %s319 = sadd.s32 1, %s188
                  %p320 = scmp.ge.s32.totalorder %s319, %s179
                  %s321 = scalar_select %p320, 0, %s319
                  %s322 = smul.u32 %s321, 32
                  %s323 = smul.u32 %s321, 32
                  %s324 = scalar_lea.vmem %s120, %s322
                  %s325 = scalar_lea.vmem %s112, %s323 [#allocation2]
                $region52: #{tucker_forward.3} parent=46 // loop_footer
                  %s185 = sadd.s32 %s183, 1
                $region53: #{tucker_forward.3} parent=46 // loop_footer_branch
                  %182 = sbr.rel target = $region49
                $region54: #{tucker_forward.3} parent=46 // loop_exit
                  _
                %s326 = sshrl.u32 %s178, 2
                %s327 = sand.u32 %s178, 3
                %s328 = smul.u32 %s326, 4
                %s329 = smul.u32 128, %s328
                %s330 = sshra.s32 %s329, 4
                %s331 = scalar_lea.vmem %s120, %s330
                %s332 = smul.u32 128, %s328
                %s333 = sshra.s32 %s332, 4
                %s334 = scalar_lea.vmem %s112, %s333 [#allocation2]
                // While loop
                $region55: #{tucker_forward.3} parent=46 // loop_pre_header
                  _
                $region56: #{tucker_forward.3} parent=46 // loop_header
                  %s338 = sphi 0, %s340
                  %p339 = scmp.ge.s32.totalorder %s338, %s327
                  %s343 = sphi 0, %s380
                  %s344 = sphi %s331, %s383
                  %s345 = sphi %s334, %s384
                $region57: #{tucker_forward.3} parent=46 // loop_header_branch
                  %342 = sbr.rel (%p339) target = $region61
                $region58: #{tucker_forward.3} parent=46 // loop_body
                  %v346 = vld [vmem:[%s344] sm:$0xff]
                  %347 = vst [vmem:[%s345] sm:$0xff] %v346
                  %v348 = vld [vmem:[%s344 + $0xa0] sm:$0xff]
                  %349 = vst [vmem:[%s345 + $0x40] sm:$0xff] %v348
                  %v350 = vld [vmem:[%s344 + $0x140] sm:$0xff]
                  %351 = vst [vmem:[%s345 + $0x80] sm:$0xff] %v350
                  %v352 = vld [vmem:[%s344 + $0x1e0] sm:$0xff]
                  %353 = vst [vmem:[%s345 + $0xc0] sm:$0xff] %v352
                  %v354 = vld [vmem:[%s344 + $0x280] sm:$0xff]
                  %355 = vst [vmem:[%s345 + $0x100] sm:$0xff] %v354
                  %v356 = vld [vmem:[%s344 + $0x320] sm:$0xff]
                  %357 = vst [vmem:[%s345 + $0x140] sm:$0xff] %v356
                  %v358 = vld [vmem:[%s344 + $0x3c0] sm:$0xff]
                  %359 = vst [vmem:[%s345 + $0x180] sm:$0xff] %v358
                  %v360 = vld [vmem:[%s344 + $0x460] sm:$0xff]
                  %361 = vst [vmem:[%s345 + $0x1c0] sm:$0xff] %v360
                  %v362 = vld [vmem:[%s344 + $0x500] sm:$0xff]
                  %363 = vst [vmem:[%s345 + $0x200] sm:$0xff] %v362
                  %v364 = vld [vmem:[%s344 + $0x5a0] sm:$0xff]
                  %365 = vst [vmem:[%s345 + $0x240] sm:$0xff] %v364
                  %v366 = vld [vmem:[%s344 + $0x640] sm:$0xff]
                  %367 = vst [vmem:[%s345 + $0x280] sm:$0xff] %v366
                  %v368 = vld [vmem:[%s344 + $0x6e0] sm:$0xff]
                  %369 = vst [vmem:[%s345 + $0x2c0] sm:$0xff] %v368
                  %v370 = vld [vmem:[%s344 + $0x780] sm:$0xff]
                  %371 = vst [vmem:[%s345 + $0x300] sm:$0xff] %v370
                  %v372 = vld [vmem:[%s344 + $0x820] sm:$0xff]
                  %373 = vst [vmem:[%s345 + $0x340] sm:$0xff] %v372
                  %v374 = vld [vmem:[%s344 + $0x8c0] sm:$0xff]
                  %375 = vst [vmem:[%s345 + $0x380] sm:$0xff] %v374
                  %v376 = vld [vmem:[%s344 + $0x960] sm:$0xff]
                  %377 = vst [vmem:[%s345 + $0x3c0] sm:$0xff] %v376
                  %s378 = sadd.s32 1, %s343
                  %p379 = scmp.ge.s32.totalorder %s378, %s327
                  %s380 = scalar_select %p379, 0, %s378
                  %s381 = smul.u32 %s380, 8
                  %s382 = smul.u32 %s380, 8
                  %s383 = scalar_lea.vmem %s331, %s381
                  %s384 = scalar_lea.vmem %s334, %s382 [#allocation2]
                $region59: #{tucker_forward.3} parent=46 // loop_footer
                  %s340 = sadd.s32 %s338, 1
                $region60: #{tucker_forward.3} parent=46 // loop_footer_branch
                  %337 = sbr.rel target = $region56
                $region61: #{tucker_forward.3} parent=46 // loop_exit
                  _
              $region47: #{tucker_forward.3} parent=31 // pred_fallthru
                _
              %p385 = pneg %p174
              // Predicated region
              $region62: #{tucker_forward.3} parent=31 // pred_check
                _
              $region63: #{tucker_forward.3} parent=31 // pred_check_branch
                %387 = sbr.rel (%p174) target = $region65
              $region64: #{tucker_forward.3} parent=31 // pred_region
                %s388 = sand.u32 %s121, 7
                %s389 = ssub.s32 %s121, %s388
                %s390 = scalar_lea.vmem %s120, %s389
                %s391 = ssub.s32 %s121, %s388
                %s392 = scalar_lea.vmem %s112, %s391 [#allocation2]
                %s393 = sshrl.u32 %s121, 3
                %s394 = sshrl.u32 %s393, 2
                // While loop
                $region66: #{tucker_forward.3} parent=64 // loop_pre_header
                  _
                $region67: #{tucker_forward.3} parent=64 // loop_header
                  %s398 = sphi 0, %s400
                  %p399 = scmp.ge.s32.totalorder %s398, %s394
                  %s403 = sphi 0, %s536
                  %s404 = sphi %s120, %s539
                  %s405 = sphi %s112, %s540
                $region68: #{tucker_forward.3} parent=64 // loop_header_branch
                  %402 = sbr.rel (%p399) target = $region72
                $region69: #{tucker_forward.3} parent=64 // loop_body
                  %v406 = vld [vmem:[%s404] sm:$0xff]
                  %407 = vst [vmem:[%s405] sm:$0xff] %v406
                  %v408 = vld [vmem:[%s404 + $0x8] sm:$0xff]
                  %409 = vst [vmem:[%s405 + $0x8] sm:$0xff] %v408
                  %v410 = vld [vmem:[%s404 + $0x10] sm:$0xff]
                  %411 = vst [vmem:[%s405 + $0x10] sm:$0xff] %v410
                  %v412 = vld [vmem:[%s404 + $0x18] sm:$0xff]
                  %413 = vst [vmem:[%s405 + $0x18] sm:$0xff] %v412
                  %v414 = vld [vmem:[%s404 + $0xa0] sm:$0xff]
                  %415 = vst [vmem:[%s405 + $0x40] sm:$0xff] %v414
                  %v416 = vld [vmem:[%s404 + $0xa8] sm:$0xff]
                  %417 = vst [vmem:[%s405 + $0x48] sm:$0xff] %v416
                  %v418 = vld [vmem:[%s404 + $0xb0] sm:$0xff]
                  %419 = vst [vmem:[%s405 + $0x50] sm:$0xff] %v418
                  %v420 = vld [vmem:[%s404 + $0xb8] sm:$0xff]
                  %421 = vst [vmem:[%s405 + $0x58] sm:$0xff] %v420
                  %v422 = vld [vmem:[%s404 + $0x140] sm:$0xff]
                  %423 = vst [vmem:[%s405 + $0x80] sm:$0xff] %v422
                  %v424 = vld [vmem:[%s404 + $0x148] sm:$0xff]
                  %425 = vst [vmem:[%s405 + $0x88] sm:$0xff] %v424
                  %v426 = vld [vmem:[%s404 + $0x150] sm:$0xff]
                  %427 = vst [vmem:[%s405 + $0x90] sm:$0xff] %v426
                  %v428 = vld [vmem:[%s404 + $0x158] sm:$0xff]
                  %429 = vst [vmem:[%s405 + $0x98] sm:$0xff] %v428
                  %v430 = vld [vmem:[%s404 + $0x1e0] sm:$0xff]
                  %431 = vst [vmem:[%s405 + $0xc0] sm:$0xff] %v430
                  %v432 = vld [vmem:[%s404 + $0x1e8] sm:$0xff]
                  %433 = vst [vmem:[%s405 + $0xc8] sm:$0xff] %v432
                  %v434 = vld [vmem:[%s404 + $0x1f0] sm:$0xff]
                  %435 = vst [vmem:[%s405 + $0xd0] sm:$0xff] %v434
                  %v436 = vld [vmem:[%s404 + $0x1f8] sm:$0xff]
                  %437 = vst [vmem:[%s405 + $0xd8] sm:$0xff] %v436
                  %v438 = vld [vmem:[%s404 + $0x280] sm:$0xff]
                  %439 = vst [vmem:[%s405 + $0x100] sm:$0xff] %v438
                  %v440 = vld [vmem:[%s404 + $0x288] sm:$0xff]
                  %441 = vst [vmem:[%s405 + $0x108] sm:$0xff] %v440
                  %v442 = vld [vmem:[%s404 + $0x290] sm:$0xff]
                  %443 = vst [vmem:[%s405 + $0x110] sm:$0xff] %v442
                  %v444 = vld [vmem:[%s404 + $0x298] sm:$0xff]
                  %445 = vst [vmem:[%s405 + $0x118] sm:$0xff] %v444
                  %v446 = vld [vmem:[%s404 + $0x320] sm:$0xff]
                  %447 = vst [vmem:[%s405 + $0x140] sm:$0xff] %v446
                  %v448 = vld [vmem:[%s404 + $0x328] sm:$0xff]
                  %449 = vst [vmem:[%s405 + $0x148] sm:$0xff] %v448
                  %v450 = vld [vmem:[%s404 + $0x330] sm:$0xff]
                  %451 = vst [vmem:[%s405 + $0x150] sm:$0xff] %v450
                  %v452 = vld [vmem:[%s404 + $0x338] sm:$0xff]
                  %453 = vst [vmem:[%s405 + $0x158] sm:$0xff] %v452
                  %v454 = vld [vmem:[%s404 + $0x3c0] sm:$0xff]
                  %455 = vst [vmem:[%s405 + $0x180] sm:$0xff] %v454
                  %v456 = vld [vmem:[%s404 + $0x3c8] sm:$0xff]
                  %457 = vst [vmem:[%s405 + $0x188] sm:$0xff] %v456
                  %v458 = vld [vmem:[%s404 + $0x3d0] sm:$0xff]
                  %459 = vst [vmem:[%s405 + $0x190] sm:$0xff] %v458
                  %v460 = vld [vmem:[%s404 + $0x3d8] sm:$0xff]
                  %461 = vst [vmem:[%s405 + $0x198] sm:$0xff] %v460
                  %v462 = vld [vmem:[%s404 + $0x460] sm:$0xff]
                  %463 = vst [vmem:[%s405 + $0x1c0] sm:$0xff] %v462
                  %v464 = vld [vmem:[%s404 + $0x468] sm:$0xff]
                  %465 = vst [vmem:[%s405 + $0x1c8] sm:$0xff] %v464
                  %v466 = vld [vmem:[%s404 + $0x470] sm:$0xff]
                  %467 = vst [vmem:[%s405 + $0x1d0] sm:$0xff] %v466
                  %v468 = vld [vmem:[%s404 + $0x478] sm:$0xff]
                  %469 = vst [vmem:[%s405 + $0x1d8] sm:$0xff] %v468
                  %v470 = vld [vmem:[%s404 + $0x500] sm:$0xff]
                  %471 = vst [vmem:[%s405 + $0x200] sm:$0xff] %v470
                  %v472 = vld [vmem:[%s404 + $0x508] sm:$0xff]
                  %473 = vst [vmem:[%s405 + $0x208] sm:$0xff] %v472
                  %v474 = vld [vmem:[%s404 + $0x510] sm:$0xff]
                  %475 = vst [vmem:[%s405 + $0x210] sm:$0xff] %v474
                  %v476 = vld [vmem:[%s404 + $0x518] sm:$0xff]
                  %477 = vst [vmem:[%s405 + $0x218] sm:$0xff] %v476
                  %v478 = vld [vmem:[%s404 + $0x5a0] sm:$0xff]
                  %479 = vst [vmem:[%s405 + $0x240] sm:$0xff] %v478
                  %v480 = vld [vmem:[%s404 + $0x5a8] sm:$0xff]
                  %481 = vst [vmem:[%s405 + $0x248] sm:$0xff] %v480
                  %v482 = vld [vmem:[%s404 + $0x5b0] sm:$0xff]
                  %483 = vst [vmem:[%s405 + $0x250] sm:$0xff] %v482
                  %v484 = vld [vmem:[%s404 + $0x5b8] sm:$0xff]
                  %485 = vst [vmem:[%s405 + $0x258] sm:$0xff] %v484
                  %v486 = vld [vmem:[%s404 + $0x640] sm:$0xff]
                  %487 = vst [vmem:[%s405 + $0x280] sm:$0xff] %v486
                  %v488 = vld [vmem:[%s404 + $0x648] sm:$0xff]
                  %489 = vst [vmem:[%s405 + $0x288] sm:$0xff] %v488
                  %v490 = vld [vmem:[%s404 + $0x650] sm:$0xff]
                  %491 = vst [vmem:[%s405 + $0x290] sm:$0xff] %v490
                  %v492 = vld [vmem:[%s404 + $0x658] sm:$0xff]
                  %493 = vst [vmem:[%s405 + $0x298] sm:$0xff] %v492
                  %v494 = vld [vmem:[%s404 + $0x6e0] sm:$0xff]
                  %495 = vst [vmem:[%s405 + $0x2c0] sm:$0xff] %v494
                  %v496 = vld [vmem:[%s404 + $0x6e8] sm:$0xff]
                  %497 = vst [vmem:[%s405 + $0x2c8] sm:$0xff] %v496
                  %v498 = vld [vmem:[%s404 + $0x6f0] sm:$0xff]
                  %499 = vst [vmem:[%s405 + $0x2d0] sm:$0xff] %v498
                  %v500 = vld [vmem:[%s404 + $0x6f8] sm:$0xff]
                  %501 = vst [vmem:[%s405 + $0x2d8] sm:$0xff] %v500
                  %v502 = vld [vmem:[%s404 + $0x780] sm:$0xff]
                  %503 = vst [vmem:[%s405 + $0x300] sm:$0xff] %v502
                  %v504 = vld [vmem:[%s404 + $0x788] sm:$0xff]
                  %505 = vst [vmem:[%s405 + $0x308] sm:$0xff] %v504
                  %v506 = vld [vmem:[%s404 + $0x790] sm:$0xff]
                  %507 = vst [vmem:[%s405 + $0x310] sm:$0xff] %v506
                  %v508 = vld [vmem:[%s404 + $0x798] sm:$0xff]
                  %509 = vst [vmem:[%s405 + $0x318] sm:$0xff] %v508
                  %v510 = vld [vmem:[%s404 + $0x820] sm:$0xff]
                  %511 = vst [vmem:[%s405 + $0x340] sm:$0xff] %v510
                  %v512 = vld [vmem:[%s404 + $0x828] sm:$0xff]
                  %513 = vst [vmem:[%s405 + $0x348] sm:$0xff] %v512
                  %v514 = vld [vmem:[%s404 + $0x830] sm:$0xff]
                  %515 = vst [vmem:[%s405 + $0x350] sm:$0xff] %v514
                  %v516 = vld [vmem:[%s404 + $0x838] sm:$0xff]
                  %517 = vst [vmem:[%s405 + $0x358] sm:$0xff] %v516
                  %v518 = vld [vmem:[%s404 + $0x8c0] sm:$0xff]
                  %519 = vst [vmem:[%s405 + $0x380] sm:$0xff] %v518
                  %v520 = vld [vmem:[%s404 + $0x8c8] sm:$0xff]
                  %521 = vst [vmem:[%s405 + $0x388] sm:$0xff] %v520
                  %v522 = vld [vmem:[%s404 + $0x8d0] sm:$0xff]
                  %523 = vst [vmem:[%s405 + $0x390] sm:$0xff] %v522
                  %v524 = vld [vmem:[%s404 + $0x8d8] sm:$0xff]
                  %525 = vst [vmem:[%s405 + $0x398] sm:$0xff] %v524
                  %v526 = vld [vmem:[%s404 + $0x960] sm:$0xff]
                  %527 = vst [vmem:[%s405 + $0x3c0] sm:$0xff] %v526
                  %v528 = vld [vmem:[%s404 + $0x968] sm:$0xff]
                  %529 = vst [vmem:[%s405 + $0x3c8] sm:$0xff] %v528
                  %v530 = vld [vmem:[%s404 + $0x970] sm:$0xff]
                  %531 = vst [vmem:[%s405 + $0x3d0] sm:$0xff] %v530
                  %v532 = vld [vmem:[%s404 + $0x978] sm:$0xff]
                  %533 = vst [vmem:[%s405 + $0x3d8] sm:$0xff] %v532
                  %s534 = sadd.s32 1, %s403
                  %p535 = scmp.ge.s32.totalorder %s534, %s394
                  %s536 = scalar_select %p535, 0, %s534
                  %s537 = smul.u32 %s536, 32
                  %s538 = smul.u32 %s536, 32
                  %s539 = scalar_lea.vmem %s120, %s537
                  %s540 = scalar_lea.vmem %s112, %s538 [#allocation2]
                $region70: #{tucker_forward.3} parent=64 // loop_footer
                  %s400 = sadd.s32 %s398, 1
                $region71: #{tucker_forward.3} parent=64 // loop_footer_branch
                  %397 = sbr.rel target = $region67
                $region72: #{tucker_forward.3} parent=64 // loop_exit
                  _
                %s541 = sshrl.u32 %s393, 2
                %s542 = sand.u32 %s393, 3
                %s543 = smul.u32 %s541, 4
                %s544 = smul.u32 128, %s543
                %s545 = sshra.s32 %s544, 4
                %s546 = scalar_lea.vmem %s120, %s545
                %s547 = smul.u32 128, %s543
                %s548 = sshra.s32 %s547, 4
                %s549 = scalar_lea.vmem %s112, %s548 [#allocation2]
                // While loop
                $region73: #{tucker_forward.3} parent=64 // loop_pre_header
                  _
                $region74: #{tucker_forward.3} parent=64 // loop_header
                  %s553 = sphi 0, %s555
                  %p554 = scmp.ge.s32.totalorder %s553, %s542
                  %s558 = sphi 0, %s595
                  %s559 = sphi %s546, %s598
                  %s560 = sphi %s549, %s599
                $region75: #{tucker_forward.3} parent=64 // loop_header_branch
                  %557 = sbr.rel (%p554) target = $region79
                $region76: #{tucker_forward.3} parent=64 // loop_body
                  %v561 = vld [vmem:[%s559] sm:$0xff]
                  %562 = vst [vmem:[%s560] sm:$0xff] %v561
                  %v563 = vld [vmem:[%s559 + $0xa0] sm:$0xff]
                  %564 = vst [vmem:[%s560 + $0x40] sm:$0xff] %v563
                  %v565 = vld [vmem:[%s559 + $0x140] sm:$0xff]
                  %566 = vst [vmem:[%s560 + $0x80] sm:$0xff] %v565
                  %v567 = vld [vmem:[%s559 + $0x1e0] sm:$0xff]
                  %568 = vst [vmem:[%s560 + $0xc0] sm:$0xff] %v567
                  %v569 = vld [vmem:[%s559 + $0x280] sm:$0xff]
                  %570 = vst [vmem:[%s560 + $0x100] sm:$0xff] %v569
                  %v571 = vld [vmem:[%s559 + $0x320] sm:$0xff]
                  %572 = vst [vmem:[%s560 + $0x140] sm:$0xff] %v571
                  %v573 = vld [vmem:[%s559 + $0x3c0] sm:$0xff]
                  %574 = vst [vmem:[%s560 + $0x180] sm:$0xff] %v573
                  %v575 = vld [vmem:[%s559 + $0x460] sm:$0xff]
                  %576 = vst [vmem:[%s560 + $0x1c0] sm:$0xff] %v575
                  %v577 = vld [vmem:[%s559 + $0x500] sm:$0xff]
                  %578 = vst [vmem:[%s560 + $0x200] sm:$0xff] %v577
                  %v579 = vld [vmem:[%s559 + $0x5a0] sm:$0xff]
                  %580 = vst [vmem:[%s560 + $0x240] sm:$0xff] %v579
                  %v581 = vld [vmem:[%s559 + $0x640] sm:$0xff]
                  %582 = vst [vmem:[%s560 + $0x280] sm:$0xff] %v581
                  %v583 = vld [vmem:[%s559 + $0x6e0] sm:$0xff]
                  %584 = vst [vmem:[%s560 + $0x2c0] sm:$0xff] %v583
                  %v585 = vld [vmem:[%s559 + $0x780] sm:$0xff]
                  %586 = vst [vmem:[%s560 + $0x300] sm:$0xff] %v585
                  %v587 = vld [vmem:[%s559 + $0x820] sm:$0xff]
                  %588 = vst [vmem:[%s560 + $0x340] sm:$0xff] %v587
                  %v589 = vld [vmem:[%s559 + $0x8c0] sm:$0xff]
                  %590 = vst [vmem:[%s560 + $0x380] sm:$0xff] %v589
                  %v591 = vld [vmem:[%s559 + $0x960] sm:$0xff]
                  %592 = vst [vmem:[%s560 + $0x3c0] sm:$0xff] %v591
                  %s593 = sadd.s32 1, %s558
                  %p594 = scmp.ge.s32.totalorder %s593, %s542
                  %s595 = scalar_select %p594, 0, %s593
                  %s596 = smul.u32 %s595, 8
                  %s597 = smul.u32 %s595, 8
                  %s598 = scalar_lea.vmem %s546, %s596
                  %s599 = scalar_lea.vmem %s549, %s597 [#allocation2]
                $region77: #{tucker_forward.3} parent=64 // loop_footer
                  %s555 = sadd.s32 %s553, 1
                $region78: #{tucker_forward.3} parent=64 // loop_footer_branch
                  %552 = sbr.rel target = $region74
                $region79: #{tucker_forward.3} parent=64 // loop_exit
                  _
                %s600 = sshllo.u32 0, %s388
                loop: start=0, step=1, limit=1
                $region80: #{tucker_forward.3} parent=64 // loop_pre_header
                  _
                $region81: #{tucker_forward.3} parent=64 // loop_header
                  %s602 = sphi 0, %s606
                  %p603 = scmp.ge.s32.totalorder %s602, 1
                  %s607 = sphi %s390, %s390
                  %s608 = sphi %s392, %s392
                $region82: #{tucker_forward.3} parent=64 // loop_header_branch
                  %605 = sbr.rel (%p603) target = $region86
                $region83: #{tucker_forward.3} parent=64 // loop_body
                  %v609 = vld [vmem:[%s607] sm:%s600]
                  %610 = vst [vmem:[%s608] sm:%s600] %v609
                  %v611 = vld [vmem:[%s607 + $0xa0] sm:%s600]
                  %612 = vst [vmem:[%s608 + $0x40] sm:%s600] %v611
                  %v613 = vld [vmem:[%s607 + $0x140] sm:%s600]
                  %614 = vst [vmem:[%s608 + $0x80] sm:%s600] %v613
                  %v615 = vld [vmem:[%s607 + $0x1e0] sm:%s600]
                  %616 = vst [vmem:[%s608 + $0xc0] sm:%s600] %v615
                  %v617 = vld [vmem:[%s607 + $0x280] sm:%s600]
                  %618 = vst [vmem:[%s608 + $0x100] sm:%s600] %v617
                  %v619 = vld [vmem:[%s607 + $0x320] sm:%s600]
                  %620 = vst [vmem:[%s608 + $0x140] sm:%s600] %v619
                  %v621 = vld [vmem:[%s607 + $0x3c0] sm:%s600]
                  %622 = vst [vmem:[%s608 + $0x180] sm:%s600] %v621
                  %v623 = vld [vmem:[%s607 + $0x460] sm:%s600]
                  %624 = vst [vmem:[%s608 + $0x1c0] sm:%s600] %v623
                  %v625 = vld [vmem:[%s607 + $0x500] sm:%s600]
                  %626 = vst [vmem:[%s608 + $0x200] sm:%s600] %v625
                  %v627 = vld [vmem:[%s607 + $0x5a0] sm:%s600]
                  %628 = vst [vmem:[%s608 + $0x240] sm:%s600] %v627
                  %v629 = vld [vmem:[%s607 + $0x640] sm:%s600]
                  %630 = vst [vmem:[%s608 + $0x280] sm:%s600] %v629
                  %v631 = vld [vmem:[%s607 + $0x6e0] sm:%s600]
                  %632 = vst [vmem:[%s608 + $0x2c0] sm:%s600] %v631
                  %v633 = vld [vmem:[%s607 + $0x780] sm:%s600]
                  %634 = vst [vmem:[%s608 + $0x300] sm:%s600] %v633
                  %v635 = vld [vmem:[%s607 + $0x820] sm:%s600]
                  %636 = vst [vmem:[%s608 + $0x340] sm:%s600] %v635
                  %v637 = vld [vmem:[%s607 + $0x8c0] sm:%s600]
                  %638 = vst [vmem:[%s608 + $0x380] sm:%s600] %v637
                  %v639 = vld [vmem:[%s607 + $0x960] sm:%s600]
                  %640 = vst [vmem:[%s608 + $0x3c0] sm:%s600] %v639
                $region84: #{tucker_forward.3} parent=64 // loop_footer
                  %s606 = sadd.s32 1, %s602
                $region85: #{tucker_forward.3} parent=64 // loop_footer_branch
                  %601 = sbr.rel target = $region81
                $region86: #{tucker_forward.3} parent=64 // loop_exit
                  _
              $region65: #{tucker_forward.3} parent=31 // pred_fallthru
                _
            $region32: #{tucker_forward.3} parent=27 // pred_fallthru
              _
            // Predicated region
            $region33: #{tucker_forward.3} parent=27 // pred_check
              %p129 = pneg %p125
            $region34: #{tucker_forward.3} parent=27 // pred_check_branch
              %131 = sbr.rel (%p129) target = $region36
            $region35: #{tucker_forward.3} parent=27 // pred_region
              %s132 = sshllo.u32 0, %s121
              loop: start=0, step=1, limit=1
              $region37: #{tucker_forward.3} parent=35 // loop_pre_header
                _
              $region38: #{tucker_forward.3} parent=35 // loop_header
                %s134 = sphi 0, %s138
                %p135 = scmp.ge.s32.totalorder %s134, 1
                %s139 = sphi %s120, %s120
                %s140 = sphi %s112, %s112
              $region39: #{tucker_forward.3} parent=35 // loop_header_branch
                %137 = sbr.rel (%p135) target = $region43
              $region40: #{tucker_forward.3} parent=35 // loop_body
                %v141 = vld [vmem:[%s139] sm:%s132]
                %142 = vst [vmem:[%s140] sm:%s132] %v141
                %v143 = vld [vmem:[%s139 + $0xa0] sm:%s132]
                %144 = vst [vmem:[%s140 + $0x40] sm:%s132] %v143
                %v145 = vld [vmem:[%s139 + $0x140] sm:%s132]
                %146 = vst [vmem:[%s140 + $0x80] sm:%s132] %v145
                %v147 = vld [vmem:[%s139 + $0x1e0] sm:%s132]
                %148 = vst [vmem:[%s140 + $0xc0] sm:%s132] %v147
                %v149 = vld [vmem:[%s139 + $0x280] sm:%s132]
                %150 = vst [vmem:[%s140 + $0x100] sm:%s132] %v149
                %v151 = vld [vmem:[%s139 + $0x320] sm:%s132]
                %152 = vst [vmem:[%s140 + $0x140] sm:%s132] %v151
                %v153 = vld [vmem:[%s139 + $0x3c0] sm:%s132]
                %154 = vst [vmem:[%s140 + $0x180] sm:%s132] %v153
                %v155 = vld [vmem:[%s139 + $0x460] sm:%s132]
                %156 = vst [vmem:[%s140 + $0x1c0] sm:%s132] %v155
                %v157 = vld [vmem:[%s139 + $0x500] sm:%s132]
                %158 = vst [vmem:[%s140 + $0x200] sm:%s132] %v157
                %v159 = vld [vmem:[%s139 + $0x5a0] sm:%s132]
                %160 = vst [vmem:[%s140 + $0x240] sm:%s132] %v159
                %v161 = vld [vmem:[%s139 + $0x640] sm:%s132]
                %162 = vst [vmem:[%s140 + $0x280] sm:%s132] %v161
                %v163 = vld [vmem:[%s139 + $0x6e0] sm:%s132]
                %164 = vst [vmem:[%s140 + $0x2c0] sm:%s132] %v163
                %v165 = vld [vmem:[%s139 + $0x780] sm:%s132]
                %166 = vst [vmem:[%s140 + $0x300] sm:%s132] %v165
                %v167 = vld [vmem:[%s139 + $0x820] sm:%s132]
                %168 = vst [vmem:[%s140 + $0x340] sm:%s132] %v167
                %v169 = vld [vmem:[%s139 + $0x8c0] sm:%s132]
                %170 = vst [vmem:[%s140 + $0x380] sm:%s132] %v169
                %v171 = vld [vmem:[%s139 + $0x960] sm:%s132]
                %172 = vst [vmem:[%s140 + $0x3c0] sm:%s132] %v171
              $region41: #{tucker_forward.3} parent=35 // loop_footer
                %s138 = sadd.s32 1, %s134
              $region42: #{tucker_forward.3} parent=35 // loop_footer_branch
                %133 = sbr.rel target = $region38
              $region43: #{tucker_forward.3} parent=35 // loop_exit
                _
            $region36: #{tucker_forward.3} parent=27 // pred_fallthru
              _
          $region28: #{tucker_forward.3} parent=23 // pred_fallthru
            _
          %641 = vnop
        $region24: #{tucker_forward.3} parent=19 // pred_fallthru
          _
      $region20: #{tucker_forward.3} parent=5 // pred_fallthru
        _
      %p642 = scmp.le.s32.totalorder 1, %s11
      %p643 = scmp.lt.s32.totalorder %s11, 4
      %p644 = pnand %p642, %p643
      %p645 = pneg %p644
      // Predicated region
      $region87: #{tucker_forward.3} parent=5 // pred_check
        _
      $region88: #{tucker_forward.3} parent=5 // pred_check_branch
        %647 = sbr.rel (%p644) target = $region90
      $region89: #{tucker_forward.3} parent=5 // pred_region
        %s648 = ssub.s32 %s11, 1
        %s649 = sand.u32 %s45, 1
        %s650 = sand.u32 %s45, 1
        %s651 = smul.addr %s650, 1024
        %s652 = scalar_lea.vmem [#allocation2], %s651
        // Predicated region
        $region91: #{tucker_forward.3} parent=89 // pred_check
          %p653 = pneg %p58
        $region92: #{tucker_forward.3} parent=89 // pred_check_branch
          %655 = sbr.rel (%p653) target = $region94
        $region93: #{tucker_forward.3} parent=89 // pred_region
          _
        $region94: #{tucker_forward.3} parent=89 // pred_fallthru
          _
        %p656 = pneg %p32
        %p657 = pneg %p29
        %s658 = sand.u32 %s45, 1
        %s659 = sand.u32 %s45, 1
        %s660 = smul.addr %s659, 1024
        %s661 = scalar_lea.vmem [#allocation2], %s660
        %p662 = pneg %p58
        %p663 = pneg %p55
        %p664 = pneg %p84
        %p665 = pneg %p81
        %s666 = sand.u32 %s71, 1
        %s667 = scalar_lea.sflag [#allocation4], %s666
        %s668 = sand.u32 %s71, 1
        %s669 = smul.addr %s668, 512
        %s670 = scalar_lea.vmem [#allocation3], %s669
        %s671 = smul.u32 16, %s16
        %s672 = ssub.s32 40, %s671
        %p673 = scmp.lt.s32.totalorder %s672, 16
        %s674 = scalar_select %p673, %s672, 16
        %s675 = smul.u32 1024, %s674
        %s676 = smul.u32 16, %s16
        %s677 = ssub.s32 40, %s676
        %p678 = scmp.lt.s32.totalorder %s677, 16
        %s679 = scalar_select %p678, %s677, 16
        %s680 = smul.u32 512, %s679
        %v682 = vld [vmem:[%s0] sm:$0xff]
        %v683 = vld [vmem:[%s0 + $0x8] sm:$0xff]
        %v684 = vld [vmem:[%s0 + $0x10] sm:$0xff]
        %v685 = vld [vmem:[%s0 + $0x18] sm:$0xff]
        %v686 = vpack.c.bf16 %v683, %v682
        %v687 = vpack.c.bf16 %v685, %v684
        %v688 = vld [vmem:[%s652] sm:$0xff]
        %v689 = vld [vmem:[%s652 + $0x8] sm:$0xff]
        %v690 = vld [vmem:[%s652 + $0x10] sm:$0xff]
        %v691 = vld [vmem:[%s652 + $0x18] sm:$0xff]
        %v692 = vld [vmem:[%s652 + $0x20] sm:$0xff]
        %v693 = vld [vmem:[%s652 + $0x28] sm:$0xff]
        %v694 = vld [vmem:[%s652 + $0x30] sm:$0xff]
        %v695 = vld [vmem:[%s652 + $0x38] sm:$0xff]
        %v696 = vld [vmem:[%s652 + $0x40] sm:$0xff]
        %v697 = vld [vmem:[%s652 + $0x48] sm:$0xff]
        %v698 = vld [vmem:[%s652 + $0x50] sm:$0xff]
        %v699 = vld [vmem:[%s652 + $0x58] sm:$0xff]
        %v700 = vld [vmem:[%s652 + $0x60] sm:$0xff]
        %v701 = vld [vmem:[%s652 + $0x68] sm:$0xff]
        %v702 = vld [vmem:[%s652 + $0x70] sm:$0xff]
        %v703 = vld [vmem:[%s652 + $0x78] sm:$0xff]
        %v704 = vld [vmem:[%s652 + $0x80] sm:$0xff]
        %v705 = vld [vmem:[%s652 + $0x88] sm:$0xff]
        %v706 = vld [vmem:[%s652 + $0x90] sm:$0xff]
        %v707 = vld [vmem:[%s652 + $0x98] sm:$0xff]
        %v708 = vld [vmem:[%s652 + $0xa0] sm:$0xff]
        %v709 = vld [vmem:[%s652 + $0xa8] sm:$0xff]
        %v710 = vld [vmem:[%s652 + $0xb0] sm:$0xff]
        %v711 = vld [vmem:[%s652 + $0xb8] sm:$0xff]
        %v712 = vld [vmem:[%s652 + $0xc0] sm:$0xff]
        %v713 = vld [vmem:[%s652 + $0xc8] sm:$0xff]
        %v714 = vld [vmem:[%s652 + $0xd0] sm:$0xff]
        %v715 = vld [vmem:[%s652 + $0xd8] sm:$0xff]
        %v716 = vld [vmem:[%s652 + $0xe0] sm:$0xff]
        %v717 = vld [vmem:[%s652 + $0xe8] sm:$0xff]
        %v718 = vld [vmem:[%s652 + $0xf0] sm:$0xff]
        %v719 = vld [vmem:[%s652 + $0xf8] sm:$0xff]
        %v720 = vld [vmem:[%s652 + $0x100] sm:$0xff]
        %v721 = vld [vmem:[%s652 + $0x108] sm:$0xff]
        %v722 = vld [vmem:[%s652 + $0x110] sm:$0xff]
        %v723 = vld [vmem:[%s652 + $0x118] sm:$0xff]
        %v724 = vld [vmem:[%s652 + $0x120] sm:$0xff]
        %v725 = vld [vmem:[%s652 + $0x128] sm:$0xff]
        %v726 = vld [vmem:[%s652 + $0x130] sm:$0xff]
        %v727 = vld [vmem:[%s652 + $0x138] sm:$0xff]
        %v728 = vld [vmem:[%s652 + $0x140] sm:$0xff]
        %v729 = vld [vmem:[%s652 + $0x148] sm:$0xff]
        %v730 = vld [vmem:[%s652 + $0x150] sm:$0xff]
        %v731 = vld [vmem:[%s652 + $0x158] sm:$0xff]
        %v732 = vld [vmem:[%s652 + $0x160] sm:$0xff]
        %v733 = vld [vmem:[%s652 + $0x168] sm:$0xff]
        %v734 = vld [vmem:[%s652 + $0x170] sm:$0xff]
        %v735 = vld [vmem:[%s652 + $0x178] sm:$0xff]
        %v736 = vld [vmem:[%s652 + $0x180] sm:$0xff]
        %v737 = vld [vmem:[%s652 + $0x188] sm:$0xff]
        %v738 = vld [vmem:[%s652 + $0x190] sm:$0xff]
        %v739 = vld [vmem:[%s652 + $0x198] sm:$0xff]
        %v740 = vld [vmem:[%s652 + $0x1a0] sm:$0xff]
        %v741 = vld [vmem:[%s652 + $0x1a8] sm:$0xff]
        %v742 = vld [vmem:[%s652 + $0x1b0] sm:$0xff]
        %v743 = vld [vmem:[%s652 + $0x1b8] sm:$0xff]
        %v744 = vld [vmem:[%s652 + $0x1c0] sm:$0xff]
        %v745 = vld [vmem:[%s652 + $0x1c8] sm:$0xff]
        %v746 = vld [vmem:[%s652 + $0x1d0] sm:$0xff]
        %v747 = vld [vmem:[%s652 + $0x1d8] sm:$0xff]
        %v748 = vld [vmem:[%s652 + $0x1e0] sm:$0xff]
        %v749 = vld [vmem:[%s652 + $0x1e8] sm:$0xff]
        %v750 = vld [vmem:[%s652 + $0x1f0] sm:$0xff]
        %v751 = vld [vmem:[%s652 + $0x1f8] sm:$0xff]
        %v752 = vld [vmem:[%s652 + $0x200] sm:$0xff]
        %v753 = vld [vmem:[%s652 + $0x208] sm:$0xff]
        %v754 = vld [vmem:[%s652 + $0x210] sm:$0xff]
        %v755 = vld [vmem:[%s652 + $0x218] sm:$0xff]
        %v756 = vld [vmem:[%s652 + $0x220] sm:$0xff]
        %v757 = vld [vmem:[%s652 + $0x228] sm:$0xff]
        %v758 = vld [vmem:[%s652 + $0x230] sm:$0xff]
        %v759 = vld [vmem:[%s652 + $0x238] sm:$0xff]
        %v760 = vld [vmem:[%s652 + $0x240] sm:$0xff]
        %v761 = vld [vmem:[%s652 + $0x248] sm:$0xff]
        %v762 = vld [vmem:[%s652 + $0x250] sm:$0xff]
        %v763 = vld [vmem:[%s652 + $0x258] sm:$0xff]
        %v764 = vld [vmem:[%s652 + $0x260] sm:$0xff]
        %v765 = vld [vmem:[%s652 + $0x268] sm:$0xff]
        %v766 = vld [vmem:[%s652 + $0x270] sm:$0xff]
        %v767 = vld [vmem:[%s652 + $0x278] sm:$0xff]
        %v768 = vld [vmem:[%s652 + $0x280] sm:$0xff]
        %v769 = vld [vmem:[%s652 + $0x288] sm:$0xff]
        %v770 = vld [vmem:[%s652 + $0x290] sm:$0xff]
        %v771 = vld [vmem:[%s652 + $0x298] sm:$0xff]
        %v772 = vld [vmem:[%s652 + $0x2a0] sm:$0xff]
        %v773 = vld [vmem:[%s652 + $0x2a8] sm:$0xff]
        %v774 = vld [vmem:[%s652 + $0x2b0] sm:$0xff]
        %v775 = vld [vmem:[%s652 + $0x2b8] sm:$0xff]
        %v776 = vld [vmem:[%s652 + $0x2c0] sm:$0xff]
        %v777 = vld [vmem:[%s652 + $0x2c8] sm:$0xff]
        %v778 = vld [vmem:[%s652 + $0x2d0] sm:$0xff]
        %v779 = vld [vmem:[%s652 + $0x2d8] sm:$0xff]
        %v780 = vld [vmem:[%s652 + $0x2e0] sm:$0xff]
        %v781 = vld [vmem:[%s652 + $0x2e8] sm:$0xff]
        %v782 = vld [vmem:[%s652 + $0x2f0] sm:$0xff]
        %v783 = vld [vmem:[%s652 + $0x2f8] sm:$0xff]
        %v784 = vld [vmem:[%s652 + $0x300] sm:$0xff]
        %v785 = vld [vmem:[%s652 + $0x308] sm:$0xff]
        %v786 = vld [vmem:[%s652 + $0x310] sm:$0xff]
        %v787 = vld [vmem:[%s652 + $0x318] sm:$0xff]
        %v788 = vld [vmem:[%s652 + $0x320] sm:$0xff]
        %v789 = vld [vmem:[%s652 + $0x328] sm:$0xff]
        %v790 = vld [vmem:[%s652 + $0x330] sm:$0xff]
        %v791 = vld [vmem:[%s652 + $0x338] sm:$0xff]
        %v792 = vld [vmem:[%s652 + $0x340] sm:$0xff]
        %v793 = vld [vmem:[%s652 + $0x348] sm:$0xff]
        %v794 = vld [vmem:[%s652 + $0x350] sm:$0xff]
        %v795 = vld [vmem:[%s652 + $0x358] sm:$0xff]
        %v796 = vld [vmem:[%s652 + $0x360] sm:$0xff]
        %v797 = vld [vmem:[%s652 + $0x368] sm:$0xff]
        %v798 = vld [vmem:[%s652 + $0x370] sm:$0xff]
        %v799 = vld [vmem:[%s652 + $0x378] sm:$0xff]
        %v800 = vld [vmem:[%s652 + $0x380] sm:$0xff]
        %v801 = vld [vmem:[%s652 + $0x388] sm:$0xff]
        %v802 = vld [vmem:[%s652 + $0x390] sm:$0xff]
        %v803 = vld [vmem:[%s652 + $0x398] sm:$0xff]
        %v804 = vld [vmem:[%s652 + $0x3a0] sm:$0xff]
        %v805 = vld [vmem:[%s652 + $0x3a8] sm:$0xff]
        %v806 = vld [vmem:[%s652 + $0x3b0] sm:$0xff]
        %v807 = vld [vmem:[%s652 + $0x3b8] sm:$0xff]
        %v808 = vld [vmem:[%s652 + $0x3c0] sm:$0xff]
        %v809 = vld [vmem:[%s652 + $0x3c8] sm:$0xff]
        %v810 = vld [vmem:[%s652 + $0x3d0] sm:$0xff]
        %v811 = vld [vmem:[%s652 + $0x3d8] sm:$0xff]
        %v812 = vld [vmem:[%s652 + $0x3e0] sm:$0xff]
        %v813 = vld [vmem:[%s652 + $0x3e8] sm:$0xff]
        %v814 = vld [vmem:[%s652 + $0x3f0] sm:$0xff]
        %v815 = vld [vmem:[%s652 + $0x3f8] sm:$0xff]
        %v944 = vunpack.c.l.b16 %v688
        %v945 = vunpack.c.h.b16 %v688
        %v946 = vunpack.c.l.b16 %v689
        %v947 = vunpack.c.h.b16 %v689
        %v948 = vunpack.c.l.b16 %v690
        %v949 = vunpack.c.h.b16 %v690
        %v950 = vunpack.c.l.b16 %v691
        %v951 = vunpack.c.h.b16 %v691
        %v952 = vunpack.c.l.b16 %v692
        %v953 = vunpack.c.h.b16 %v692
        %v954 = vunpack.c.l.b16 %v693
        %v955 = vunpack.c.h.b16 %v693
        %v956 = vunpack.c.l.b16 %v694
        %v957 = vunpack.c.h.b16 %v694
        %v958 = vunpack.c.l.b16 %v695
        %v959 = vunpack.c.h.b16 %v695
        %v960 = vunpack.c.l.b16 %v696
        %v961 = vunpack.c.h.b16 %v696
        %v962 = vunpack.c.l.b16 %v697
        %v963 = vunpack.c.h.b16 %v697
        %v964 = vunpack.c.l.b16 %v698
        %v965 = vunpack.c.h.b16 %v698
        %v966 = vunpack.c.l.b16 %v699
        %v967 = vunpack.c.h.b16 %v699
        %v968 = vunpack.c.l.b16 %v700
        %v969 = vunpack.c.h.b16 %v700
        %v970 = vunpack.c.l.b16 %v701
        %v971 = vunpack.c.h.b16 %v701
        %v972 = vunpack.c.l.b16 %v702
        %v973 = vunpack.c.h.b16 %v702
        %v974 = vunpack.c.l.b16 %v703
        %v975 = vunpack.c.h.b16 %v703
        %v976 = vunpack.c.l.b16 %v704
        %v977 = vunpack.c.h.b16 %v704
        %v978 = vunpack.c.l.b16 %v705
        %v979 = vunpack.c.h.b16 %v705
        %v980 = vunpack.c.l.b16 %v706
        %v981 = vunpack.c.h.b16 %v706
        %v982 = vunpack.c.l.b16 %v707
        %v983 = vunpack.c.h.b16 %v707
        %v984 = vunpack.c.l.b16 %v708
        %v985 = vunpack.c.h.b16 %v708
        %v986 = vunpack.c.l.b16 %v709
        %v987 = vunpack.c.h.b16 %v709
        %v988 = vunpack.c.l.b16 %v710
        %v989 = vunpack.c.h.b16 %v710
        %v990 = vunpack.c.l.b16 %v711
        %v991 = vunpack.c.h.b16 %v711
        %v992 = vunpack.c.l.b16 %v712
        %v993 = vunpack.c.h.b16 %v712
        %v994 = vunpack.c.l.b16 %v713
        %v995 = vunpack.c.h.b16 %v713
        %v996 = vunpack.c.l.b16 %v714
        %v997 = vunpack.c.h.b16 %v714
        %v998 = vunpack.c.l.b16 %v715
        %v999 = vunpack.c.h.b16 %v715
        %v1000 = vunpack.c.l.b16 %v716
        %v1001 = vunpack.c.h.b16 %v716
        %v1002 = vunpack.c.l.b16 %v717
        %v1003 = vunpack.c.h.b16 %v717
        %v1004 = vunpack.c.l.b16 %v718
        %v1005 = vunpack.c.h.b16 %v718
        %v1006 = vunpack.c.l.b16 %v719
        %v1007 = vunpack.c.h.b16 %v719
        %v1008 = vunpack.c.l.b16 %v720
        %v1009 = vunpack.c.h.b16 %v720
        %v1010 = vunpack.c.l.b16 %v721
        %v1011 = vunpack.c.h.b16 %v721
        %v1012 = vunpack.c.l.b16 %v722
        %v1013 = vunpack.c.h.b16 %v722
        %v1014 = vunpack.c.l.b16 %v723
        %v1015 = vunpack.c.h.b16 %v723
        %v1016 = vunpack.c.l.b16 %v724
        %v1017 = vunpack.c.h.b16 %v724
        %v1018 = vunpack.c.l.b16 %v725
        %v1019 = vunpack.c.h.b16 %v725
        %v1020 = vunpack.c.l.b16 %v726
        %v1021 = vunpack.c.h.b16 %v726
        %v1022 = vunpack.c.l.b16 %v727
        %v1023 = vunpack.c.h.b16 %v727
        %v1024 = vunpack.c.l.b16 %v728
        %v1025 = vunpack.c.h.b16 %v728
        %v1026 = vunpack.c.l.b16 %v729
        %v1027 = vunpack.c.h.b16 %v729
        %v1028 = vunpack.c.l.b16 %v730
        %v1029 = vunpack.c.h.b16 %v730
        %v1030 = vunpack.c.l.b16 %v731
        %v1031 = vunpack.c.h.b16 %v731
        %v1032 = vunpack.c.l.b16 %v732
        %v1033 = vunpack.c.h.b16 %v732
        %v1034 = vunpack.c.l.b16 %v733
        %v1035 = vunpack.c.h.b16 %v733
        %v1036 = vunpack.c.l.b16 %v734
        %v1037 = vunpack.c.h.b16 %v734
        %v1038 = vunpack.c.l.b16 %v735
        %v1039 = vunpack.c.h.b16 %v735
        %v1040 = vunpack.c.l.b16 %v736
        %v1041 = vunpack.c.h.b16 %v736
        %v1042 = vunpack.c.l.b16 %v737
        %v1043 = vunpack.c.h.b16 %v737
        %v1044 = vunpack.c.l.b16 %v738
        %v1045 = vunpack.c.h.b16 %v738
        %v1046 = vunpack.c.l.b16 %v739
        %v1047 = vunpack.c.h.b16 %v739
        %v1048 = vunpack.c.l.b16 %v740
        %v1049 = vunpack.c.h.b16 %v740
        %v1050 = vunpack.c.l.b16 %v741
        %v1051 = vunpack.c.h.b16 %v741
        %v1052 = vunpack.c.l.b16 %v742
        %v1053 = vunpack.c.h.b16 %v742
        %v1054 = vunpack.c.l.b16 %v743
        %v1055 = vunpack.c.h.b16 %v743
        %v1056 = vunpack.c.l.b16 %v744
        %v1057 = vunpack.c.h.b16 %v744
        %v1058 = vunpack.c.l.b16 %v745
        %v1059 = vunpack.c.h.b16 %v745
        %v1060 = vunpack.c.l.b16 %v746
        %v1061 = vunpack.c.h.b16 %v746
        %v1062 = vunpack.c.l.b16 %v747
        %v1063 = vunpack.c.h.b16 %v747
        %v1064 = vunpack.c.l.b16 %v748
        %v1065 = vunpack.c.h.b16 %v748
        %v1066 = vunpack.c.l.b16 %v749
        %v1067 = vunpack.c.h.b16 %v749
        %v1068 = vunpack.c.l.b16 %v750
        %v1069 = vunpack.c.h.b16 %v750
        %v1070 = vunpack.c.l.b16 %v751
        %v1071 = vunpack.c.h.b16 %v751
        %v1072 = vunpack.c.l.b16 %v752
        %v1073 = vunpack.c.h.b16 %v752
        %v1074 = vunpack.c.l.b16 %v753
        %v1075 = vunpack.c.h.b16 %v753
        %v1076 = vunpack.c.l.b16 %v754
        %v1077 = vunpack.c.h.b16 %v754
        %v1078 = vunpack.c.l.b16 %v755
        %v1079 = vunpack.c.h.b16 %v755
        %v1080 = vunpack.c.l.b16 %v756
        %v1081 = vunpack.c.h.b16 %v756
        %v1082 = vunpack.c.l.b16 %v757
        %v1083 = vunpack.c.h.b16 %v757
        %v1084 = vunpack.c.l.b16 %v758
        %v1085 = vunpack.c.h.b16 %v758
        %v1086 = vunpack.c.l.b16 %v759
        %v1087 = vunpack.c.h.b16 %v759
        %v1088 = vunpack.c.l.b16 %v760
        %v1089 = vunpack.c.h.b16 %v760
        %v1090 = vunpack.c.l.b16 %v761
        %v1091 = vunpack.c.h.b16 %v761
        %v1092 = vunpack.c.l.b16 %v762
        %v1093 = vunpack.c.h.b16 %v762
        %v1094 = vunpack.c.l.b16 %v763
        %v1095 = vunpack.c.h.b16 %v763
        %v1096 = vunpack.c.l.b16 %v764
        %v1097 = vunpack.c.h.b16 %v764
        %v1098 = vunpack.c.l.b16 %v765
        %v1099 = vunpack.c.h.b16 %v765
        %v1100 = vunpack.c.l.b16 %v766
        %v1101 = vunpack.c.h.b16 %v766
        %v1102 = vunpack.c.l.b16 %v767
        %v1103 = vunpack.c.h.b16 %v767
        %v1104 = vunpack.c.l.b16 %v768
        %v1105 = vunpack.c.h.b16 %v768
        %v1106 = vunpack.c.l.b16 %v769
        %v1107 = vunpack.c.h.b16 %v769
        %v1108 = vunpack.c.l.b16 %v770
        %v1109 = vunpack.c.h.b16 %v770
        %v1110 = vunpack.c.l.b16 %v771
        %v1111 = vunpack.c.h.b16 %v771
        %v1112 = vunpack.c.l.b16 %v772
        %v1113 = vunpack.c.h.b16 %v772
        %v1114 = vunpack.c.l.b16 %v773
        %v1115 = vunpack.c.h.b16 %v773
        %v1116 = vunpack.c.l.b16 %v774
        %v1117 = vunpack.c.h.b16 %v774
        %v1118 = vunpack.c.l.b16 %v775
        %v1119 = vunpack.c.h.b16 %v775
        %v1120 = vunpack.c.l.b16 %v776
        %v1121 = vunpack.c.h.b16 %v776
        %v1122 = vunpack.c.l.b16 %v777
        %v1123 = vunpack.c.h.b16 %v777
        %v1124 = vunpack.c.l.b16 %v778
        %v1125 = vunpack.c.h.b16 %v778
        %v1126 = vunpack.c.l.b16 %v779
        %v1127 = vunpack.c.h.b16 %v779
        %v1128 = vunpack.c.l.b16 %v780
        %v1129 = vunpack.c.h.b16 %v780
        %v1130 = vunpack.c.l.b16 %v781
        %v1131 = vunpack.c.h.b16 %v781
        %v1132 = vunpack.c.l.b16 %v782
        %v1133 = vunpack.c.h.b16 %v782
        %v1134 = vunpack.c.l.b16 %v783
        %v1135 = vunpack.c.h.b16 %v783
        %v1136 = vunpack.c.l.b16 %v784
        %v1137 = vunpack.c.h.b16 %v784
        %v1138 = vunpack.c.l.b16 %v785
        %v1139 = vunpack.c.h.b16 %v785
        %v1140 = vunpack.c.l.b16 %v786
        %v1141 = vunpack.c.h.b16 %v786
        %v1142 = vunpack.c.l.b16 %v787
        %v1143 = vunpack.c.h.b16 %v787
        %v1144 = vunpack.c.l.b16 %v788
        %v1145 = vunpack.c.h.b16 %v788
        %v1146 = vunpack.c.l.b16 %v789
        %v1147 = vunpack.c.h.b16 %v789
        %v1148 = vunpack.c.l.b16 %v790
        %v1149 = vunpack.c.h.b16 %v790
        %v1150 = vunpack.c.l.b16 %v791
        %v1151 = vunpack.c.h.b16 %v791
        %v1152 = vunpack.c.l.b16 %v792
        %v1153 = vunpack.c.h.b16 %v792
        %v1154 = vunpack.c.l.b16 %v793
        %v1155 = vunpack.c.h.b16 %v793
        %v1156 = vunpack.c.l.b16 %v794
        %v1157 = vunpack.c.h.b16 %v794
        %v1158 = vunpack.c.l.b16 %v795
        %v1159 = vunpack.c.h.b16 %v795
        %v1160 = vunpack.c.l.b16 %v796
        %v1161 = vunpack.c.h.b16 %v796
        %v1162 = vunpack.c.l.b16 %v797
        %v1163 = vunpack.c.h.b16 %v797
        %v1164 = vunpack.c.l.b16 %v798
        %v1165 = vunpack.c.h.b16 %v798
        %v1166 = vunpack.c.l.b16 %v799
        %v1167 = vunpack.c.h.b16 %v799
        %v1168 = vunpack.c.l.b16 %v800
        %v1169 = vunpack.c.h.b16 %v800
        %v1170 = vunpack.c.l.b16 %v801
        %v1171 = vunpack.c.h.b16 %v801
        %v1172 = vunpack.c.l.b16 %v802
        %v1173 = vunpack.c.h.b16 %v802
        %v1174 = vunpack.c.l.b16 %v803
        %v1175 = vunpack.c.h.b16 %v803
        %v1176 = vunpack.c.l.b16 %v804
        %v1177 = vunpack.c.h.b16 %v804
        %v1178 = vunpack.c.l.b16 %v805
        %v1179 = vunpack.c.h.b16 %v805
        %v1180 = vunpack.c.l.b16 %v806
        %v1181 = vunpack.c.h.b16 %v806
        %v1182 = vunpack.c.l.b16 %v807
        %v1183 = vunpack.c.h.b16 %v807
        %v1184 = vunpack.c.l.b16 %v808
        %v1185 = vunpack.c.h.b16 %v808
        %v1186 = vunpack.c.l.b16 %v809
        %v1187 = vunpack.c.h.b16 %v809
        %v1188 = vunpack.c.l.b16 %v810
        %v1189 = vunpack.c.h.b16 %v810
        %v1190 = vunpack.c.l.b16 %v811
        %v1191 = vunpack.c.h.b16 %v811
        %v1192 = vunpack.c.l.b16 %v812
        %v1193 = vunpack.c.h.b16 %v812
        %v1194 = vunpack.c.l.b16 %v813
        %v1195 = vunpack.c.h.b16 %v813
        %v1196 = vunpack.c.l.b16 %v814
        %v1197 = vunpack.c.h.b16 %v814
        %v1198 = vunpack.c.l.b16 %v815
        %v1199 = vunpack.c.h.b16 %v815
        %v1200 = vpack.c.b16 %v960, %v944
        %v1201 = vpack.c.b16 %v961, %v945
        %v1202 = vpack.c.b16 %v962, %v946
        %v1203 = vpack.c.b16 %v963, %v947
        %v1204 = vpack.c.b16 %v964, %v948
        %v1205 = vpack.c.b16 %v965, %v949
        %v1206 = vpack.c.b16 %v966, %v950
        %v1207 = vpack.c.b16 %v967, %v951
        %v1208 = vpack.c.b16 %v968, %v952
        %v1209 = vpack.c.b16 %v969, %v953
        %v1210 = vpack.c.b16 %v970, %v954
        %v1211 = vpack.c.b16 %v971, %v955
        %v1212 = vpack.c.b16 %v972, %v956
        %v1213 = vpack.c.b16 %v973, %v957
        %v1214 = vpack.c.b16 %v974, %v958
        %v1215 = vpack.c.b16 %v975, %v959
        %v1216 = vpack.c.b16 %v992, %v976
        %v1217 = vpack.c.b16 %v993, %v977
        %v1218 = vpack.c.b16 %v994, %v978
        %v1219 = vpack.c.b16 %v995, %v979
        %v1220 = vpack.c.b16 %v996, %v980
        %v1221 = vpack.c.b16 %v997, %v981
        %v1222 = vpack.c.b16 %v998, %v982
        %v1223 = vpack.c.b16 %v999, %v983
        %v1224 = vpack.c.b16 %v1000, %v984
        %v1225 = vpack.c.b16 %v1001, %v985
        %v1226 = vpack.c.b16 %v1002, %v986
        %v1227 = vpack.c.b16 %v1003, %v987
        %v1228 = vpack.c.b16 %v1004, %v988
        %v1229 = vpack.c.b16 %v1005, %v989
        %v1230 = vpack.c.b16 %v1006, %v990
        %v1231 = vpack.c.b16 %v1007, %v991
        %v1232 = vpack.c.b16 %v1024, %v1008
        %v1233 = vpack.c.b16 %v1025, %v1009
        %v1234 = vpack.c.b16 %v1026, %v1010
        %v1235 = vpack.c.b16 %v1027, %v1011
        %v1236 = vpack.c.b16 %v1028, %v1012
        %v1237 = vpack.c.b16 %v1029, %v1013
        %v1238 = vpack.c.b16 %v1030, %v1014
        %v1239 = vpack.c.b16 %v1031, %v1015
        %v1240 = vpack.c.b16 %v1032, %v1016
        %v1241 = vpack.c.b16 %v1033, %v1017
        %v1242 = vpack.c.b16 %v1034, %v1018
        %v1243 = vpack.c.b16 %v1035, %v1019
        %v1244 = vpack.c.b16 %v1036, %v1020
        %v1245 = vpack.c.b16 %v1037, %v1021
        %v1246 = vpack.c.b16 %v1038, %v1022
        %v1247 = vpack.c.b16 %v1039, %v1023
        %v1248 = vpack.c.b16 %v1056, %v1040
        %v1249 = vpack.c.b16 %v1057, %v1041
        %v1250 = vpack.c.b16 %v1058, %v1042
        %v1251 = vpack.c.b16 %v1059, %v1043
        %v1252 = vpack.c.b16 %v1060, %v1044
        %v1253 = vpack.c.b16 %v1061, %v1045
        %v1254 = vpack.c.b16 %v1062, %v1046
        %v1255 = vpack.c.b16 %v1063, %v1047
        %v1256 = vpack.c.b16 %v1064, %v1048
        %v1257 = vpack.c.b16 %v1065, %v1049
        %v1258 = vpack.c.b16 %v1066, %v1050
        %v1259 = vpack.c.b16 %v1067, %v1051
        %v1260 = vpack.c.b16 %v1068, %v1052
        %v1261 = vpack.c.b16 %v1069, %v1053
        %v1262 = vpack.c.b16 %v1070, %v1054
        %v1263 = vpack.c.b16 %v1071, %v1055
        %v1264 = vpack.c.b16 %v1088, %v1072
        %v1265 = vpack.c.b16 %v1089, %v1073
        %v1266 = vpack.c.b16 %v1090, %v1074
        %v1267 = vpack.c.b16 %v1091, %v1075
        %v1268 = vpack.c.b16 %v1092, %v1076
        %v1269 = vpack.c.b16 %v1093, %v1077
        %v1270 = vpack.c.b16 %v1094, %v1078
        %v1271 = vpack.c.b16 %v1095, %v1079
        %v1272 = vpack.c.b16 %v1096, %v1080
        %v1273 = vpack.c.b16 %v1097, %v1081
        %v1274 = vpack.c.b16 %v1098, %v1082
        %v1275 = vpack.c.b16 %v1099, %v1083
        %v1276 = vpack.c.b16 %v1100, %v1084
        %v1277 = vpack.c.b16 %v1101, %v1085
        %v1278 = vpack.c.b16 %v1102, %v1086
        %v1279 = vpack.c.b16 %v1103, %v1087
        %v1280 = vpack.c.b16 %v1120, %v1104
        %v1281 = vpack.c.b16 %v1121, %v1105
        %v1282 = vpack.c.b16 %v1122, %v1106
        %v1283 = vpack.c.b16 %v1123, %v1107
        %v1284 = vpack.c.b16 %v1124, %v1108
        %v1285 = vpack.c.b16 %v1125, %v1109
        %v1286 = vpack.c.b16 %v1126, %v1110
        %v1287 = vpack.c.b16 %v1127, %v1111
        %v1288 = vpack.c.b16 %v1128, %v1112
        %v1289 = vpack.c.b16 %v1129, %v1113
        %v1290 = vpack.c.b16 %v1130, %v1114
        %v1291 = vpack.c.b16 %v1131, %v1115
        %v1292 = vpack.c.b16 %v1132, %v1116
        %v1293 = vpack.c.b16 %v1133, %v1117
        %v1294 = vpack.c.b16 %v1134, %v1118
        %v1295 = vpack.c.b16 %v1135, %v1119
        %v1296 = vpack.c.b16 %v1152, %v1136
        %v1297 = vpack.c.b16 %v1153, %v1137
        %v1298 = vpack.c.b16 %v1154, %v1138
        %v1299 = vpack.c.b16 %v1155, %v1139
        %v1300 = vpack.c.b16 %v1156, %v1140
        %v1301 = vpack.c.b16 %v1157, %v1141
        %v1302 = vpack.c.b16 %v1158, %v1142
        %v1303 = vpack.c.b16 %v1159, %v1143
        %v1304 = vpack.c.b16 %v1160, %v1144
        %v1305 = vpack.c.b16 %v1161, %v1145
        %v1306 = vpack.c.b16 %v1162, %v1146
        %v1307 = vpack.c.b16 %v1163, %v1147
        %v1308 = vpack.c.b16 %v1164, %v1148
        %v1309 = vpack.c.b16 %v1165, %v1149
        %v1310 = vpack.c.b16 %v1166, %v1150
        %v1311 = vpack.c.b16 %v1167, %v1151
        %v1312 = vpack.c.b16 %v1184, %v1168
        %v1313 = vpack.c.b16 %v1185, %v1169
        %v1314 = vpack.c.b16 %v1186, %v1170
        %v1315 = vpack.c.b16 %v1187, %v1171
        %v1316 = vpack.c.b16 %v1188, %v1172
        %v1317 = vpack.c.b16 %v1189, %v1173
        %v1318 = vpack.c.b16 %v1190, %v1174
        %v1319 = vpack.c.b16 %v1191, %v1175
        %v1320 = vpack.c.b16 %v1192, %v1176
        %v1321 = vpack.c.b16 %v1193, %v1177
        %v1322 = vpack.c.b16 %v1194, %v1178
        %v1323 = vpack.c.b16 %v1195, %v1179
        %v1324 = vpack.c.b16 %v1196, %v1180
        %v1325 = vpack.c.b16 %v1197, %v1181
        %v1326 = vpack.c.b16 %v1198, %v1182
        %v1327 = vpack.c.b16 %v1199, %v1183
        %1456 = vmatprep.subr.bf16.mxu0 %v1201
        %1457 = vmatpush1.bf16.msra.mxu0 %v1200
        %1458 = vmatprep.subr.bf16.mxu0 %v1217
        %1459 = vmatpush1.bf16.msra.mxu0 %v1216
        %1460 = vmatprep.subr.bf16.mxu0 %v1233
        %1461 = vmatpush1.bf16.msra.mxu0 %v1232
        %1462 = vmatprep.subr.bf16.mxu0 %v1249
        %1463 = vmatpush1.bf16.msra.mxu0 %v1248
        %1464 = vmatprep.subr.bf16.mxu0 %v1265
        %1465 = vmatpush1.bf16.msra.mxu0 %v1264
        %1466 = vmatprep.subr.bf16.mxu0 %v1281
        %1467 = vmatpush1.bf16.msra.mxu0 %v1280
        %1468 = vmatprep.subr.bf16.mxu0 %v1297
        %1469 = vmatpush1.bf16.msra.mxu0 %v1296
        %1470 = vmatprep.subr.bf16.mxu0 %v1313
        %1471 = vmatpush1.bf16.msra.mxu0 %v1312
        %1472 = vmatprep.subr.bf16.mxu0 0
        %1473 = vmatpush1.bf16.msra.mxu0 0
        %1474 = vmatprep.subr.bf16.mxu0 0
        %1475 = vmatpush1.bf16.msra.mxu0 0
        %1476 = vmatprep.subr.bf16.mxu0 0
        %1477 = vmatpush1.bf16.msra.mxu0 0
        %1478 = vmatprep.subr.bf16.mxu0 0
        %1479 = vmatpush1.bf16.msra.mxu0 0
        %1480 = vmatprep.subr.bf16.mxu0 0
        %1481 = vmatpush1.bf16.msra.mxu0 0
        %1482 = vmatprep.subr.bf16.mxu0 0
        %1483 = vmatpush1.bf16.msra.mxu0 0
        %1484 = vmatprep.subr.bf16.mxu0 0
        %1485 = vmatpush1.bf16.msra.mxu0 0
        %1486 = vmatprep.subr.bf16.mxu0 0
        %1487 = vmatpush1.bf16.msra.mxu0 0
        %1488 = vmatprep.mubr.bf16.mxu0 0
        %1489 = vmatmul.mubr.bf16.gmra.mrb[0].mxu0 %v686
        %v1490 = vpop.f32.mrb[0].mxu0
        %v1491 = vadd.f32 0.0, %v1490
        %v1492 = vpop.f32.mrb[0].mxu0
        %v1493 = vadd.f32 0.0, %v1492
        %v1494 = vpop.f32.mrb[0].mxu0
        %v1495 = vadd.f32 0.0, %v1494
        %v1496 = vpop.f32.mrb[0].mxu0
        %v1497 = vadd.f32 0.0, %v1496
        %1498 = vmatprep.mubr.bf16.mxu0 0
        %1499 = vmatmul.mubr.bf16.gmra.mrb[0].mxu0 %v687
        %v1500 = vpop.f32.mrb[0].mxu0
        %v1501 = vadd.f32 0.0, %v1500
        %v1502 = vpop.f32.mrb[0].mxu0
        %v1503 = vadd.f32 0.0, %v1502
        %v1504 = vpop.f32.mrb[0].mxu0
        %v1505 = vadd.f32 0.0, %v1504
        %v1506 = vpop.f32.mrb[0].mxu0
        %v1507 = vadd.f32 0.0, %v1506
        %1508 = vdwg.mxu0
        %1509 = vmatprep.subr.bf16.mxu0 %v1203
        %1510 = vmatpush1.bf16.msra.mxu0 %v1202
        %1511 = vmatprep.subr.bf16.mxu0 %v1219
        %1512 = vmatpush1.bf16.msra.mxu0 %v1218
        %1513 = vmatprep.subr.bf16.mxu0 %v1235
        %1514 = vmatpush1.bf16.msra.mxu0 %v1234
        %1515 = vmatprep.subr.bf16.mxu0 %v1251
        %1516 = vmatpush1.bf16.msra.mxu0 %v1250
        %1517 = vmatprep.subr.bf16.mxu0 %v1267
        %1518 = vmatpush1.bf16.msra.mxu0 %v1266
        %1519 = vmatprep.subr.bf16.mxu0 %v1283
        %1520 = vmatpush1.bf16.msra.mxu0 %v1282
        %1521 = vmatprep.subr.bf16.mxu0 %v1299
        %1522 = vmatpush1.bf16.msra.mxu0 %v1298
        %1523 = vmatprep.subr.bf16.mxu0 %v1315
        %1524 = vmatpush1.bf16.msra.mxu0 %v1314
        %1525 = vmatprep.subr.bf16.mxu0 0
        %1526 = vmatpush1.bf16.msra.mxu0 0
        %1527 = vmatprep.subr.bf16.mxu0 0
        %1528 = vmatpush1.bf16.msra.mxu0 0
        %1529 = vmatprep.subr.bf16.mxu0 0
        %1530 = vmatpush1.bf16.msra.mxu0 0
        %1531 = vmatprep.subr.bf16.mxu0 0
        %1532 = vmatpush1.bf16.msra.mxu0 0
        %1533 = vmatprep.subr.bf16.mxu0 0
        %1534 = vmatpush1.bf16.msra.mxu0 0
        %1535 = vmatprep.subr.bf16.mxu0 0
        %1536 = vmatpush1.bf16.msra.mxu0 0
        %1537 = vmatprep.subr.bf16.mxu0 0
        %1538 = vmatpush1.bf16.msra.mxu0 0
        %1539 = vmatprep.subr.bf16.mxu0 0
        %1540 = vmatpush1.bf16.msra.mxu0 0
        %1541 = vmatprep.mubr.bf16.mxu0 0
        %1542 = vmatmul.mubr.bf16.gmra.mrb[0].mxu0 %v686
        %v1543 = vpop.f32.mrb[0].mxu0
        %v1544 = vadd.f32 0.0, %v1543
        %v1545 = vpop.f32.mrb[0].mxu0
        %v1546 = vadd.f32 0.0, %v1545
        %v1547 = vpop.f32.mrb[0].mxu0
        %v1548 = vadd.f32 0.0, %v1547
        %v1549 = vpop.f32.mrb[0].mxu0
        %v1550 = vadd.f32 0.0, %v1549
        %1551 = vmatprep.mubr.bf16.mxu0 0
        %1552 = vmatmul.mubr.bf16.gmra.mrb[0].mxu0 %v687
        %v1553 = vpop.f32.mrb[0].mxu0
        %v1554 = vadd.f32 0.0, %v1553
        %v1555 = vpop.f32.mrb[0].mxu0
        %v1556 = vadd.f32 0.0, %v1555
        %v1557 = vpop.f32.mrb[0].mxu0
        %v1558 = vadd.f32 0.0, %v1557
        %v1559 = vpop.f32.mrb[0].mxu0
        %v1560 = vadd.f32 0.0, %v1559
        %1561 = vdwg.mxu0
        %1562 = vmatprep.subr.bf16.mxu0 %v1205
        %1563 = vmatpush1.bf16.msra.mxu0 %v1204
        %1564 = vmatprep.subr.bf16.mxu0 %v1221
        %1565 = vmatpush1.bf16.msra.mxu0 %v1220
        %1566 = vmatprep.subr.bf16.mxu0 %v1237
        %1567 = vmatpush1.bf16.msra.mxu0 %v1236
        %1568 = vmatprep.subr.bf16.mxu0 %v1253
        %1569 = vmatpush1.bf16.msra.mxu0 %v1252
        %1570 = vmatprep.subr.bf16.mxu0 %v1269
        %1571 = vmatpush1.bf16.msra.mxu0 %v1268
        %1572 = vmatprep.subr.bf16.mxu0 %v1285
        %1573 = vmatpush1.bf16.msra.mxu0 %v1284
        %1574 = vmatprep.subr.bf16.mxu0 %v1301
        %1575 = vmatpush1.bf16.msra.mxu0 %v1300
        %1576 = vmatprep.subr.bf16.mxu0 %v1317
        %1577 = vmatpush1.bf16.msra.mxu0 %v1316
        %1578 = vmatprep.subr.bf16.mxu0 0
        %1579 = vmatpush1.bf16.msra.mxu0 0
        %1580 = vmatprep.subr.bf16.mxu0 0
        %1581 = vmatpush1.bf16.msra.mxu0 0
        %1582 = vmatprep.subr.bf16.mxu0 0
        %1583 = vmatpush1.bf16.msra.mxu0 0
        %1584 = vmatprep.subr.bf16.mxu0 0
        %1585 = vmatpush1.bf16.msra.mxu0 0
        %1586 = vmatprep.subr.bf16.mxu0 0
        %1587 = vmatpush1.bf16.msra.mxu0 0
        %1588 = vmatprep.subr.bf16.mxu0 0
        %1589 = vmatpush1.bf16.msra.mxu0 0
        %1590 = vmatprep.subr.bf16.mxu0 0
        %1591 = vmatpush1.bf16.msra.mxu0 0
        %1592 = vmatprep.subr.bf16.mxu0 0
        %1593 = vmatpush1.bf16.msra.mxu0 0
        %1594 = vmatprep.mubr.bf16.mxu0 0
        %1595 = vmatmul.mubr.bf16.gmra.mrb[0].mxu0 %v686
        %v1596 = vpop.f32.mrb[0].mxu0
        %v1597 = vadd.f32 0.0, %v1596
        %v1598 = vpop.f32.mrb[0].mxu0
        %v1599 = vadd.f32 0.0, %v1598
        %v1600 = vpop.f32.mrb[0].mxu0
        %v1601 = vadd.f32 0.0, %v1600
        %v1602 = vpop.f32.mrb[0].mxu0
        %v1603 = vadd.f32 0.0, %v1602
        %1604 = vmatprep.mubr.bf16.mxu0 0
        %1605 = vmatmul.mubr.bf16.gmra.mrb[0].mxu0 %v687
        %v1606 = vpop.f32.mrb[0].mxu0
        %v1607 = vadd.f32 0.0, %v1606
        %v1608 = vpop.f32.mrb[0].mxu0
        %v1609 = vadd.f32 0.0, %v1608
        %v1610 = vpop.f32.mrb[0].mxu0
        %v1611 = vadd.f32 0.0, %v1610
        %v1612 = vpop.f32.mrb[0].mxu0
        %v1613 = vadd.f32 0.0, %v1612
        %1614 = vdwg.mxu0
        %1615 = vmatprep.subr.bf16.mxu0 %v1207
        %1616 = vmatpush1.bf16.msra.mxu0 %v1206
        %1617 = vmatprep.subr.bf16.mxu0 %v1223
        %1618 = vmatpush1.bf16.msra.mxu0 %v1222
        %1619 = vmatprep.subr.bf16.mxu0 %v1239
        %1620 = vmatpush1.bf16.msra.mxu0 %v1238
        %1621 = vmatprep.subr.bf16.mxu0 %v1255
        %1622 = vmatpush1.bf16.msra.mxu0 %v1254
        %1623 = vmatprep.subr.bf16.mxu0 %v1271
        %1624 = vmatpush1.bf16.msra.mxu0 %v1270
        %1625 = vmatprep.subr.bf16.mxu0 %v1287
        %1626 = vmatpush1.bf16.msra.mxu0 %v1286
        %1627 = vmatprep.subr.bf16.mxu0 %v1303
        %1628 = vmatpush1.bf16.msra.mxu0 %v1302
        %1629 = vmatprep.subr.bf16.mxu0 %v1319
        %1630 = vmatpush1.bf16.msra.mxu0 %v1318
        %1631 = vmatprep.subr.bf16.mxu0 0
        %1632 = vmatpush1.bf16.msra.mxu0 0
        %1633 = vmatprep.subr.bf16.mxu0 0
        %1634 = vmatpush1.bf16.msra.mxu0 0
        %1635 = vmatprep.subr.bf16.mxu0 0
        %1636 = vmatpush1.bf16.msra.mxu0 0
        %1637 = vmatprep.subr.bf16.mxu0 0
        %1638 = vmatpush1.bf16.msra.mxu0 0
        %1639 = vmatprep.subr.bf16.mxu0 0
        %1640 = vmatpush1.bf16.msra.mxu0 0
        %1641 = vmatprep.subr.bf16.mxu0 0
        %1642 = vmatpush1.bf16.msra.mxu0 0
        %1643 = vmatprep.subr.bf16.mxu0 0
        %1644 = vmatpush1.bf16.msra.mxu0 0
        %1645 = vmatprep.subr.bf16.mxu0 0
        %1646 = vmatpush1.bf16.msra.mxu0 0
        %1647 = vmatprep.mubr.bf16.mxu0 0
        %1648 = vmatmul.mubr.bf16.gmra.mrb[0].mxu0 %v686
        %v1649 = vpop.f32.mrb[0].mxu0
        %v1650 = vadd.f32 0.0, %v1649
        %v1651 = vpop.f32.mrb[0].mxu0
        %v1652 = vadd.f32 0.0, %v1651
        %v1653 = vpop.f32.mrb[0].mxu0
        %v1654 = vadd.f32 0.0, %v1653
        %v1655 = vpop.f32.mrb[0].mxu0
        %v1656 = vadd.f32 0.0, %v1655
        %1657 = vmatprep.mubr.bf16.mxu0 0
        %1658 = vmatmul.mubr.bf16.gmra.mrb[0].mxu0 %v687
        %v1659 = vpop.f32.mrb[0].mxu0
        %v1660 = vadd.f32 0.0, %v1659
        %v1661 = vpop.f32.mrb[0].mxu0
        %v1662 = vadd.f32 0.0, %v1661
        %v1663 = vpop.f32.mrb[0].mxu0
        %v1664 = vadd.f32 0.0, %v1663
        %v1665 = vpop.f32.mrb[0].mxu0
        %v1666 = vadd.f32 0.0, %v1665
        %1667 = vdwg.mxu0
        %1668 = vmatprep.subr.bf16.mxu0 %v1209
        %1669 = vmatpush1.bf16.msra.mxu0 %v1208
        %1670 = vmatprep.subr.bf16.mxu0 %v1225
        %1671 = vmatpush1.bf16.msra.mxu0 %v1224
        %1672 = vmatprep.subr.bf16.mxu0 %v1241
        %1673 = vmatpush1.bf16.msra.mxu0 %v1240
        %1674 = vmatprep.subr.bf16.mxu0 %v1257
        %1675 = vmatpush1.bf16.msra.mxu0 %v1256
        %1676 = vmatprep.subr.bf16.mxu0 %v1273
        %1677 = vmatpush1.bf16.msra.mxu0 %v1272
        %1678 = vmatprep.subr.bf16.mxu0 %v1289
        %1679 = vmatpush1.bf16.msra.mxu0 %v1288
        %1680 = vmatprep.subr.bf16.mxu0 %v1305
        %1681 = vmatpush1.bf16.msra.mxu0 %v1304
        %1682 = vmatprep.subr.bf16.mxu0 %v1321
        %1683 = vmatpush1.bf16.msra.mxu0 %v1320
        %1684 = vmatprep.subr.bf16.mxu0 0
        %1685 = vmatpush1.bf16.msra.mxu0 0
        %1686 = vmatprep.subr.bf16.mxu0 0
        %1687 = vmatpush1.bf16.msra.mxu0 0
        %1688 = vmatprep.subr.bf16.mxu0 0
        %1689 = vmatpush1.bf16.msra.mxu0 0
        %1690 = vmatprep.subr.bf16.mxu0 0
        %1691 = vmatpush1.bf16.msra.mxu0 0
        %1692 = vmatprep.subr.bf16.mxu0 0
        %1693 = vmatpush1.bf16.msra.mxu0 0
        %1694 = vmatprep.subr.bf16.mxu0 0
        %1695 = vmatpush1.bf16.msra.mxu0 0
        %1696 = vmatprep.subr.bf16.mxu0 0
        %1697 = vmatpush1.bf16.msra.mxu0 0
        %1698 = vmatprep.subr.bf16.mxu0 0
        %1699 = vmatpush1.bf16.msra.mxu0 0
        %1700 = vmatprep.mubr.bf16.mxu0 0
        %1701 = vmatmul.mubr.bf16.gmra.mrb[0].mxu0 %v686
        %v1702 = vpop.f32.mrb[0].mxu0
        %v1703 = vadd.f32 0.0, %v1702
        %v1704 = vpop.f32.mrb[0].mxu0
        %v1705 = vadd.f32 0.0, %v1704
        %v1706 = vpop.f32.mrb[0].mxu0
        %v1707 = vadd.f32 0.0, %v1706
        %v1708 = vpop.f32.mrb[0].mxu0
        %v1709 = vadd.f32 0.0, %v1708
        %1710 = vmatprep.mubr.bf16.mxu0 0
        %1711 = vmatmul.mubr.bf16.gmra.mrb[0].mxu0 %v687
        %v1712 = vpop.f32.mrb[0].mxu0
        %v1713 = vadd.f32 0.0, %v1712
        %v1714 = vpop.f32.mrb[0].mxu0
        %v1715 = vadd.f32 0.0, %v1714
        %v1716 = vpop.f32.mrb[0].mxu0
        %v1717 = vadd.f32 0.0, %v1716
        %v1718 = vpop.f32.mrb[0].mxu0
        %v1719 = vadd.f32 0.0, %v1718
        %1720 = vdwg.mxu0
        %1721 = vmatprep.subr.bf16.mxu0 %v1211
        %1722 = vmatpush1.bf16.msra.mxu0 %v1210
        %1723 = vmatprep.subr.bf16.mxu0 %v1227
        %1724 = vmatpush1.bf16.msra.mxu0 %v1226
        %1725 = vmatprep.subr.bf16.mxu0 %v1243
        %1726 = vmatpush1.bf16.msra.mxu0 %v1242
        %1727 = vmatprep.subr.bf16.mxu0 %v1259
        %1728 = vmatpush1.bf16.msra.mxu0 %v1258
        %1729 = vmatprep.subr.bf16.mxu0 %v1275
        %1730 = vmatpush1.bf16.msra.mxu0 %v1274
        %1731 = vmatprep.subr.bf16.mxu0 %v1291
        %1732 = vmatpush1.bf16.msra.mxu0 %v1290
        %1733 = vmatprep.subr.bf16.mxu0 %v1307
        %1734 = vmatpush1.bf16.msra.mxu0 %v1306
        %1735 = vmatprep.subr.bf16.mxu0 %v1323
        %1736 = vmatpush1.bf16.msra.mxu0 %v1322
        %1737 = vmatprep.subr.bf16.mxu0 0
        %1738 = vmatpush1.bf16.msra.mxu0 0
        %1739 = vmatprep.subr.bf16.mxu0 0
        %1740 = vmatpush1.bf16.msra.mxu0 0
        %1741 = vmatprep.subr.bf16.mxu0 0
        %1742 = vmatpush1.bf16.msra.mxu0 0
        %1743 = vmatprep.subr.bf16.mxu0 0
        %1744 = vmatpush1.bf16.msra.mxu0 0
        %1745 = vmatprep.subr.bf16.mxu0 0
        %1746 = vmatpush1.bf16.msra.mxu0 0
        %1747 = vmatprep.subr.bf16.mxu0 0
        %1748 = vmatpush1.bf16.msra.mxu0 0
        %1749 = vmatprep.subr.bf16.mxu0 0
        %1750 = vmatpush1.bf16.msra.mxu0 0
        %1751 = vmatprep.subr.bf16.mxu0 0
        %1752 = vmatpush1.bf16.msra.mxu0 0
        %1753 = vmatprep.mubr.bf16.mxu0 0
        %1754 = vmatmul.mubr.bf16.gmra.mrb[0].mxu0 %v686
        %v1755 = vpop.f32.mrb[0].mxu0
        %v1756 = vadd.f32 0.0, %v1755
        %v1757 = vpop.f32.mrb[0].mxu0
        %v1758 = vadd.f32 0.0, %v1757
        %v1759 = vpop.f32.mrb[0].mxu0
        %v1760 = vadd.f32 0.0, %v1759
        %v1761 = vpop.f32.mrb[0].mxu0
        %v1762 = vadd.f32 0.0, %v1761
        %1763 = vmatprep.mubr.bf16.mxu0 0
        %1764 = vmatmul.mubr.bf16.gmra.mrb[0].mxu0 %v687
        %v1765 = vpop.f32.mrb[0].mxu0
        %v1766 = vadd.f32 0.0, %v1765
        %v1767 = vpop.f32.mrb[0].mxu0
        %v1768 = vadd.f32 0.0, %v1767
        %v1769 = vpop.f32.mrb[0].mxu0
        %v1770 = vadd.f32 0.0, %v1769
        %v1771 = vpop.f32.mrb[0].mxu0
        %v1772 = vadd.f32 0.0, %v1771
        %1773 = vdwg.mxu0
        %1774 = vmatprep.subr.bf16.mxu0 %v1213
        %1775 = vmatpush1.bf16.msra.mxu0 %v1212
        %1776 = vmatprep.subr.bf16.mxu0 %v1229
        %1777 = vmatpush1.bf16.msra.mxu0 %v1228
        %1778 = vmatprep.subr.bf16.mxu0 %v1245
        %1779 = vmatpush1.bf16.msra.mxu0 %v1244
        %1780 = vmatprep.subr.bf16.mxu0 %v1261
        %1781 = vmatpush1.bf16.msra.mxu0 %v1260
        %1782 = vmatprep.subr.bf16.mxu0 %v1277
        %1783 = vmatpush1.bf16.msra.mxu0 %v1276
        %1784 = vmatprep.subr.bf16.mxu0 %v1293
        %1785 = vmatpush1.bf16.msra.mxu0 %v1292
        %1786 = vmatprep.subr.bf16.mxu0 %v1309
        %1787 = vmatpush1.bf16.msra.mxu0 %v1308
        %1788 = vmatprep.subr.bf16.mxu0 %v1325
        %1789 = vmatpush1.bf16.msra.mxu0 %v1324
        %1790 = vmatprep.subr.bf16.mxu0 0
        %1791 = vmatpush1.bf16.msra.mxu0 0
        %1792 = vmatprep.subr.bf16.mxu0 0
        %1793 = vmatpush1.bf16.msra.mxu0 0
        %1794 = vmatprep.subr.bf16.mxu0 0
        %1795 = vmatpush1.bf16.msra.mxu0 0
        %1796 = vmatprep.subr.bf16.mxu0 0
        %1797 = vmatpush1.bf16.msra.mxu0 0
        %1798 = vmatprep.subr.bf16.mxu0 0
        %1799 = vmatpush1.bf16.msra.mxu0 0
        %1800 = vmatprep.subr.bf16.mxu0 0
        %1801 = vmatpush1.bf16.msra.mxu0 0
        %1802 = vmatprep.subr.bf16.mxu0 0
        %1803 = vmatpush1.bf16.msra.mxu0 0
        %1804 = vmatprep.subr.bf16.mxu0 0
        %1805 = vmatpush1.bf16.msra.mxu0 0
        %1806 = vmatprep.mubr.bf16.mxu0 0
        %1807 = vmatmul.mubr.bf16.gmra.mrb[0].mxu0 %v686
        %v1808 = vpop.f32.mrb[0].mxu0
        %v1809 = vadd.f32 0.0, %v1808
        %v1810 = vpop.f32.mrb[0].mxu0
        %v1811 = vadd.f32 0.0, %v1810
        %v1812 = vpop.f32.mrb[0].mxu0
        %v1813 = vadd.f32 0.0, %v1812
        %v1814 = vpop.f32.mrb[0].mxu0
        %v1815 = vadd.f32 0.0, %v1814
        %1816 = vmatprep.mubr.bf16.mxu0 0
        %1817 = vmatmul.mubr.bf16.gmra.mrb[0].mxu0 %v687
        %v1818 = vpop.f32.mrb[0].mxu0
        %v1819 = vadd.f32 0.0, %v1818
        %v1820 = vpop.f32.mrb[0].mxu0
        %v1821 = vadd.f32 0.0, %v1820
        %v1822 = vpop.f32.mrb[0].mxu0
        %v1823 = vadd.f32 0.0, %v1822
        %v1824 = vpop.f32.mrb[0].mxu0
        %v1825 = vadd.f32 0.0, %v1824
        %1826 = vdwg.mxu0
        %1827 = vmatprep.subr.bf16.mxu0 %v1215
        %1828 = vmatpush1.bf16.msra.mxu0 %v1214
        %1829 = vmatprep.subr.bf16.mxu0 %v1231
        %1830 = vmatpush1.bf16.msra.mxu0 %v1230
        %1831 = vmatprep.subr.bf16.mxu0 %v1247
        %1832 = vmatpush1.bf16.msra.mxu0 %v1246
        %1833 = vmatprep.subr.bf16.mxu0 %v1263
        %1834 = vmatpush1.bf16.msra.mxu0 %v1262
        %1835 = vmatprep.subr.bf16.mxu0 %v1279
        %1836 = vmatpush1.bf16.msra.mxu0 %v1278
        %1837 = vmatprep.subr.bf16.mxu0 %v1295
        %1838 = vmatpush1.bf16.msra.mxu0 %v1294
        %1839 = vmatprep.subr.bf16.mxu0 %v1311
        %1840 = vmatpush1.bf16.msra.mxu0 %v1310
        %1841 = vmatprep.subr.bf16.mxu0 %v1327
        %1842 = vmatpush1.bf16.msra.mxu0 %v1326
        %1843 = vmatprep.subr.bf16.mxu0 0
        %1844 = vmatpush1.bf16.msra.mxu0 0
        %1845 = vmatprep.subr.bf16.mxu0 0
        %1846 = vmatpush1.bf16.msra.mxu0 0
        %1847 = vmatprep.subr.bf16.mxu0 0
        %1848 = vmatpush1.bf16.msra.mxu0 0
        %1849 = vmatprep.subr.bf16.mxu0 0
        %1850 = vmatpush1.bf16.msra.mxu0 0
        %1851 = vmatprep.subr.bf16.mxu0 0
        %1852 = vmatpush1.bf16.msra.mxu0 0
        %1853 = vmatprep.subr.bf16.mxu0 0
        %1854 = vmatpush1.bf16.msra.mxu0 0
        %1855 = vmatprep.subr.bf16.mxu0 0
        %1856 = vmatpush1.bf16.msra.mxu0 0
        %1857 = vmatprep.subr.bf16.mxu0 0
        %1858 = vmatpush1.bf16.msra.mxu0 0
        %1859 = vmatprep.mubr.bf16.mxu0 0
        %1860 = vmatmul.mubr.bf16.gmra.mrb[0].mxu0 %v686
        %v1861 = vpop.f32.mrb[0].mxu0
        %v1862 = vadd.f32 0.0, %v1861
        %v1863 = vpop.f32.mrb[0].mxu0
        %v1864 = vadd.f32 0.0, %v1863
        %v1865 = vpop.f32.mrb[0].mxu0
        %v1866 = vadd.f32 0.0, %v1865
        %v1867 = vpop.f32.mrb[0].mxu0
        %v1868 = vadd.f32 0.0, %v1867
        %1869 = vmatprep.mubr.bf16.mxu0 0
        %1870 = vmatmul.mubr.bf16.gmra.mrb[0].mxu0 %v687
        %v1871 = vpop.f32.mrb[0].mxu0
        %v1872 = vadd.f32 0.0, %v1871
        %v1873 = vpop.f32.mrb[0].mxu0
        %v1874 = vadd.f32 0.0, %v1873
        %v1875 = vpop.f32.mrb[0].mxu0
        %v1876 = vadd.f32 0.0, %v1875
        %v1877 = vpop.f32.mrb[0].mxu0
        %v1878 = vadd.f32 0.0, %v1877
        %1879 = vdwg.mxu0
        %v1880 = vxor.u32 %v1491, 2147483648
        %v1881 = vxor.u32 %v1493, 2147483648
        %v1882 = vxor.u32 %v1544, 2147483648
        %v1883 = vxor.u32 %v1546, 2147483648
        %v1884 = vxor.u32 %v1597, 2147483648
        %v1885 = vxor.u32 %v1599, 2147483648
        %v1886 = vxor.u32 %v1650, 2147483648
        %v1887 = vxor.u32 %v1652, 2147483648
        %v1888 = vxor.u32 %v1703, 2147483648
        %v1889 = vxor.u32 %v1705, 2147483648
        %v1890 = vxor.u32 %v1756, 2147483648
        %v1891 = vxor.u32 %v1758, 2147483648
        %v1892 = vxor.u32 %v1809, 2147483648
        %v1893 = vxor.u32 %v1811, 2147483648
        %v1894 = vxor.u32 %v1862, 2147483648
        %v1895 = vxor.u32 %v1864, 2147483648
        %v1896 = vxor.u32 %v1495, 2147483648
        %v1897 = vxor.u32 %v1497, 2147483648
        %v1898 = vxor.u32 %v1548, 2147483648
        %v1899 = vxor.u32 %v1550, 2147483648
        %v1900 = vxor.u32 %v1601, 2147483648
        %v1901 = vxor.u32 %v1603, 2147483648
        %v1902 = vxor.u32 %v1654, 2147483648
        %v1903 = vxor.u32 %v1656, 2147483648
        %v1904 = vxor.u32 %v1707, 2147483648
        %v1905 = vxor.u32 %v1709, 2147483648
        %v1906 = vxor.u32 %v1760, 2147483648
        %v1907 = vxor.u32 %v1762, 2147483648
        %v1908 = vxor.u32 %v1813, 2147483648
        %v1909 = vxor.u32 %v1815, 2147483648
        %v1910 = vxor.u32 %v1866, 2147483648
        %v1911 = vxor.u32 %v1868, 2147483648
        %v1912 = vxor.u32 %v1501, 2147483648
        %v1913 = vxor.u32 %v1503, 2147483648
        %v1914 = vxor.u32 %v1554, 2147483648
        %v1915 = vxor.u32 %v1556, 2147483648
        %v1916 = vxor.u32 %v1607, 2147483648
        %v1917 = vxor.u32 %v1609, 2147483648
        %v1918 = vxor.u32 %v1660, 2147483648
        %v1919 = vxor.u32 %v1662, 2147483648
        %v1920 = vxor.u32 %v1713, 2147483648
        %v1921 = vxor.u32 %v1715, 2147483648
        %v1922 = vxor.u32 %v1766, 2147483648
        %v1923 = vxor.u32 %v1768, 2147483648
        %v1924 = vxor.u32 %v1819, 2147483648
        %v1925 = vxor.u32 %v1821, 2147483648
        %v1926 = vxor.u32 %v1872, 2147483648
        %v1927 = vxor.u32 %v1874, 2147483648
        %v1928 = vxor.u32 %v1505, 2147483648
        %v1929 = vxor.u32 %v1507, 2147483648
        %v1930 = vxor.u32 %v1558, 2147483648
        %v1931 = vxor.u32 %v1560, 2147483648
        %v1932 = vxor.u32 %v1611, 2147483648
        %v1933 = vxor.u32 %v1613, 2147483648
        %v1934 = vxor.u32 %v1664, 2147483648
        %v1935 = vxor.u32 %v1666, 2147483648
        %v1936 = vxor.u32 %v1717, 2147483648
        %v1937 = vxor.u32 %v1719, 2147483648
        %v1938 = vxor.u32 %v1770, 2147483648
        %v1939 = vxor.u32 %v1772, 2147483648
        %v1940 = vxor.u32 %v1823, 2147483648
        %v1941 = vxor.u32 %v1825, 2147483648
        %v1942 = vxor.u32 %v1876, 2147483648
        %v1943 = vxor.u32 %v1878, 2147483648
        %v1944 = vmul.f32 %v1880, 1.442695
        %v1945 = vpow.pop %v1944
        %v1946 = vmul.f32 %v1881, 1.442695
        %v1947 = vpow.pop %v1946
        %v1948 = vmul.f32 %v1882, 1.442695
        %v1949 = vpow.pop %v1948
        %v1950 = vmul.f32 %v1883, 1.442695
        %v1951 = vpow.pop %v1950
        %v1952 = vmul.f32 %v1884, 1.442695
        %v1953 = vpow.pop %v1952
        %v1954 = vmul.f32 %v1885, 1.442695
        %v1955 = vpow.pop %v1954
        %v1956 = vmul.f32 %v1886, 1.442695
        %v1957 = vpow.pop %v1956
        %v1958 = vmul.f32 %v1887, 1.442695
        %v1959 = vpow.pop %v1958
        %v1960 = vmul.f32 %v1888, 1.442695
        %v1961 = vpow.pop %v1960
        %v1962 = vmul.f32 %v1889, 1.442695
        %v1963 = vpow.pop %v1962
        %v1964 = vmul.f32 %v1890, 1.442695
        %v1965 = vpow.pop %v1964
        %v1966 = vmul.f32 %v1891, 1.442695
        %v1967 = vpow.pop %v1966
        %v1968 = vmul.f32 %v1892, 1.442695
        %v1969 = vpow.pop %v1968
        %v1970 = vmul.f32 %v1893, 1.442695
        %v1971 = vpow.pop %v1970
        %v1972 = vmul.f32 %v1894, 1.442695
        %v1973 = vpow.pop %v1972
        %v1974 = vmul.f32 %v1895, 1.442695
        %v1975 = vpow.pop %v1974
        %v1976 = vmul.f32 %v1896, 1.442695
        %v1977 = vpow.pop %v1976
        %v1978 = vmul.f32 %v1897, 1.442695
        %v1979 = vpow.pop %v1978
        %v1980 = vmul.f32 %v1898, 1.442695
        %v1981 = vpow.pop %v1980
        %v1982 = vmul.f32 %v1899, 1.442695
        %v1983 = vpow.pop %v1982
        %v1984 = vmul.f32 %v1900, 1.442695
        %v1985 = vpow.pop %v1984
        %v1986 = vmul.f32 %v1901, 1.442695
        %v1987 = vpow.pop %v1986
        %v1988 = vmul.f32 %v1902, 1.442695
        %v1989 = vpow.pop %v1988
        %v1990 = vmul.f32 %v1903, 1.442695
        %v1991 = vpow.pop %v1990
        %v1992 = vmul.f32 %v1904, 1.442695
        %v1993 = vpow.pop %v1992
        %v1994 = vmul.f32 %v1905, 1.442695
        %v1995 = vpow.pop %v1994
        %v1996 = vmul.f32 %v1906, 1.442695
        %v1997 = vpow.pop %v1996
        %v1998 = vmul.f32 %v1907, 1.442695
        %v1999 = vpow.pop %v1998
        %v2000 = vmul.f32 %v1908, 1.442695
        %v2001 = vpow.pop %v2000
        %v2002 = vmul.f32 %v1909, 1.442695
        %v2003 = vpow.pop %v2002
        %v2004 = vmul.f32 %v1910, 1.442695
        %v2005 = vpow.pop %v2004
        %v2006 = vmul.f32 %v1911, 1.442695
        %v2007 = vpow.pop %v2006
        %v2008 = vmul.f32 %v1912, 1.442695
        %v2009 = vpow.pop %v2008
        %v2010 = vmul.f32 %v1913, 1.442695
        %v2011 = vpow.pop %v2010
        %v2012 = vmul.f32 %v1914, 1.442695
        %v2013 = vpow.pop %v2012
        %v2014 = vmul.f32 %v1915, 1.442695
        %v2015 = vpow.pop %v2014
        %v2016 = vmul.f32 %v1916, 1.442695
        %v2017 = vpow.pop %v2016
        %v2018 = vmul.f32 %v1917, 1.442695
        %v2019 = vpow.pop %v2018
        %v2020 = vmul.f32 %v1918, 1.442695
        %v2021 = vpow.pop %v2020
        %v2022 = vmul.f32 %v1919, 1.442695
        %v2023 = vpow.pop %v2022
        %v2024 = vmul.f32 %v1920, 1.442695
        %v2025 = vpow.pop %v2024
        %v2026 = vmul.f32 %v1921, 1.442695
        %v2027 = vpow.pop %v2026
        %v2028 = vmul.f32 %v1922, 1.442695
        %v2029 = vpow.pop %v2028
        %v2030 = vmul.f32 %v1923, 1.442695
        %v2031 = vpow.pop %v2030
        %v2032 = vmul.f32 %v1924, 1.442695
        %v2033 = vpow.pop %v2032
        %v2034 = vmul.f32 %v1925, 1.442695
        %v2035 = vpow.pop %v2034
        %v2036 = vmul.f32 %v1926, 1.442695
        %v2037 = vpow.pop %v2036
        %v2038 = vmul.f32 %v1927, 1.442695
        %v2039 = vpow.pop %v2038
        %v2040 = vmul.f32 %v1928, 1.442695
        %v2041 = vpow.pop %v2040
        %v2042 = vmul.f32 %v1929, 1.442695
        %v2043 = vpow.pop %v2042
        %v2044 = vmul.f32 %v1930, 1.442695
        %v2045 = vpow.pop %v2044
        %v2046 = vmul.f32 %v1931, 1.442695
        %v2047 = vpow.pop %v2046
        %v2048 = vmul.f32 %v1932, 1.442695
        %v2049 = vpow.pop %v2048
        %v2050 = vmul.f32 %v1933, 1.442695
        %v2051 = vpow.pop %v2050
        %v2052 = vmul.f32 %v1934, 1.442695
        %v2053 = vpow.pop %v2052
        %v2054 = vmul.f32 %v1935, 1.442695
        %v2055 = vpow.pop %v2054
        %v2056 = vmul.f32 %v1936, 1.442695
        %v2057 = vpow.pop %v2056
        %v2058 = vmul.f32 %v1937, 1.442695
        %v2059 = vpow.pop %v2058
        %v2060 = vmul.f32 %v1938, 1.442695
        %v2061 = vpow.pop %v2060
        %v2062 = vmul.f32 %v1939, 1.442695
        %v2063 = vpow.pop %v2062
        %v2064 = vmul.f32 %v1940, 1.442695
        %v2065 = vpow.pop %v2064
        %v2066 = vmul.f32 %v1941, 1.442695
        %v2067 = vpow.pop %v2066
        %v2068 = vmul.f32 %v1942, 1.442695
        %v2069 = vpow.pop %v2068
        %v2070 = vmul.f32 %v1943, 1.442695
        %v2071 = vpow.pop %v2070
        %v2072 = vadd.f32 %v1945, 1.0
        %v2073 = vadd.f32 %v1947, 1.0
        %v2074 = vadd.f32 %v1949, 1.0
        %v2075 = vadd.f32 %v1951, 1.0
        %v2076 = vadd.f32 %v1953, 1.0
        %v2077 = vadd.f32 %v1955, 1.0
        %v2078 = vadd.f32 %v1957, 1.0
        %v2079 = vadd.f32 %v1959, 1.0
        %v2080 = vadd.f32 %v1961, 1.0
        %v2081 = vadd.f32 %v1963, 1.0
        %v2082 = vadd.f32 %v1965, 1.0
        %v2083 = vadd.f32 %v1967, 1.0
        %v2084 = vadd.f32 %v1969, 1.0
        %v2085 = vadd.f32 %v1971, 1.0
        %v2086 = vadd.f32 %v1973, 1.0
        %v2087 = vadd.f32 %v1975, 1.0
        %v2088 = vadd.f32 %v1977, 1.0
        %v2089 = vadd.f32 %v1979, 1.0
        %v2090 = vadd.f32 %v1981, 1.0
        %v2091 = vadd.f32 %v1983, 1.0
        %v2092 = vadd.f32 %v1985, 1.0
        %v2093 = vadd.f32 %v1987, 1.0
        %v2094 = vadd.f32 %v1989, 1.0
        %v2095 = vadd.f32 %v1991, 1.0
        %v2096 = vadd.f32 %v1993, 1.0
        %v2097 = vadd.f32 %v1995, 1.0
        %v2098 = vadd.f32 %v1997, 1.0
        %v2099 = vadd.f32 %v1999, 1.0
        %v2100 = vadd.f32 %v2001, 1.0
        %v2101 = vadd.f32 %v2003, 1.0
        %v2102 = vadd.f32 %v2005, 1.0
        %v2103 = vadd.f32 %v2007, 1.0
        %v2104 = vadd.f32 %v2009, 1.0
        %v2105 = vadd.f32 %v2011, 1.0
        %v2106 = vadd.f32 %v2013, 1.0
        %v2107 = vadd.f32 %v2015, 1.0
        %v2108 = vadd.f32 %v2017, 1.0
        %v2109 = vadd.f32 %v2019, 1.0
        %v2110 = vadd.f32 %v2021, 1.0
        %v2111 = vadd.f32 %v2023, 1.0
        %v2112 = vadd.f32 %v2025, 1.0
        %v2113 = vadd.f32 %v2027, 1.0
        %v2114 = vadd.f32 %v2029, 1.0
        %v2115 = vadd.f32 %v2031, 1.0
        %v2116 = vadd.f32 %v2033, 1.0
        %v2117 = vadd.f32 %v2035, 1.0
        %v2118 = vadd.f32 %v2037, 1.0
        %v2119 = vadd.f32 %v2039, 1.0
        %v2120 = vadd.f32 %v2041, 1.0
        %v2121 = vadd.f32 %v2043, 1.0
        %v2122 = vadd.f32 %v2045, 1.0
        %v2123 = vadd.f32 %v2047, 1.0
        %v2124 = vadd.f32 %v2049, 1.0
        %v2125 = vadd.f32 %v2051, 1.0
        %v2126 = vadd.f32 %v2053, 1.0
        %v2127 = vadd.f32 %v2055, 1.0
        %v2128 = vadd.f32 %v2057, 1.0
        %v2129 = vadd.f32 %v2059, 1.0
        %v2130 = vadd.f32 %v2061, 1.0
        %v2131 = vadd.f32 %v2063, 1.0
        %v2132 = vadd.f32 %v2065, 1.0
        %v2133 = vadd.f32 %v2067, 1.0
        %v2134 = vadd.f32 %v2069, 1.0
        %v2135 = vadd.f32 %v2071, 1.0
        %v2136 = vrcp.pop %v2072
        %v2137 = vmul.f32 1.0, %v2136
        %v2138 = vrcp.pop %v2073
        %v2139 = vmul.f32 1.0, %v2138
        %v2140 = vrcp.pop %v2074
        %v2141 = vmul.f32 1.0, %v2140
        %v2142 = vrcp.pop %v2075
        %v2143 = vmul.f32 1.0, %v2142
        %v2144 = vrcp.pop %v2076
        %v2145 = vmul.f32 1.0, %v2144
        %v2146 = vrcp.pop %v2077
        %v2147 = vmul.f32 1.0, %v2146
        %v2148 = vrcp.pop %v2078
        %v2149 = vmul.f32 1.0, %v2148
        %v2150 = vrcp.pop %v2079
        %v2151 = vmul.f32 1.0, %v2150
        %v2152 = vrcp.pop %v2080
        %v2153 = vmul.f32 1.0, %v2152
        %v2154 = vrcp.pop %v2081
        %v2155 = vmul.f32 1.0, %v2154
        %v2156 = vrcp.pop %v2082
        %v2157 = vmul.f32 1.0, %v2156
        %v2158 = vrcp.pop %v2083
        %v2159 = vmul.f32 1.0, %v2158
        %v2160 = vrcp.pop %v2084
        %v2161 = vmul.f32 1.0, %v2160
        %v2162 = vrcp.pop %v2085
        %v2163 = vmul.f32 1.0, %v2162
        %v2164 = vrcp.pop %v2086
        %v2165 = vmul.f32 1.0, %v2164
        %v2166 = vrcp.pop %v2087
        %v2167 = vmul.f32 1.0, %v2166
        %v2168 = vrcp.pop %v2088
        %v2169 = vmul.f32 1.0, %v2168
        %v2170 = vrcp.pop %v2089
        %v2171 = vmul.f32 1.0, %v2170
        %v2172 = vrcp.pop %v2090
        %v2173 = vmul.f32 1.0, %v2172
        %v2174 = vrcp.pop %v2091
        %v2175 = vmul.f32 1.0, %v2174
        %v2176 = vrcp.pop %v2092
        %v2177 = vmul.f32 1.0, %v2176
        %v2178 = vrcp.pop %v2093
        %v2179 = vmul.f32 1.0, %v2178
        %v2180 = vrcp.pop %v2094
        %v2181 = vmul.f32 1.0, %v2180
        %v2182 = vrcp.pop %v2095
        %v2183 = vmul.f32 1.0, %v2182
        %v2184 = vrcp.pop %v2096
        %v2185 = vmul.f32 1.0, %v2184
        %v2186 = vrcp.pop %v2097
        %v2187 = vmul.f32 1.0, %v2186
        %v2188 = vrcp.pop %v2098
        %v2189 = vmul.f32 1.0, %v2188
        %v2190 = vrcp.pop %v2099
        %v2191 = vmul.f32 1.0, %v2190
        %v2192 = vrcp.pop %v2100
        %v2193 = vmul.f32 1.0, %v2192
        %v2194 = vrcp.pop %v2101
        %v2195 = vmul.f32 1.0, %v2194
        %v2196 = vrcp.pop %v2102
        %v2197 = vmul.f32 1.0, %v2196
        %v2198 = vrcp.pop %v2103
        %v2199 = vmul.f32 1.0, %v2198
        %v2200 = vrcp.pop %v2104
        %v2201 = vmul.f32 1.0, %v2200
        %v2202 = vrcp.pop %v2105
        %v2203 = vmul.f32 1.0, %v2202
        %v2204 = vrcp.pop %v2106
        %v2205 = vmul.f32 1.0, %v2204
        %v2206 = vrcp.pop %v2107
        %v2207 = vmul.f32 1.0, %v2206
        %v2208 = vrcp.pop %v2108
        %v2209 = vmul.f32 1.0, %v2208
        %v2210 = vrcp.pop %v2109
        %v2211 = vmul.f32 1.0, %v2210
        %v2212 = vrcp.pop %v2110
        %v2213 = vmul.f32 1.0, %v2212
        %v2214 = vrcp.pop %v2111
        %v2215 = vmul.f32 1.0, %v2214
        %v2216 = vrcp.pop %v2112
        %v2217 = vmul.f32 1.0, %v2216
        %v2218 = vrcp.pop %v2113
        %v2219 = vmul.f32 1.0, %v2218
        %v2220 = vrcp.pop %v2114
        %v2221 = vmul.f32 1.0, %v2220
        %v2222 = vrcp.pop %v2115
        %v2223 = vmul.f32 1.0, %v2222
        %v2224 = vrcp.pop %v2116
        %v2225 = vmul.f32 1.0, %v2224
        %v2226 = vrcp.pop %v2117
        %v2227 = vmul.f32 1.0, %v2226
        %v2228 = vrcp.pop %v2118
        %v2229 = vmul.f32 1.0, %v2228
        %v2230 = vrcp.pop %v2119
        %v2231 = vmul.f32 1.0, %v2230
        %v2232 = vrcp.pop %v2120
        %v2233 = vmul.f32 1.0, %v2232
        %v2234 = vrcp.pop %v2121
        %v2235 = vmul.f32 1.0, %v2234
        %v2236 = vrcp.pop %v2122
        %v2237 = vmul.f32 1.0, %v2236
        %v2238 = vrcp.pop %v2123
        %v2239 = vmul.f32 1.0, %v2238
        %v2240 = vrcp.pop %v2124
        %v2241 = vmul.f32 1.0, %v2240
        %v2242 = vrcp.pop %v2125
        %v2243 = vmul.f32 1.0, %v2242
        %v2244 = vrcp.pop %v2126
        %v2245 = vmul.f32 1.0, %v2244
        %v2246 = vrcp.pop %v2127
        %v2247 = vmul.f32 1.0, %v2246
        %v2248 = vrcp.pop %v2128
        %v2249 = vmul.f32 1.0, %v2248
        %v2250 = vrcp.pop %v2129
        %v2251 = vmul.f32 1.0, %v2250
        %v2252 = vrcp.pop %v2130
        %v2253 = vmul.f32 1.0, %v2252
        %v2254 = vrcp.pop %v2131
        %v2255 = vmul.f32 1.0, %v2254
        %v2256 = vrcp.pop %v2132
        %v2257 = vmul.f32 1.0, %v2256
        %v2258 = vrcp.pop %v2133
        %v2259 = vmul.f32 1.0, %v2258
        %v2260 = vrcp.pop %v2134
        %v2261 = vmul.f32 1.0, %v2260
        %v2262 = vrcp.pop %v2135
        %v2263 = vmul.f32 1.0, %v2262
        %2264 = vst [vmem:[%s670] sm:$0xff] %v2137
        %2265 = vst [vmem:[%s670 + $0x8] sm:$0xff] %v2139
        %2266 = vst [vmem:[%s670 + $0x10] sm:$0xff] %v2141
        %2267 = vst [vmem:[%s670 + $0x18] sm:$0xff] %v2143
        %2268 = vst [vmem:[%s670 + $0x20] sm:$0xff] %v2145
        %2269 = vst [vmem:[%s670 + $0x28] sm:$0xff] %v2147
        %2270 = vst [vmem:[%s670 + $0x30] sm:$0xff] %v2149
        %2271 = vst [vmem:[%s670 + $0x38] sm:$0xff] %v2151
        %2272 = vst [vmem:[%s670 + $0x40] sm:$0xff] %v2153
        %2273 = vst [vmem:[%s670 + $0x48] sm:$0xff] %v2155
        %2274 = vst [vmem:[%s670 + $0x50] sm:$0xff] %v2157
        %2275 = vst [vmem:[%s670 + $0x58] sm:$0xff] %v2159
        %2276 = vst [vmem:[%s670 + $0x60] sm:$0xff] %v2161
        %2277 = vst [vmem:[%s670 + $0x68] sm:$0xff] %v2163
        %2278 = vst [vmem:[%s670 + $0x70] sm:$0xff] %v2165
        %2279 = vst [vmem:[%s670 + $0x78] sm:$0xff] %v2167
        %2280 = vst [vmem:[%s670 + $0x80] sm:$0xff] %v2169
        %2281 = vst [vmem:[%s670 + $0x88] sm:$0xff] %v2171
        %2282 = vst [vmem:[%s670 + $0x90] sm:$0xff] %v2173
        %2283 = vst [vmem:[%s670 + $0x98] sm:$0xff] %v2175
        %2284 = vst [vmem:[%s670 + $0xa0] sm:$0xff] %v2177
        %2285 = vst [vmem:[%s670 + $0xa8] sm:$0xff] %v2179
        %2286 = vst [vmem:[%s670 + $0xb0] sm:$0xff] %v2181
        %2287 = vst [vmem:[%s670 + $0xb8] sm:$0xff] %v2183
        %2288 = vst [vmem:[%s670 + $0xc0] sm:$0xff] %v2185
        %2289 = vst [vmem:[%s670 + $0xc8] sm:$0xff] %v2187
        %2290 = vst [vmem:[%s670 + $0xd0] sm:$0xff] %v2189
        %2291 = vst [vmem:[%s670 + $0xd8] sm:$0xff] %v2191
        %2292 = vst [vmem:[%s670 + $0xe0] sm:$0xff] %v2193
        %2293 = vst [vmem:[%s670 + $0xe8] sm:$0xff] %v2195
        %2294 = vst [vmem:[%s670 + $0xf0] sm:$0xff] %v2197
        %2295 = vst [vmem:[%s670 + $0xf8] sm:$0xff] %v2199
        %2296 = vst [vmem:[%s670 + $0x100] sm:$0xff] %v2201
        %2297 = vst [vmem:[%s670 + $0x108] sm:$0xff] %v2203
        %2298 = vst [vmem:[%s670 + $0x110] sm:$0xff] %v2205
        %2299 = vst [vmem:[%s670 + $0x118] sm:$0xff] %v2207
        %2300 = vst [vmem:[%s670 + $0x120] sm:$0xff] %v2209
        %2301 = vst [vmem:[%s670 + $0x128] sm:$0xff] %v2211
        %2302 = vst [vmem:[%s670 + $0x130] sm:$0xff] %v2213
        %2303 = vst [vmem:[%s670 + $0x138] sm:$0xff] %v2215
        %2304 = vst [vmem:[%s670 + $0x140] sm:$0xff] %v2217
        %2305 = vst [vmem:[%s670 + $0x148] sm:$0xff] %v2219
        %2306 = vst [vmem:[%s670 + $0x150] sm:$0xff] %v2221
        %2307 = vst [vmem:[%s670 + $0x158] sm:$0xff] %v2223
        %2308 = vst [vmem:[%s670 + $0x160] sm:$0xff] %v2225
        %2309 = vst [vmem:[%s670 + $0x168] sm:$0xff] %v2227
        %2310 = vst [vmem:[%s670 + $0x170] sm:$0xff] %v2229
        %2311 = vst [vmem:[%s670 + $0x178] sm:$0xff] %v2231
        %2312 = vst [vmem:[%s670 + $0x180] sm:$0xff] %v2233
        %2313 = vst [vmem:[%s670 + $0x188] sm:$0xff] %v2235
        %2314 = vst [vmem:[%s670 + $0x190] sm:$0xff] %v2237
        %2315 = vst [vmem:[%s670 + $0x198] sm:$0xff] %v2239
        %2316 = vst [vmem:[%s670 + $0x1a0] sm:$0xff] %v2241
        %2317 = vst [vmem:[%s670 + $0x1a8] sm:$0xff] %v2243
        %2318 = vst [vmem:[%s670 + $0x1b0] sm:$0xff] %v2245
        %2319 = vst [vmem:[%s670 + $0x1b8] sm:$0xff] %v2247
        %2320 = vst [vmem:[%s670 + $0x1c0] sm:$0xff] %v2249
        %2321 = vst [vmem:[%s670 + $0x1c8] sm:$0xff] %v2251
        %2322 = vst [vmem:[%s670 + $0x1d0] sm:$0xff] %v2253
        %2323 = vst [vmem:[%s670 + $0x1d8] sm:$0xff] %v2255
        %2324 = vst [vmem:[%s670 + $0x1e0] sm:$0xff] %v2257
        %2325 = vst [vmem:[%s670 + $0x1e8] sm:$0xff] %v2259
        %2326 = vst [vmem:[%s670 + $0x1f0] sm:$0xff] %v2261
        %2327 = vst [vmem:[%s670 + $0x1f8] sm:$0xff] %v2263
        %s2328 = sand.u32 %s71, 1
        %s2329 = scalar_lea.sflag [#allocation4], %s2328
        %s2330 = sand.u32 %s71, 1
        %s2331 = smul.addr %s2330, 512
        %s2332 = scalar_lea.vmem [#allocation3], %s2331
        // Predicated region
        $region95: #{tucker_forward.3} parent=89 // pred_check
          %p2333 = pneg %p81
        $region96: #{tucker_forward.3} parent=89 // pred_check_branch
          %2335 = sbr.rel (%p2333) target = $region98
        $region97: #{tucker_forward.3} parent=89 // pred_region
          %s2336 = smul.u32 16, %s16
          %s2337 = ssub.s32 40, %s2336
          %p2338 = scmp.lt.s32.totalorder %s2337, 16
          %s2339 = scalar_select %p2338, %s2337, 16
          %s2340 = smul.u32 512, %s2339
          %s2342 = ssub.s32 8192, %s2340
          %2343 = vsyncadd %s2329, %s2342
          %p2344 = scmp.ne.s32.totalorder 0, %s2340
          %s2345 = smul.addr %s2336, 128
          %s2346 = scalar_lea.hbm %s2, %s2345
          %s2347 = smul.u32 %s2339, 8
          %s2348 = smul.u32 %s2347, 4
          %s2349 = sshll.u32 %s2332, 4
          %s2350 = int_to_ptr.vmem [resolvable:$true] %s2349
          %s2351 = sshll.u32 %s2348, 4
          %2355 = dma.vmem_to_hbm [thread:$0]  (%p2344), %s2350, %s2351, %s2346, %s2329, 2048, 5120, %s2347
        $region98: #{tucker_forward.3} parent=89 // pred_fallthru
          _
      $region90: #{tucker_forward.3} parent=5 // pred_fallthru
        _
      %p2356 = scmp.le.s32.totalorder 2, %s11
      // Predicated region
      $region99: #{tucker_forward.3} parent=5 // pred_check
        %p2357 = pneg %p2356
      $region100: #{tucker_forward.3} parent=5 // pred_check_branch
        %2359 = sbr.rel (%p2357) target = $region102
      $region101: #{tucker_forward.3} parent=5 // pred_region
        %s2360 = ssub.s32 %s11, 2
        // Predicated region
        $region103: #{tucker_forward.3} parent=101 // pred_check
          %p2361 = pneg %p87
        $region104: #{tucker_forward.3} parent=101 // pred_check_branch
          %2363 = sbr.rel (%p2361) target = $region106
        $region105: #{tucker_forward.3} parent=101 // pred_region
          %s2364 = sand.u32 %s72, 1
          %s2365 = scalar_lea.sflag [#allocation4], %s2364
          %s2366 = sand.u32 %s72, 1
          %s2367 = smul.addr %s2366, 512
          %s2368 = scalar_lea.vmem [#allocation3], %s2367
          %2369 = dma.done %s2365, 8192
        $region106: #{tucker_forward.3} parent=101 // pred_fallthru
          _
      $region102: #{tucker_forward.3} parent=5 // pred_fallthru
        _
    $region6: #{tucker_forward.3} parent=1 // loop_footer
      %s15 = sadd.s32 1, %s11
    $region7: #{tucker_forward.3} parent=1 // loop_footer_branch
      %10 = sbr.rel target = $region3
    $region8: #{tucker_forward.3} parent=1 // loop_exit
      _
    %2370 = vsyncpa [#allocation4], 1
    %s2371 = scalar_lea.sflag [#allocation4], 1
    %2372 = vsyncpa %s2371, 1

// kernel: tucker_forward.2
$region0: #{tucker_forward.2}
  #allocation0 [shape = 'u32[]', space=smem, size = 0x4, offset = 0x4, fixed_abs, tag = 'smem constant byte address 0x4 - core index']
  #allocation1 [shape = 'u32[144,128]{1,0:T(1,128)}', space=vmem, size = 0x12000, scoped, tag = 'internal scratch']
  #allocation2 [shape = 'f32[32,128]{1,0:T(8,128)}', space=vmem, size = 0x4000, scoped, tag = 'scratch operand']
  #allocation3 [shape = 'f32[32,4096]{1,0:T(8,128)}', space=vmem, size = 0x80000, scoped, tag = 'scratch operand']
  #allocation4 [shape = 'f32[32,128]{1,0:T(8,128)}', space=vmem, size = 0x4000, scoped, tag = 'scratch operand']
  %s0 = inlined_call_operand.vmem [shape: f32[32,128], index: 0, kind: input, shape index: {}]
  %s1 = inlined_call_operand.vmem [shape: f32[1,32,32], index: 1, kind: input, shape index: {}]
  %s2 = inlined_call_operand.hbm [shape: f32[4096,128], index: 2, kind: input, shape index: {}]
  %s3 = inlined_call_operand.hbm [shape: f32[1,128], index: 3, kind: input, shape index: {}]
  %s4 = inlined_call_operand.hbm [shape: f32[1,128], index: 4, kind: input, shape index: {}]
  %s5 = inlined_call_operand.hbm [shape: f32[1,128], index: 5, kind: input, shape index: {}]
  %s6 = inlined_call_operand.hbm [shape: f32[1,128], index: 6, kind: input, shape index: {}]
  %s7 = inlined_call_operand.vmem [shape: f32[32,128], index: 7, kind: output, shape index: {}]
  %s8 = sld [smem:[#allocation0]]
  $region66: #{tucker_forward.2} parent=0
    _
  %s10 = ssub.s32 1, %s8
  %s11 = scalar_select 0, %s10, %s8
  $region1: #{tucker_forward.2} parent=0
    #allocation5 [shape = 'u8[2097152]{0}', space=vmem, size = 0x200000, scoped, tag = 'input window, operand 2, single buffered']
    #allocation6 [shape = 's32[1]{0}', space=sflag, size = 0x4, scoped, tag = 'scoped memory for tucker_forward.2']
    #allocation7 [shape = 'u8[512]{0}', space=vmem, size = 0x400, scoped, tag = 'input window, operand 3, single buffered']
    #allocation8 [shape = 's32[1]{0}', space=sflag, size = 0x4, scoped, tag = 'scoped memory for tucker_forward.2']
    #allocation9 [shape = 'u8[512]{0}', space=vmem, size = 0x400, scoped, tag = 'input window, operand 4, single buffered']
    #allocation10 [shape = 'u8[512]{0}', space=vmem, size = 0x400, scoped, tag = 'input window, operand 5, single buffered']
    #allocation11 [shape = 's32[1]{0}', space=sflag, size = 0x4, scoped, tag = 'scoped memory for tucker_forward.2']
    #allocation12 [shape = 'u8[512]{0}', space=vmem, size = 0x400, scoped, tag = 'input window, operand 6, single buffered']
    %12 = vsyncpa [#allocation6], 0
    %13 = vsyncpa [#allocation8], 0
    %14 = vsyncpa [#allocation11], 0
    // Predicated region
    $region2: #{tucker_forward.2} parent=1 // pred_check
      _
    $region3: #{tucker_forward.2} parent=1 // pred_check_branch
      %16 = sbr.rel (0) target = $region5
    $region4: #{tucker_forward.2} parent=1 // pred_region
      _
    $region5: #{tucker_forward.2} parent=1 // pred_fallthru
      _
    // Predicated region
    $region6: #{tucker_forward.2} parent=1 // pred_check
      _
    $region7: #{tucker_forward.2} parent=1 // pred_check_branch
      %18 = sbr.rel (0) target = $region9
    $region8: #{tucker_forward.2} parent=1 // pred_region
      _
    $region9: #{tucker_forward.2} parent=1 // pred_fallthru
      _
    // Predicated region
    $region10: #{tucker_forward.2} parent=1 // pred_check
      _
    $region11: #{tucker_forward.2} parent=1 // pred_check_branch
      %20 = sbr.rel (0) target = $region13
    $region12: #{tucker_forward.2} parent=1 // pred_region
      %s22 = ssub.s32 65536, 65536
      %23 = vsyncadd [#allocation6], %s22
      %s24 = sshll.u32 [#allocation5], 4
      %s25 = int_to_ptr.vmem [resolvable:$true] %s24
      %30 = dma.hbm_to_vmem [thread:$0]  %s2, 65536, %s25, [#allocation6], 128, 128, 8
    $region13: #{tucker_forward.2} parent=1 // pred_fallthru
      _
    // Predicated region
    $region14: #{tucker_forward.2} parent=1 // pred_check
      _
    $region15: #{tucker_forward.2} parent=1 // pred_check_branch
      %32 = sbr.rel (0) target = $region17
    $region16: #{tucker_forward.2} parent=1 // pred_region
      %s34 = ssub.s32 16, 16
      %35 = vsyncadd [#allocation8], %s34
      %s37 = sshll.u32 [#allocation7], 4
      %s38 = int_to_ptr.vmem [resolvable:$true] %s37
      %40 = dma.hbm_to_vmem [thread:$0]  %s3, 16, %s38, [#allocation8]
    $region17: #{tucker_forward.2} parent=1 // pred_fallthru
      _
    // Predicated region
    $region18: #{tucker_forward.2} parent=1 // pred_check
      _
    $region19: #{tucker_forward.2} parent=1 // pred_check_branch
      %42 = sbr.rel (0) target = $region21
    $region20: #{tucker_forward.2} parent=1 // pred_region
      %s44 = ssub.s32 16, 16
      %45 = vsyncadd [#allocation8], %s44
      %s47 = sshll.u32 [#allocation9], 4
      %s48 = int_to_ptr.vmem [resolvable:$true] %s47
      %50 = dma.hbm_to_vmem [thread:$0]  %s4, 16, %s48, [#allocation8]
    $region21: #{tucker_forward.2} parent=1 // pred_fallthru
      _
    // Predicated region
    $region22: #{tucker_forward.2} parent=1 // pred_check
      _
    $region23: #{tucker_forward.2} parent=1 // pred_check_branch
      %52 = sbr.rel (0) target = $region25
    $region24: #{tucker_forward.2} parent=1 // pred_region
      %s54 = ssub.s32 16, 16
      %55 = vsyncadd [#allocation11], %s54
      %s57 = sshll.u32 [#allocation10], 4
      %s58 = int_to_ptr.vmem [resolvable:$true] %s57
      %60 = dma.hbm_to_vmem [thread:$0]  %s5, 16, %s58, [#allocation11]
    $region25: #{tucker_forward.2} parent=1 // pred_fallthru
      _
    // Predicated region
    $region26: #{tucker_forward.2} parent=1 // pred_check
      _
    $region27: #{tucker_forward.2} parent=1 // pred_check_branch
      %62 = sbr.rel (0) target = $region29
    $region28: #{tucker_forward.2} parent=1 // pred_region
      %s64 = ssub.s32 16, 16
      %65 = vsyncadd [#allocation11], %s64
      %s67 = sshll.u32 [#allocation12], 4
      %s68 = int_to_ptr.vmem [resolvable:$true] %s67
      %70 = dma.hbm_to_vmem [thread:$0]  %s6, 16, %s68, [#allocation11]
    $region29: #{tucker_forward.2} parent=1 // pred_fallthru
      _
    // Predicated region
    $region30: #{tucker_forward.2} parent=1 // pred_check
      _
    $region31: #{tucker_forward.2} parent=1 // pred_check_branch
      %72 = sbr.rel (0) target = $region33
    $region32: #{tucker_forward.2} parent=1 // pred_region
      %73 = dma.done [#allocation6], 65536
    $region33: #{tucker_forward.2} parent=1 // pred_fallthru
      _
    // Predicated region
    $region34: #{tucker_forward.2} parent=1 // pred_check
      _
    $region35: #{tucker_forward.2} parent=1 // pred_check_branch
      %75 = sbr.rel (0) target = $region37
    $region36: #{tucker_forward.2} parent=1 // pred_region
      %76 = dma.done [#allocation8], 16
    $region37: #{tucker_forward.2} parent=1 // pred_fallthru
      _
    // Predicated region
    $region38: #{tucker_forward.2} parent=1 // pred_check
      _
    $region39: #{tucker_forward.2} parent=1 // pred_check_branch
      %78 = sbr.rel (0) target = $region41
    $region40: #{tucker_forward.2} parent=1 // pred_region
      %79 = dma.done [#allocation8], 16
    $region41: #{tucker_forward.2} parent=1 // pred_fallthru
      _
    // Predicated region
    $region42: #{tucker_forward.2} parent=1 // pred_check
      _
    $region43: #{tucker_forward.2} parent=1 // pred_check_branch
      %81 = sbr.rel (0) target = $region45
    $region44: #{tucker_forward.2} parent=1 // pred_region
      %82 = dma.done [#allocation11], 16
    $region45: #{tucker_forward.2} parent=1 // pred_fallthru
      _
    // Predicated region
    $region46: #{tucker_forward.2} parent=1 // pred_check
      _
    $region47: #{tucker_forward.2} parent=1 // pred_check_branch
      %84 = sbr.rel (0) target = $region49
    $region48: #{tucker_forward.2} parent=1 // pred_region
      %85 = dma.done [#allocation11], 16
    $region49: #{tucker_forward.2} parent=1 // pred_fallthru
      _
    %p86 = scmp.eq.s32.totalorder 0, 0
    // Predicated region
    $region50: #{tucker_forward.2} parent=1 // pred_check
      %p87 = pneg %p86
    $region51: #{tucker_forward.2} parent=1 // pred_check_branch
      %89 = sbr.rel (%p87) target = $region53
    $region52: #{tucker_forward.2} parent=1 // pred_region
      %v90 = vld [vmem:[%s0] sm:$0xff]
      %v91 = vld [vmem:[%s0 + $0x8] sm:$0xff]
      %v92 = vld [vmem:[%s0 + $0x10] sm:$0xff]
      %v93 = vld [vmem:[%s0 + $0x18] sm:$0xff]
      %v94 = vadd.f32 %v90, %v91
      %v95 = vadd.f32 %v94, %v92
      %v96 = vadd.f32 %v95, %v93
      %v97 = vrot.slane %v96, 4
      %v98 = vadd.f32 %v96, %v97
      %v99 = vrot.slane %v98, 2
      %v100 = vadd.f32 %v98, %v99
      %v101 = vrot.slane %v100, 1
      %v102 = vadd.f32 %v100, %v101
      %v103 = vrcp.pop 32.0
      %v104 = vmul.f32 %v102, %v103
      %v105 = vsub.f32 %v90, %v104
      %v106 = vsub.f32 %v91, %v104
      %v107 = vsub.f32 %v92, %v104
      %v108 = vsub.f32 %v93, %v104
      %v109 = vmul.f32 %v105, %v105
      %v110 = vmul.f32 %v106, %v106
      %v111 = vmul.f32 %v107, %v107
      %v112 = vmul.f32 %v108, %v108
      %v113 = vadd.f32 %v109, %v110
      %v114 = vadd.f32 %v113, %v111
      %v115 = vadd.f32 %v114, %v112
      %v116 = vrot.slane %v115, 4
      %v117 = vadd.f32 %v115, %v116
      %v118 = vrot.slane %v117, 2
      %v119 = vadd.f32 %v117, %v118
      %v120 = vrot.slane %v119, 1
      %v121 = vadd.f32 %v119, %v120
      %v122 = vmul.f32 %v121, %v103
      %v123 = vadd.f32 %v122, 1e-05
      %v124 = vrsqrt.pop %v123
      %v125 = vmul.f32 %v105, %v124
      %v126 = vmul.f32 %v106, %v124
      %v127 = vmul.f32 %v107, %v124
      %v128 = vmul.f32 %v108, %v124
      %v129 = vld [vmem:[#allocation7] sm:$0x1]
      %v131 = vlaneseq
      %v132 = vshrl.u32 %v131, 7
      %v133 = vsub.s32 0, %v132
      %v134 = vrot.slane %v129, %v133
      %v136 = vmul.f32 %v125, %v134
      %v137 = vmul.f32 %v126, %v134
      %v138 = vmul.f32 %v127, %v134
      %v139 = vmul.f32 %v128, %v134
      %v140 = vld [vmem:[#allocation9] sm:$0x1]
      %v142 = vlaneseq
      %v143 = vshrl.u32 %v142, 7
      %v144 = vsub.s32 0, %v143
      %v145 = vrot.slane %v140, %v144
      %v147 = vadd.f32 %v136, %v145
      %v148 = vadd.f32 %v137, %v145
      %v149 = vadd.f32 %v138, %v145
      %v150 = vadd.f32 %v139, %v145
      %151 = vst [vmem:[#allocation2] sm:$0xff] %v147
      %152 = vst [vmem:[#allocation2 + $0x8] sm:$0xff] %v148
      %153 = vst [vmem:[#allocation2 + $0x10] sm:$0xff] %v149
      %154 = vst [vmem:[#allocation2 + $0x18] sm:$0xff] %v150
      %155 = vst [vmem:[#allocation4] sm:$0xff] 0.0
      %156 = vst [vmem:[#allocation4 + $0x8] sm:$0xff] 0.0
      %157 = vst [vmem:[#allocation4 + $0x10] sm:$0xff] 0.0
      %158 = vst [vmem:[#allocation4 + $0x18] sm:$0xff] 0.0
    $region53: #{tucker_forward.2} parent=1 // pred_fallthru
      _
    %v159 = vld [vmem:[#allocation2] sm:$0xff]
    %v160 = vld [vmem:[#allocation2 + $0x8] sm:$0xff]
    %v161 = vld [vmem:[#allocation2 + $0x10] sm:$0xff]
    %v162 = vld [vmem:[#allocation2 + $0x18] sm:$0xff]
    %v163 = vld [vmem:[%s1] sm:$0xff]
    %v164 = vld [vmem:[%s1 + $0x8] sm:$0xff]
    %v165 = vld [vmem:[%s1 + $0x10] sm:$0xff]
    %v166 = vld [vmem:[%s1 + $0x18] sm:$0xff]
    %168 = vset.pattern.permute.xlu0 0
    %169 = vperm.xlu0 %168, %v163
    %v170 = vpop.permute.xlu0 %169
    %173 = vset.pattern.permute.xlu0 0
    %174 = vperm.xlu0 %173, %v164
    %v175 = vpop.permute.xlu0 %174
    %178 = vset.pattern.permute.xlu0 0
    %179 = vperm.xlu0 %178, %v165
    %v180 = vpop.permute.xlu0 %179
    %183 = vset.pattern.permute.xlu0 0
    %184 = vperm.xlu0 %183, %v166
    %v185 = vpop.permute.xlu0 %184
    %v187 = vmul.f32 %v170, %v159
    %v188 = vmul.f32 %v175, %v160
    %v189 = vmul.f32 %v180, %v161
    %v190 = vmul.f32 %v185, %v162
    %191 = vst [vmem:[#allocation3] sm:$0xff] %v187
    %192 = vst [vmem:[#allocation3 + $0x100] sm:$0xff] %v188
    %193 = vst [vmem:[#allocation3 + $0x200] sm:$0xff] %v189
    %194 = vst [vmem:[#allocation3 + $0x300] sm:$0xff] %v190
    %195 = vset.pattern.permute.xlu0 1
    %196 = vperm.xlu0 %195, %v163
    %v197 = vpop.permute.xlu0 %196
    %199 = vset.pattern.permute.xlu0 1
    %200 = vperm.xlu0 %199, %v164
    %v201 = vpop.permute.xlu0 %200
    %203 = vset.pattern.permute.xlu0 1
    %204 = vperm.xlu0 %203, %v165
    %v205 = vpop.permute.xlu0 %204
    %207 = vset.pattern.permute.xlu0 1
    %208 = vperm.xlu0 %207, %v166
    %v209 = vpop.permute.xlu0 %208
    %v211 = vmul.f32 %v197, %v159
    %v212 = vmul.f32 %v201, %v160
    %v213 = vmul.f32 %v205, %v161
    %v214 = vmul.f32 %v209, %v162
    %215 = vst [vmem:[#allocation3 + $0x8] sm:$0xff] %v211
    %216 = vst [vmem:[#allocation3 + $0x108] sm:$0xff] %v212
    %217 = vst [vmem:[#allocation3 + $0x208] sm:$0xff] %v213
    %218 = vst [vmem:[#allocation3 + $0x308] sm:$0xff] %v214
    %219 = vset.pattern.permute.xlu0 2
    %220 = vperm.xlu0 %219, %v163
    %v221 = vpop.permute.xlu0 %220
    %223 = vset.pattern.permute.xlu0 2
    %224 = vperm.xlu0 %223, %v164
    %v225 = vpop.permute.xlu0 %224
    %227 = vset.pattern.permute.xlu0 2
    %228 = vperm.xlu0 %227, %v165
    %v229 = vpop.permute.xlu0 %228
    %231 = vset.pattern.permute.xlu0 2
    %232 = vperm.xlu0 %231, %v166
    %v233 = vpop.permute.xlu0 %232
    %v235 = vmul.f32 %v221, %v159
    %v236 = vmul.f32 %v225, %v160
    %v237 = vmul.f32 %v229, %v161
    %v238 = vmul.f32 %v233, %v162
    %239 = vst [vmem:[#allocation3 + $0x10] sm:$0xff] %v235
    %240 = vst [vmem:[#allocation3 + $0x110] sm:$0xff] %v236
    %241 = vst [vmem:[#allocation3 + $0x210] sm:$0xff] %v237
    %242 = vst [vmem:[#allocation3 + $0x310] sm:$0xff] %v238
    %243 = vset.pattern.permute.xlu0 3
    %244 = vperm.xlu0 %243, %v163
    %v245 = vpop.permute.xlu0 %244
    %247 = vset.pattern.permute.xlu0 3
    %248 = vperm.xlu0 %247, %v164
    %v249 = vpop.permute.xlu0 %248
    %251 = vset.pattern.permute.xlu0 3
    %252 = vperm.xlu0 %251, %v165
    %v253 = vpop.permute.xlu0 %252
    %255 = vset.pattern.permute.xlu0 3
    %256 = vperm.xlu0 %255, %v166
    %v257 = vpop.permute.xlu0 %256
    %v259 = vmul.f32 %v245, %v159
    %v260 = vmul.f32 %v249, %v160
    %v261 = vmul.f32 %v253, %v161
    %v262 = vmul.f32 %v257, %v162
    %263 = vst [vmem:[#allocation3 + $0x18] sm:$0xff] %v259
    %264 = vst [vmem:[#allocation3 + $0x118] sm:$0xff] %v260
    %265 = vst [vmem:[#allocation3 + $0x218] sm:$0xff] %v261
    %266 = vst [vmem:[#allocation3 + $0x318] sm:$0xff] %v262
    %267 = vset.pattern.permute.xlu0 4
    %268 = vperm.xlu0 %267, %v163
    %v269 = vpop.permute.xlu0 %268
    %271 = vset.pattern.permute.xlu0 4
    %272 = vperm.xlu0 %271, %v164
    %v273 = vpop.permute.xlu0 %272
    %275 = vset.pattern.permute.xlu0 4
    %276 = vperm.xlu0 %275, %v165
    %v277 = vpop.permute.xlu0 %276
    %279 = vset.pattern.permute.xlu0 4
    %280 = vperm.xlu0 %279, %v166
    %v281 = vpop.permute.xlu0 %280
    %v283 = vmul.f32 %v269, %v159
    %v284 = vmul.f32 %v273, %v160
    %v285 = vmul.f32 %v277, %v161
    %v286 = vmul.f32 %v281, %v162
    %287 = vst [vmem:[#allocation3 + $0x20] sm:$0xff] %v283
    %288 = vst [vmem:[#allocation3 + $0x120] sm:$0xff] %v284
    %289 = vst [vmem:[#allocation3 + $0x220] sm:$0xff] %v285
    %290 = vst [vmem:[#allocation3 + $0x320] sm:$0xff] %v286
    %291 = vset.pattern.permute.xlu0 5
    %292 = vperm.xlu0 %291, %v163
    %v293 = vpop.permute.xlu0 %292
    %295 = vset.pattern.permute.xlu0 5
    %296 = vperm.xlu0 %295, %v164
    %v297 = vpop.permute.xlu0 %296
    %299 = vset.pattern.permute.xlu0 5
    %300 = vperm.xlu0 %299, %v165
    %v301 = vpop.permute.xlu0 %300
    %303 = vset.pattern.permute.xlu0 5
    %304 = vperm.xlu0 %303, %v166
    %v305 = vpop.permute.xlu0 %304
    %v307 = vmul.f32 %v293, %v159
    %v308 = vmul.f32 %v297, %v160
    %v309 = vmul.f32 %v301, %v161
    %v310 = vmul.f32 %v305, %v162
    %311 = vst [vmem:[#allocation3 + $0x28] sm:$0xff] %v307
    %312 = vst [vmem:[#allocation3 + $0x128] sm:$0xff] %v308
    %313 = vst [vmem:[#allocation3 + $0x228] sm:$0xff] %v309
    %314 = vst [vmem:[#allocation3 + $0x328] sm:$0xff] %v310
    %315 = vset.pattern.permute.xlu0 6
    %316 = vperm.xlu0 %315, %v163
    %v317 = vpop.permute.xlu0 %316
    %319 = vset.pattern.permute.xlu0 6
    %320 = vperm.xlu0 %319, %v164
    %v321 = vpop.permute.xlu0 %320
    %323 = vset.pattern.permute.xlu0 6
    %324 = vperm.xlu0 %323, %v165
    %v325 = vpop.permute.xlu0 %324
    %327 = vset.pattern.permute.xlu0 6
    %328 = vperm.xlu0 %327, %v166
    %v329 = vpop.permute.xlu0 %328
    %v331 = vmul.f32 %v317, %v159
    %v332 = vmul.f32 %v321, %v160
    %v333 = vmul.f32 %v325, %v161
    %v334 = vmul.f32 %v329, %v162
    %335 = vst [vmem:[#allocation3 + $0x30] sm:$0xff] %v331
    %336 = vst [vmem:[#allocation3 + $0x130] sm:$0xff] %v332
    %337 = vst [vmem:[#allocation3 + $0x230] sm:$0xff] %v333
    %338 = vst [vmem:[#allocation3 + $0x330] sm:$0xff] %v334
    %339 = vset.pattern.permute.xlu0 7
    %340 = vperm.xlu0 %339, %v163
    %v341 = vpop.permute.xlu0 %340
    %343 = vset.pattern.permute.xlu0 7
    %344 = vperm.xlu0 %343, %v164
    %v345 = vpop.permute.xlu0 %344
    %347 = vset.pattern.permute.xlu0 7
    %348 = vperm.xlu0 %347, %v165
    %v349 = vpop.permute.xlu0 %348
    %351 = vset.pattern.permute.xlu0 7
    %352 = vperm.xlu0 %351, %v166
    %v353 = vpop.permute.xlu0 %352
    %v355 = vmul.f32 %v341, %v159
    %v356 = vmul.f32 %v345, %v160
    %v357 = vmul.f32 %v349, %v161
    %v358 = vmul.f32 %v353, %v162
    %359 = vst [vmem:[#allocation3 + $0x38] sm:$0xff] %v355
    %360 = vst [vmem:[#allocation3 + $0x138] sm:$0xff] %v356
    %361 = vst [vmem:[#allocation3 + $0x238] sm:$0xff] %v357
    %362 = vst [vmem:[#allocation3 + $0x338] sm:$0xff] %v358
    %363 = vset.pattern.permute.xlu0 8
    %364 = vperm.xlu0 %363, %v163
    %v365 = vpop.permute.xlu0 %364
    %367 = vset.pattern.permute.xlu0 8
    %368 = vperm.xlu0 %367, %v164
    %v369 = vpop.permute.xlu0 %368
    %371 = vset.pattern.permute.xlu0 8
    %372 = vperm.xlu0 %371, %v165
    %v373 = vpop.permute.xlu0 %372
    %375 = vset.pattern.permute.xlu0 8
    %376 = vperm.xlu0 %375, %v166
    %v377 = vpop.permute.xlu0 %376
    %v379 = vmul.f32 %v365, %v159
    %v380 = vmul.f32 %v369, %v160
    %v381 = vmul.f32 %v373, %v161
    %v382 = vmul.f32 %v377, %v162
    %383 = vst [vmem:[#allocation3 + $0x40] sm:$0xff] %v379
    %384 = vst [vmem:[#allocation3 + $0x140] sm:$0xff] %v380
    %385 = vst [vmem:[#allocation3 + $0x240] sm:$0xff] %v381
    %386 = vst [vmem:[#allocation3 + $0x340] sm:$0xff] %v382
    %387 = vset.pattern.permute.xlu0 9
    %388 = vperm.xlu0 %387, %v163
    %v389 = vpop.permute.xlu0 %388
    %391 = vset.pattern.permute.xlu0 9
    %392 = vperm.xlu0 %391, %v164
    %v393 = vpop.permute.xlu0 %392
    %395 = vset.pattern.permute.xlu0 9
    %396 = vperm.xlu0 %395, %v165
    %v397 = vpop.permute.xlu0 %396
    %399 = vset.pattern.permute.xlu0 9
    %400 = vperm.xlu0 %399, %v166
    %v401 = vpop.permute.xlu0 %400
    %v403 = vmul.f32 %v389, %v159
    %v404 = vmul.f32 %v393, %v160
    %v405 = vmul.f32 %v397, %v161
    %v406 = vmul.f32 %v401, %v162
    %407 = vst [vmem:[#allocation3 + $0x48] sm:$0xff] %v403
    %408 = vst [vmem:[#allocation3 + $0x148] sm:$0xff] %v404
    %409 = vst [vmem:[#allocation3 + $0x248] sm:$0xff] %v405
    %410 = vst [vmem:[#allocation3 + $0x348] sm:$0xff] %v406
    %411 = vset.pattern.permute.xlu0 10
    %412 = vperm.xlu0 %411, %v163
    %v413 = vpop.permute.xlu0 %412
    %415 = vset.pattern.permute.xlu0 10
    %416 = vperm.xlu0 %415, %v164
    %v417 = vpop.permute.xlu0 %416
    %419 = vset.pattern.permute.xlu0 10
    %420 = vperm.xlu0 %419, %v165
    %v421 = vpop.permute.xlu0 %420
    %423 = vset.pattern.permute.xlu0 10
    %424 = vperm.xlu0 %423, %v166
    %v425 = vpop.permute.xlu0 %424
    %v427 = vmul.f32 %v413, %v159
    %v428 = vmul.f32 %v417, %v160
    %v429 = vmul.f32 %v421, %v161
    %v430 = vmul.f32 %v425, %v162
    %431 = vst [vmem:[#allocation3 + $0x50] sm:$0xff] %v427
    %432 = vst [vmem:[#allocation3 + $0x150] sm:$0xff] %v428
    %433 = vst [vmem:[#allocation3 + $0x250] sm:$0xff] %v429
    %434 = vst [vmem:[#allocation3 + $0x350] sm:$0xff] %v430
    %435 = vset.pattern.permute.xlu0 11
    %436 = vperm.xlu0 %435, %v163
    %v437 = vpop.permute.xlu0 %436
    %439 = vset.pattern.permute.xlu0 11
    %440 = vperm.xlu0 %439, %v164
    %v441 = vpop.permute.xlu0 %440
    %443 = vset.pattern.permute.xlu0 11
    %444 = vperm.xlu0 %443, %v165
    %v445 = vpop.permute.xlu0 %444
    %447 = vset.pattern.permute.xlu0 11
    %448 = vperm.xlu0 %447, %v166
    %v449 = vpop.permute.xlu0 %448
    %v451 = vmul.f32 %v437, %v159
    %v452 = vmul.f32 %v441, %v160
    %v453 = vmul.f32 %v445, %v161
    %v454 = vmul.f32 %v449, %v162
    %455 = vst [vmem:[#allocation3 + $0x58] sm:$0xff] %v451
    %456 = vst [vmem:[#allocation3 + $0x158] sm:$0xff] %v452
    %457 = vst [vmem:[#allocation3 + $0x258] sm:$0xff] %v453
    %458 = vst [vmem:[#allocation3 + $0x358] sm:$0xff] %v454
    %459 = vset.pattern.permute.xlu0 12
    %460 = vperm.xlu0 %459, %v163
    %v461 = vpop.permute.xlu0 %460
    %463 = vset.pattern.permute.xlu0 12
    %464 = vperm.xlu0 %463, %v164
    %v465 = vpop.permute.xlu0 %464
    %467 = vset.pattern.permute.xlu0 12
    %468 = vperm.xlu0 %467, %v165
    %v469 = vpop.permute.xlu0 %468
    %471 = vset.pattern.permute.xlu0 12
    %472 = vperm.xlu0 %471, %v166
    %v473 = vpop.permute.xlu0 %472
    %v475 = vmul.f32 %v461, %v159
    %v476 = vmul.f32 %v465, %v160
    %v477 = vmul.f32 %v469, %v161
    %v478 = vmul.f32 %v473, %v162
    %479 = vst [vmem:[#allocation3 + $0x60] sm:$0xff] %v475
    %480 = vst [vmem:[#allocation3 + $0x160] sm:$0xff] %v476
    %481 = vst [vmem:[#allocation3 + $0x260] sm:$0xff] %v477
    %482 = vst [vmem:[#allocation3 + $0x360] sm:$0xff] %v478
    %483 = vset.pattern.permute.xlu0 13
    %484 = vperm.xlu0 %483, %v163
    %v485 = vpop.permute.xlu0 %484
    %487 = vset.pattern.permute.xlu0 13
    %488 = vperm.xlu0 %487, %v164
    %v489 = vpop.permute.xlu0 %488
    %491 = vset.pattern.permute.xlu0 13
    %492 = vperm.xlu0 %491, %v165
    %v493 = vpop.permute.xlu0 %492
    %495 = vset.pattern.permute.xlu0 13
    %496 = vperm.xlu0 %495, %v166
    %v497 = vpop.permute.xlu0 %496
    %v499 = vmul.f32 %v485, %v159
    %v500 = vmul.f32 %v489, %v160
    %v501 = vmul.f32 %v493, %v161
    %v502 = vmul.f32 %v497, %v162
    %503 = vst [vmem:[#allocation3 + $0x68] sm:$0xff] %v499
    %504 = vst [vmem:[#allocation3 + $0x168] sm:$0xff] %v500
    %505 = vst [vmem:[#allocation3 + $0x268] sm:$0xff] %v501
    %506 = vst [vmem:[#allocation3 + $0x368] sm:$0xff] %v502
    %507 = vset.pattern.permute.xlu0 14
    %508 = vperm.xlu0 %507, %v163
    %v509 = vpop.permute.xlu0 %508
    %511 = vset.pattern.permute.xlu0 14
    %512 = vperm.xlu0 %511, %v164
    %v513 = vpop.permute.xlu0 %512
    %515 = vset.pattern.permute.xlu0 14
    %516 = vperm.xlu0 %515, %v165
    %v517 = vpop.permute.xlu0 %516
    %519 = vset.pattern.permute.xlu0 14
    %520 = vperm.xlu0 %519, %v166
    %v521 = vpop.permute.xlu0 %520
    %v523 = vmul.f32 %v509, %v159
    %v524 = vmul.f32 %v513, %v160
    %v525 = vmul.f32 %v517, %v161
    %v526 = vmul.f32 %v521, %v162
    %527 = vst [vmem:[#allocation3 + $0x70] sm:$0xff] %v523
    %528 = vst [vmem:[#allocation3 + $0x170] sm:$0xff] %v524
    %529 = vst [vmem:[#allocation3 + $0x270] sm:$0xff] %v525
    %530 = vst [vmem:[#allocation3 + $0x370] sm:$0xff] %v526
    %531 = vset.pattern.permute.xlu0 15
    %532 = vperm.xlu0 %531, %v163
    %v533 = vpop.permute.xlu0 %532
    %535 = vset.pattern.permute.xlu0 15
    %536 = vperm.xlu0 %535, %v164
    %v537 = vpop.permute.xlu0 %536
    %539 = vset.pattern.permute.xlu0 15
    %540 = vperm.xlu0 %539, %v165
    %v541 = vpop.permute.xlu0 %540
    %543 = vset.pattern.permute.xlu0 15
    %544 = vperm.xlu0 %543, %v166
    %v545 = vpop.permute.xlu0 %544
    %v547 = vmul.f32 %v533, %v159
    %v548 = vmul.f32 %v537, %v160
    %v549 = vmul.f32 %v541, %v161
    %v550 = vmul.f32 %v545, %v162
    %551 = vst [vmem:[#allocation3 + $0x78] sm:$0xff] %v547
    %552 = vst [vmem:[#allocation3 + $0x178] sm:$0xff] %v548
    %553 = vst [vmem:[#allocation3 + $0x278] sm:$0xff] %v549
    %554 = vst [vmem:[#allocation3 + $0x378] sm:$0xff] %v550
    %555 = vset.pattern.permute.xlu0 16
    %556 = vperm.xlu0 %555, %v163
    %v557 = vpop.permute.xlu0 %556
    %559 = vset.pattern.permute.xlu0 16
    %560 = vperm.xlu0 %559, %v164
    %v561 = vpop.permute.xlu0 %560
    %563 = vset.pattern.permute.xlu0 16
    %564 = vperm.xlu0 %563, %v165
    %v565 = vpop.permute.xlu0 %564
    %567 = vset.pattern.permute.xlu0 16
    %568 = vperm.xlu0 %567, %v166
    %v569 = vpop.permute.xlu0 %568
    %v571 = vmul.f32 %v557, %v159
    %v572 = vmul.f32 %v561, %v160
    %v573 = vmul.f32 %v565, %v161
    %v574 = vmul.f32 %v569, %v162
    %575 = vst [vmem:[#allocation3 + $0x80] sm:$0xff] %v571
    %576 = vst [vmem:[#allocation3 + $0x180] sm:$0xff] %v572
    %577 = vst [vmem:[#allocation3 + $0x280] sm:$0xff] %v573
    %578 = vst [vmem:[#allocation3 + $0x380] sm:$0xff] %v574
    %579 = vset.pattern.permute.xlu0 17
    %580 = vperm.xlu0 %579, %v163
    %v581 = vpop.permute.xlu0 %580
    %583 = vset.pattern.permute.xlu0 17
    %584 = vperm.xlu0 %583, %v164
    %v585 = vpop.permute.xlu0 %584
    %587 = vset.pattern.permute.xlu0 17
    %588 = vperm.xlu0 %587, %v165
    %v589 = vpop.permute.xlu0 %588
    %591 = vset.pattern.permute.xlu0 17
    %592 = vperm.xlu0 %591, %v166
    %v593 = vpop.permute.xlu0 %592
    %v595 = vmul.f32 %v581, %v159
    %v596 = vmul.f32 %v585, %v160
    %v597 = vmul.f32 %v589, %v161
    %v598 = vmul.f32 %v593, %v162
    %599 = vst [vmem:[#allocation3 + $0x88] sm:$0xff] %v595
    %600 = vst [vmem:[#allocation3 + $0x188] sm:$0xff] %v596
    %601 = vst [vmem:[#allocation3 + $0x288] sm:$0xff] %v597
    %602 = vst [vmem:[#allocation3 + $0x388] sm:$0xff] %v598
    %603 = vset.pattern.permute.xlu0 18
    %604 = vperm.xlu0 %603, %v163
    %v605 = vpop.permute.xlu0 %604
    %607 = vset.pattern.permute.xlu0 18
    %608 = vperm.xlu0 %607, %v164
    %v609 = vpop.permute.xlu0 %608
    %611 = vset.pattern.permute.xlu0 18
    %612 = vperm.xlu0 %611, %v165
    %v613 = vpop.permute.xlu0 %612
    %615 = vset.pattern.permute.xlu0 18
    %616 = vperm.xlu0 %615, %v166
    %v617 = vpop.permute.xlu0 %616
    %v619 = vmul.f32 %v605, %v159
    %v620 = vmul.f32 %v609, %v160
    %v621 = vmul.f32 %v613, %v161
    %v622 = vmul.f32 %v617, %v162
    %623 = vst [vmem:[#allocation3 + $0x90] sm:$0xff] %v619
    %624 = vst [vmem:[#allocation3 + $0x190] sm:$0xff] %v620
    %625 = vst [vmem:[#allocation3 + $0x290] sm:$0xff] %v621
    %626 = vst [vmem:[#allocation3 + $0x390] sm:$0xff] %v622
    %627 = vset.pattern.permute.xlu0 19
    %628 = vperm.xlu0 %627, %v163
    %v629 = vpop.permute.xlu0 %628
    %631 = vset.pattern.permute.xlu0 19
    %632 = vperm.xlu0 %631, %v164
    %v633 = vpop.permute.xlu0 %632
    %635 = vset.pattern.permute.xlu0 19
    %636 = vperm.xlu0 %635, %v165
    %v637 = vpop.permute.xlu0 %636
    %639 = vset.pattern.permute.xlu0 19
    %640 = vperm.xlu0 %639, %v166
    %v641 = vpop.permute.xlu0 %640
    %v643 = vmul.f32 %v629, %v159
    %v644 = vmul.f32 %v633, %v160
    %v645 = vmul.f32 %v637, %v161
    %v646 = vmul.f32 %v641, %v162
    %647 = vst [vmem:[#allocation3 + $0x98] sm:$0xff] %v643
    %648 = vst [vmem:[#allocation3 + $0x198] sm:$0xff] %v644
    %649 = vst [vmem:[#allocation3 + $0x298] sm:$0xff] %v645
    %650 = vst [vmem:[#allocation3 + $0x398] sm:$0xff] %v646
    %651 = vset.pattern.permute.xlu0 20
    %652 = vperm.xlu0 %651, %v163
    %v653 = vpop.permute.xlu0 %652
    %655 = vset.pattern.permute.xlu0 20
    %656 = vperm.xlu0 %655, %v164
    %v657 = vpop.permute.xlu0 %656
    %659 = vset.pattern.permute.xlu0 20
    %660 = vperm.xlu0 %659, %v165
    %v661 = vpop.permute.xlu0 %660
    %663 = vset.pattern.permute.xlu0 20
    %664 = vperm.xlu0 %663, %v166
    %v665 = vpop.permute.xlu0 %664
    %v667 = vmul.f32 %v653, %v159
    %v668 = vmul.f32 %v657, %v160
    %v669 = vmul.f32 %v661, %v161
    %v670 = vmul.f32 %v665, %v162
    %671 = vst [vmem:[#allocation3 + $0xa0] sm:$0xff] %v667
    %672 = vst [vmem:[#allocation3 + $0x1a0] sm:$0xff] %v668
    %673 = vst [vmem:[#allocation3 + $0x2a0] sm:$0xff] %v669
    %674 = vst [vmem:[#allocation3 + $0x3a0] sm:$0xff] %v670
    %675 = vset.pattern.permute.xlu0 21
    %676 = vperm.xlu0 %675, %v163
    %v677 = vpop.permute.xlu0 %676
    %679 = vset.pattern.permute.xlu0 21
    %680 = vperm.xlu0 %679, %v164
    %v681 = vpop.permute.xlu0 %680
    %683 = vset.pattern.permute.xlu0 21
    %684 = vperm.xlu0 %683, %v165
    %v685 = vpop.permute.xlu0 %684
    %687 = vset.pattern.permute.xlu0 21
    %688 = vperm.xlu0 %687, %v166
    %v689 = vpop.permute.xlu0 %688
    %v691 = vmul.f32 %v677, %v159
    %v692 = vmul.f32 %v681, %v160
    %v693 = vmul.f32 %v685, %v161
    %v694 = vmul.f32 %v689, %v162
    %695 = vst [vmem:[#allocation3 + $0xa8] sm:$0xff] %v691
    %696 = vst [vmem:[#allocation3 + $0x1a8] sm:$0xff] %v692
    %697 = vst [vmem:[#allocation3 + $0x2a8] sm:$0xff] %v693
    %698 = vst [vmem:[#allocation3 + $0x3a8] sm:$0xff] %v694
    %699 = vset.pattern.permute.xlu0 22
    %700 = vperm.xlu0 %699, %v163
    %v701 = vpop.permute.xlu0 %700
    %703 = vset.pattern.permute.xlu0 22
    %704 = vperm.xlu0 %703, %v164
    %v705 = vpop.permute.xlu0 %704
    %707 = vset.pattern.permute.xlu0 22
    %708 = vperm.xlu0 %707, %v165
    %v709 = vpop.permute.xlu0 %708
    %711 = vset.pattern.permute.xlu0 22
    %712 = vperm.xlu0 %711, %v166
    %v713 = vpop.permute.xlu0 %712
    %v715 = vmul.f32 %v701, %v159
    %v716 = vmul.f32 %v705, %v160
    %v717 = vmul.f32 %v709, %v161
    %v718 = vmul.f32 %v713, %v162
    %719 = vst [vmem:[#allocation3 + $0xb0] sm:$0xff] %v715
    %720 = vst [vmem:[#allocation3 + $0x1b0] sm:$0xff] %v716
    %721 = vst [vmem:[#allocation3 + $0x2b0] sm:$0xff] %v717
    %722 = vst [vmem:[#allocation3 + $0x3b0] sm:$0xff] %v718
    %723 = vset.pattern.permute.xlu0 23
    %724 = vperm.xlu0 %723, %v163
    %v725 = vpop.permute.xlu0 %724
    %727 = vset.pattern.permute.xlu0 23
    %728 = vperm.xlu0 %727, %v164
    %v729 = vpop.permute.xlu0 %728
    %731 = vset.pattern.permute.xlu0 23
    %732 = vperm.xlu0 %731, %v165
    %v733 = vpop.permute.xlu0 %732
    %735 = vset.pattern.permute.xlu0 23
    %736 = vperm.xlu0 %735, %v166
    %v737 = vpop.permute.xlu0 %736
    %v739 = vmul.f32 %v725, %v159
    %v740 = vmul.f32 %v729, %v160
    %v741 = vmul.f32 %v733, %v161
    %v742 = vmul.f32 %v737, %v162
    %743 = vst [vmem:[#allocation3 + $0xb8] sm:$0xff] %v739
    %744 = vst [vmem:[#allocation3 + $0x1b8] sm:$0xff] %v740
    %745 = vst [vmem:[#allocation3 + $0x2b8] sm:$0xff] %v741
    %746 = vst [vmem:[#allocation3 + $0x3b8] sm:$0xff] %v742
    %747 = vset.pattern.permute.xlu0 24
    %748 = vperm.xlu0 %747, %v163
    %v749 = vpop.permute.xlu0 %748
    %751 = vset.pattern.permute.xlu0 24
    %752 = vperm.xlu0 %751, %v164
    %v753 = vpop.permute.xlu0 %752
    %755 = vset.pattern.permute.xlu0 24
    %756 = vperm.xlu0 %755, %v165
    %v757 = vpop.permute.xlu0 %756
    %759 = vset.pattern.permute.xlu0 24
    %760 = vperm.xlu0 %759, %v166
    %v761 = vpop.permute.xlu0 %760
    %v763 = vmul.f32 %v749, %v159
    %v764 = vmul.f32 %v753, %v160
    %v765 = vmul.f32 %v757, %v161
    %v766 = vmul.f32 %v761, %v162
    %767 = vst [vmem:[#allocation3 + $0xc0] sm:$0xff] %v763
    %768 = vst [vmem:[#allocation3 + $0x1c0] sm:$0xff] %v764
    %769 = vst [vmem:[#allocation3 + $0x2c0] sm:$0xff] %v765
    %770 = vst [vmem:[#allocation3 + $0x3c0] sm:$0xff] %v766
    %771 = vset.pattern.permute.xlu0 25
    %772 = vperm.xlu0 %771, %v163
    %v773 = vpop.permute.xlu0 %772
    %775 = vset.pattern.permute.xlu0 25
    %776 = vperm.xlu0 %775, %v164
    %v777 = vpop.permute.xlu0 %776
    %779 = vset.pattern.permute.xlu0 25
    %780 = vperm.xlu0 %779, %v165
    %v781 = vpop.permute.xlu0 %780
    %783 = vset.pattern.permute.xlu0 25
    %784 = vperm.xlu0 %783, %v166
    %v785 = vpop.permute.xlu0 %784
    %v787 = vmul.f32 %v773, %v159
    %v788 = vmul.f32 %v777, %v160
    %v789 = vmul.f32 %v781, %v161
    %v790 = vmul.f32 %v785, %v162
    %791 = vst [vmem:[#allocation3 + $0xc8] sm:$0xff] %v787
    %792 = vst [vmem:[#allocation3 + $0x1c8] sm:$0xff] %v788
    %793 = vst [vmem:[#allocation3 + $0x2c8] sm:$0xff] %v789
    %794 = vst [vmem:[#allocation3 + $0x3c8] sm:$0xff] %v790
    %795 = vset.pattern.permute.xlu0 26
    %796 = vperm.xlu0 %795, %v163
    %v797 = vpop.permute.xlu0 %796
    %799 = vset.pattern.permute.xlu0 26
    %800 = vperm.xlu0 %799, %v164
    %v801 = vpop.permute.xlu0 %800
    %803 = vset.pattern.permute.xlu0 26
    %804 = vperm.xlu0 %803, %v165
    %v805 = vpop.permute.xlu0 %804
    %807 = vset.pattern.permute.xlu0 26
    %808 = vperm.xlu0 %807, %v166
    %v809 = vpop.permute.xlu0 %808
    %v811 = vmul.f32 %v797, %v159
    %v812 = vmul.f32 %v801, %v160
    %v813 = vmul.f32 %v805, %v161
    %v814 = vmul.f32 %v809, %v162
    %815 = vst [vmem:[#allocation3 + $0xd0] sm:$0xff] %v811
    %816 = vst [vmem:[#allocation3 + $0x1d0] sm:$0xff] %v812
    %817 = vst [vmem:[#allocation3 + $0x2d0] sm:$0xff] %v813
    %818 = vst [vmem:[#allocation3 + $0x3d0] sm:$0xff] %v814
    %819 = vset.pattern.permute.xlu0 27
    %820 = vperm.xlu0 %819, %v163
    %v821 = vpop.permute.xlu0 %820
    %823 = vset.pattern.permute.xlu0 27
    %824 = vperm.xlu0 %823, %v164
    %v825 = vpop.permute.xlu0 %824
    %827 = vset.pattern.permute.xlu0 27
    %828 = vperm.xlu0 %827, %v165
    %v829 = vpop.permute.xlu0 %828
    %831 = vset.pattern.permute.xlu0 27
    %832 = vperm.xlu0 %831, %v166
    %v833 = vpop.permute.xlu0 %832
    %v835 = vmul.f32 %v821, %v159
    %v836 = vmul.f32 %v825, %v160
    %v837 = vmul.f32 %v829, %v161
    %v838 = vmul.f32 %v833, %v162
    %839 = vst [vmem:[#allocation3 + $0xd8] sm:$0xff] %v835
    %840 = vst [vmem:[#allocation3 + $0x1d8] sm:$0xff] %v836
    %841 = vst [vmem:[#allocation3 + $0x2d8] sm:$0xff] %v837
    %842 = vst [vmem:[#allocation3 + $0x3d8] sm:$0xff] %v838
    %843 = vset.pattern.permute.xlu0 28
    %844 = vperm.xlu0 %843, %v163
    %v845 = vpop.permute.xlu0 %844
    %847 = vset.pattern.permute.xlu0 28
    %848 = vperm.xlu0 %847, %v164
    %v849 = vpop.permute.xlu0 %848
    %851 = vset.pattern.permute.xlu0 28
    %852 = vperm.xlu0 %851, %v165
    %v853 = vpop.permute.xlu0 %852
    %855 = vset.pattern.permute.xlu0 28
    %856 = vperm.xlu0 %855, %v166
    %v857 = vpop.permute.xlu0 %856
    %v859 = vmul.f32 %v845, %v159
    %v860 = vmul.f32 %v849, %v160
    %v861 = vmul.f32 %v853, %v161
    %v862 = vmul.f32 %v857, %v162
    %863 = vst [vmem:[#allocation3 + $0xe0] sm:$0xff] %v859
    %864 = vst [vmem:[#allocation3 + $0x1e0] sm:$0xff] %v860
    %865 = vst [vmem:[#allocation3 + $0x2e0] sm:$0xff] %v861
    %866 = vst [vmem:[#allocation3 + $0x3e0] sm:$0xff] %v862
    %867 = vset.pattern.permute.xlu0 29
    %868 = vperm.xlu0 %867, %v163
    %v869 = vpop.permute.xlu0 %868
    %871 = vset.pattern.permute.xlu0 29
    %872 = vperm.xlu0 %871, %v164
    %v873 = vpop.permute.xlu0 %872
    %875 = vset.pattern.permute.xlu0 29
    %876 = vperm.xlu0 %875, %v165
    %v877 = vpop.permute.xlu0 %876
    %879 = vset.pattern.permute.xlu0 29
    %880 = vperm.xlu0 %879, %v166
    %v881 = vpop.permute.xlu0 %880
    %v883 = vmul.f32 %v869, %v159
    %v884 = vmul.f32 %v873, %v160
    %v885 = vmul.f32 %v877, %v161
    %v886 = vmul.f32 %v881, %v162
    %887 = vst [vmem:[#allocation3 + $0xe8] sm:$0xff] %v883
    %888 = vst [vmem:[#allocation3 + $0x1e8] sm:$0xff] %v884
    %889 = vst [vmem:[#allocation3 + $0x2e8] sm:$0xff] %v885
    %890 = vst [vmem:[#allocation3 + $0x3e8] sm:$0xff] %v886
    %891 = vset.pattern.permute.xlu0 30
    %892 = vperm.xlu0 %891, %v163
    %v893 = vpop.permute.xlu0 %892
    %895 = vset.pattern.permute.xlu0 30
    %896 = vperm.xlu0 %895, %v164
    %v897 = vpop.permute.xlu0 %896
    %899 = vset.pattern.permute.xlu0 30
    %900 = vperm.xlu0 %899, %v165
    %v901 = vpop.permute.xlu0 %900
    %903 = vset.pattern.permute.xlu0 30
    %904 = vperm.xlu0 %903, %v166
    %v905 = vpop.permute.xlu0 %904
    %v907 = vmul.f32 %v893, %v159
    %v908 = vmul.f32 %v897, %v160
    %v909 = vmul.f32 %v901, %v161
    %v910 = vmul.f32 %v905, %v162
    %911 = vst [vmem:[#allocation3 + $0xf0] sm:$0xff] %v907
    %912 = vst [vmem:[#allocation3 + $0x1f0] sm:$0xff] %v908
    %913 = vst [vmem:[#allocation3 + $0x2f0] sm:$0xff] %v909
    %914 = vst [vmem:[#allocation3 + $0x3f0] sm:$0xff] %v910
    %915 = vset.pattern.permute.xlu0 31
    %916 = vperm.xlu0 %915, %v163
    %v917 = vpop.permute.xlu0 %916
    %919 = vset.pattern.permute.xlu0 31
    %920 = vperm.xlu0 %919, %v164
    %v921 = vpop.permute.xlu0 %920
    %923 = vset.pattern.permute.xlu0 31
    %924 = vperm.xlu0 %923, %v165
    %v925 = vpop.permute.xlu0 %924
    %927 = vset.pattern.permute.xlu0 31
    %928 = vperm.xlu0 %927, %v166
    %v929 = vpop.permute.xlu0 %928
    %v931 = vmul.f32 %v917, %v159
    %v932 = vmul.f32 %v921, %v160
    %v933 = vmul.f32 %v925, %v161
    %v934 = vmul.f32 %v929, %v162
    %935 = vst [vmem:[#allocation3 + $0xf8] sm:$0xff] %v931
    %936 = vst [vmem:[#allocation3 + $0x1f8] sm:$0xff] %v932
    %937 = vst [vmem:[#allocation3 + $0x2f8] sm:$0xff] %v933
    %938 = vst [vmem:[#allocation3 + $0x3f8] sm:$0xff] %v934
    %v939 = vld [vmem:[#allocation4] sm:$0xff]
    %v940 = vld [vmem:[#allocation4 + $0x8] sm:$0xff]
    %v941 = vld [vmem:[#allocation4 + $0x10] sm:$0xff]
    %v942 = vld [vmem:[#allocation4 + $0x18] sm:$0xff]
    %v943 = vld [vmem:[#allocation3] sm:$0xff]
    %v944 = vld [vmem:[#allocation3 + $0x8] sm:$0xff]
    %v945 = vld [vmem:[#allocation3 + $0x10] sm:$0xff]
    %v946 = vld [vmem:[#allocation3 + $0x18] sm:$0xff]
    %v947 = vld [vmem:[#allocation3 + $0x20] sm:$0xff]
    %v948 = vld [vmem:[#allocation3 + $0x28] sm:$0xff]
    %v949 = vld [vmem:[#allocation3 + $0x30] sm:$0xff]
    %v950 = vld [vmem:[#allocation3 + $0x38] sm:$0xff]
    %v951 = vld [vmem:[#allocation3 + $0x40] sm:$0xff]
    %v952 = vld [vmem:[#allocation3 + $0x48] sm:$0xff]
    %v953 = vld [vmem:[#allocation3 + $0x50] sm:$0xff]
    %v954 = vld [vmem:[#allocation3 + $0x58] sm:$0xff]
    %v955 = vld [vmem:[#allocation3 + $0x60] sm:$0xff]
    %v956 = vld [vmem:[#allocation3 + $0x68] sm:$0xff]
    %v957 = vld [vmem:[#allocation3 + $0x70] sm:$0xff]
    %v958 = vld [vmem:[#allocation3 + $0x78] sm:$0xff]
    %v959 = vld [vmem:[#allocation3 + $0x80] sm:$0xff]
    %v960 = vld [vmem:[#allocation3 + $0x88] sm:$0xff]
    %v961 = vld [vmem:[#allocation3 + $0x90] sm:$0xff]
    %v962 = vld [vmem:[#allocation3 + $0x98] sm:$0xff]
    %v963 = vld [vmem:[#allocation3 + $0xa0] sm:$0xff]
    %v964 = vld [vmem:[#allocation3 + $0xa8] sm:$0xff]
    %v965 = vld [vmem:[#allocation3 + $0xb0] sm:$0xff]
    %v966 = vld [vmem:[#allocation3 + $0xb8] sm:$0xff]
    %v967 = vld [vmem:[#allocation3 + $0xc0] sm:$0xff]
    %v968 = vld [vmem:[#allocation3 + $0xc8] sm:$0xff]
    %v969 = vld [vmem:[#allocation3 + $0xd0] sm:$0xff]
    %v970 = vld [vmem:[#allocation3 + $0xd8] sm:$0xff]
    %v971 = vld [vmem:[#allocation3 + $0xe0] sm:$0xff]
    %v972 = vld [vmem:[#allocation3 + $0xe8] sm:$0xff]
    %v973 = vld [vmem:[#allocation3 + $0xf0] sm:$0xff]
    %v974 = vld [vmem:[#allocation3 + $0xf8] sm:$0xff]
    %v975 = vld [vmem:[#allocation3 + $0x100] sm:$0xff]
    %v976 = vld [vmem:[#allocation3 + $0x108] sm:$0xff]
    %v977 = vld [vmem:[#allocation3 + $0x110] sm:$0xff]
    %v978 = vld [vmem:[#allocation3 + $0x118] sm:$0xff]
    %v979 = vld [vmem:[#allocation3 + $0x120] sm:$0xff]
    %v980 = vld [vmem:[#allocation3 + $0x128] sm:$0xff]
    %v981 = vld [vmem:[#allocation3 + $0x130] sm:$0xff]
    %v982 = vld [vmem:[#allocation3 + $0x138] sm:$0xff]
    %v983 = vld [vmem:[#allocation3 + $0x140] sm:$0xff]
    %v984 = vld [vmem:[#allocation3 + $0x148] sm:$0xff]
    %v985 = vld [vmem:[#allocation3 + $0x150] sm:$0xff]
    %v986 = vld [vmem:[#allocation3 + $0x158] sm:$0xff]
    %v987 = vld [vmem:[#allocation3 + $0x160] sm:$0xff]
    %v988 = vld [vmem:[#allocation3 + $0x168] sm:$0xff]
    %v989 = vld [vmem:[#allocation3 + $0x170] sm:$0xff]
    %v990 = vld [vmem:[#allocation3 + $0x178] sm:$0xff]
    %v991 = vld [vmem:[#allocation3 + $0x180] sm:$0xff]
    %v992 = vld [vmem:[#allocation3 + $0x188] sm:$0xff]
    %v993 = vld [vmem:[#allocation3 + $0x190] sm:$0xff]
    %v994 = vld [vmem:[#allocation3 + $0x198] sm:$0xff]
    %v995 = vld [vmem:[#allocation3 + $0x1a0] sm:$0xff]
    %v996 = vld [vmem:[#allocation3 + $0x1a8] sm:$0xff]
    %v997 = vld [vmem:[#allocation3 + $0x1b0] sm:$0xff]
    %v998 = vld [vmem:[#allocation3 + $0x1b8] sm:$0xff]
    %v999 = vld [vmem:[#allocation3 + $0x1c0] sm:$0xff]
    %v1000 = vld [vmem:[#allocation3 + $0x1c8] sm:$0xff]
    %v1001 = vld [vmem:[#allocation3 + $0x1d0] sm:$0xff]
    %v1002 = vld [vmem:[#allocation3 + $0x1d8] sm:$0xff]
    %v1003 = vld [vmem:[#allocation3 + $0x1e0] sm:$0xff]
    %v1004 = vld [vmem:[#allocation3 + $0x1e8] sm:$0xff]
    %v1005 = vld [vmem:[#allocation3 + $0x1f0] sm:$0xff]
    %v1006 = vld [vmem:[#allocation3 + $0x1f8] sm:$0xff]
    %v1007 = vld [vmem:[#allocation3 + $0x200] sm:$0xff]
    %v1008 = vld [vmem:[#allocation3 + $0x208] sm:$0xff]
    %v1009 = vld [vmem:[#allocation3 + $0x210] sm:$0xff]
    %v1010 = vld [vmem:[#allocation3 + $0x218] sm:$0xff]
    %v1011 = vld [vmem:[#allocation3 + $0x220] sm:$0xff]
    %v1012 = vld [vmem:[#allocation3 + $0x228] sm:$0xff]
    %v1013 = vld [vmem:[#allocation3 + $0x230] sm:$0xff]
    %v1014 = vld [vmem:[#allocation3 + $0x238] sm:$0xff]
    %v1015 = vld [vmem:[#allocation3 + $0x240] sm:$0xff]
    %v1016 = vld [vmem:[#allocation3 + $0x248] sm:$0xff]
    %v1017 = vld [vmem:[#allocation3 + $0x250] sm:$0xff]
    %v1018 = vld [vmem:[#allocation3 + $0x258] sm:$0xff]
    %v1019 = vld [vmem:[#allocation3 + $0x260] sm:$0xff]
    %v1020 = vld [vmem:[#allocation3 + $0x268] sm:$0xff]
    %v1021 = vld [vmem:[#allocation3 + $0x270] sm:$0xff]
    %v1022 = vld [vmem:[#allocation3 + $0x278] sm:$0xff]
    %v1023 = vld [vmem:[#allocation3 + $0x280] sm:$0xff]
    %v1024 = vld [vmem:[#allocation3 + $0x288] sm:$0xff]
    %v1025 = vld [vmem:[#allocation3 + $0x290] sm:$0xff]
    %v1026 = vld [vmem:[#allocation3 + $0x298] sm:$0xff]
    %v1027 = vld [vmem:[#allocation3 + $0x2a0] sm:$0xff]
    %v1028 = vld [vmem:[#allocation3 + $0x2a8] sm:$0xff]
    %v1029 = vld [vmem:[#allocation3 + $0x2b0] sm:$0xff]
    %v1030 = vld [vmem:[#allocation3 + $0x2b8] sm:$0xff]
    %v1031 = vld [vmem:[#allocation3 + $0x2c0] sm:$0xff]
    %v1032 = vld [vmem:[#allocation3 + $0x2c8] sm:$0xff]
    %v1033 = vld [vmem:[#allocation3 + $0x2d0] sm:$0xff]
    %v1034 = vld [vmem:[#allocation3 + $0x2d8] sm:$0xff]
    %v1035 = vld [vmem:[#allocation3 + $0x2e0] sm:$0xff]
    %v1036 = vld [vmem:[#allocation3 + $0x2e8] sm:$0xff]
    %v1037 = vld [vmem:[#allocation3 + $0x2f0] sm:$0xff]
    %v1038 = vld [vmem:[#allocation3 + $0x2f8] sm:$0xff]
    %v1039 = vld [vmem:[#allocation3 + $0x300] sm:$0xff]
    %v1040 = vld [vmem:[#allocation3 + $0x308] sm:$0xff]
    %v1041 = vld [vmem:[#allocation3 + $0x310] sm:$0xff]
    %v1042 = vld [vmem:[#allocation3 + $0x318] sm:$0xff]
    %v1043 = vld [vmem:[#allocation3 + $0x320] sm:$0xff]
    %v1044 = vld [vmem:[#allocation3 + $0x328] sm:$0xff]
    %v1045 = vld [vmem:[#allocation3 + $0x330] sm:$0xff]
    %v1046 = vld [vmem:[#allocation3 + $0x338] sm:$0xff]
    %v1047 = vld [vmem:[#allocation3 + $0x340] sm:$0xff]
    %v1048 = vld [vmem:[#allocation3 + $0x348] sm:$0xff]
    %v1049 = vld [vmem:[#allocation3 + $0x350] sm:$0xff]
    %v1050 = vld [vmem:[#allocation3 + $0x358] sm:$0xff]
    %v1051 = vld [vmem:[#allocation3 + $0x360] sm:$0xff]
    %v1052 = vld [vmem:[#allocation3 + $0x368] sm:$0xff]
    %v1053 = vld [vmem:[#allocation3 + $0x370] sm:$0xff]
    %v1054 = vld [vmem:[#allocation3 + $0x378] sm:$0xff]
    %v1055 = vld [vmem:[#allocation3 + $0x380] sm:$0xff]
    %v1056 = vld [vmem:[#allocation3 + $0x388] sm:$0xff]
    %v1057 = vld [vmem:[#allocation3 + $0x390] sm:$0xff]
    %v1058 = vld [vmem:[#allocation3 + $0x398] sm:$0xff]
    %v1059 = vld [vmem:[#allocation3 + $0x3a0] sm:$0xff]
    %v1060 = vld [vmem:[#allocation3 + $0x3a8] sm:$0xff]
    %v1061 = vld [vmem:[#allocation3 + $0x3b0] sm:$0xff]
    %v1062 = vld [vmem:[#allocation3 + $0x3b8] sm:$0xff]
    %v1063 = vld [vmem:[#allocation3 + $0x3c0] sm:$0xff]
    %v1064 = vld [vmem:[#allocation3 + $0x3c8] sm:$0xff]
    %v1065 = vld [vmem:[#allocation3 + $0x3d0] sm:$0xff]
    %v1066 = vld [vmem:[#allocation3 + $0x3d8] sm:$0xff]
    %v1067 = vld [vmem:[#allocation3 + $0x3e0] sm:$0xff]
    %v1068 = vld [vmem:[#allocation3 + $0x3e8] sm:$0xff]
    %v1069 = vld [vmem:[#allocation3 + $0x3f0] sm:$0xff]
    %v1070 = vld [vmem:[#allocation3 + $0x3f8] sm:$0xff]
    %v1071 = vld [vmem:[#allocation5] sm:$0xff]
    %v1072 = vld [vmem:[#allocation5 + $0x8] sm:$0xff]
    %v1073 = vld [vmem:[#allocation5 + $0x10] sm:$0xff]
    %v1074 = vld [vmem:[#allocation5 + $0x18] sm:$0xff]
    %v1075 = vld [vmem:[#allocation5 + $0x20] sm:$0xff]
    %v1076 = vld [vmem:[#allocation5 + $0x28] sm:$0xff]
    %v1077 = vld [vmem:[#allocation5 + $0x30] sm:$0xff]
    %v1078 = vld [vmem:[#allocation5 + $0x38] sm:$0xff]
    %v1079 = vld [vmem:[#allocation5 + $0x40] sm:$0xff]
    %v1080 = vld [vmem:[#allocation5 + $0x48] sm:$0xff]
    %v1081 = vld [vmem:[#allocation5 + $0x50] sm:$0xff]
    %v1082 = vld [vmem:[#allocation5 + $0x58] sm:$0xff]
    %v1083 = vld [vmem:[#allocation5 + $0x60] sm:$0xff]
    %v1084 = vld [vmem:[#allocation5 + $0x68] sm:$0xff]
    %v1085 = vld [vmem:[#allocation5 + $0x70] sm:$0xff]
    %v1086 = vld [vmem:[#allocation5 + $0x78] sm:$0xff]
    %v1087 = vld [vmem:[#allocation5 + $0x80] sm:$0xff]
    %v1088 = vld [vmem:[#allocation5 + $0x88] sm:$0xff]
    %v1089 = vld [vmem:[#allocation5 + $0x90] sm:$0xff]
    %v1090 = vld [vmem:[#allocation5 + $0x98] sm:$0xff]
    %v1091 = vld [vmem:[#allocation5 + $0xa0] sm:$0xff]
    %v1092 = vld [vmem:[#allocation5 + $0xa8] sm:$0xff]
    %v1093 = vld [vmem:[#allocation5 + $0xb0] sm:$0xff]
    %v1094 = vld [vmem:[#allocation5 + $0xb8] sm:$0xff]
    %v1095 = vld [vmem:[#allocation5 + $0xc0] sm:$0xff]
    %v1096 = vld [vmem:[#allocation5 + $0xc8] sm:$0xff]
    %v1097 = vld [vmem:[#allocation5 + $0xd0] sm:$0xff]
    %v1098 = vld [vmem:[#allocation5 + $0xd8] sm:$0xff]
    %v1099 = vld [vmem:[#allocation5 + $0xe0] sm:$0xff]
    %v1100 = vld [vmem:[#allocation5 + $0xe8] sm:$0xff]
    %v1101 = vld [vmem:[#allocation5 + $0xf0] sm:$0xff]
    %v1102 = vld [vmem:[#allocation5 + $0xf8] sm:$0xff]
    %v1103 = vld [vmem:[#allocation5 + $0x100] sm:$0xff]
    %v1104 = vld [vmem:[#allocation5 + $0x108] sm:$0xff]
    %v1105 = vld [vmem:[#allocation5 + $0x110] sm:$0xff]
    %v1106 = vld [vmem:[#allocation5 + $0x118] sm:$0xff]
    %v1107 = vld [vmem:[#allocation5 + $0x120] sm:$0xff]
    %v1108 = vld [vmem:[#allocation5 + $0x128] sm:$0xff]
    %v1109 = vld [vmem:[#allocation5 + $0x130] sm:$0xff]
    %v1110 = vld [vmem:[#allocation5 + $0x138] sm:$0xff]
    %v1111 = vld [vmem:[#allocation5 + $0x140] sm:$0xff]
    %v1112 = vld [vmem:[#allocation5 + $0x148] sm:$0xff]
    %v1113 = vld [vmem:[#allocation5 + $0x150] sm:$0xff]
    %v1114 = vld [vmem:[#allocation5 + $0x158] sm:$0xff]
    %v1115 = vld [vmem:[#allocation5 + $0x160] sm:$0xff]
    %v1116 = vld [vmem:[#allocation5 + $0x168] sm:$0xff]
    %v1117 = vld [vmem:[#allocation5 + $0x170] sm:$0xff]
    %v1118 = vld [vmem:[#allocation5 + $0x178] sm:$0xff]
    %v1119 = vld [vmem:[#allocation5 + $0x180] sm:$0xff]
    %v1120 = vld [vmem:[#allocation5 + $0x188] sm:$0xff]
    %v1121 = vld [vmem:[#allocation5 + $0x190] sm:$0xff]
    %v1122 = vld [vmem:[#allocation5 + $0x198] sm:$0xff]
    %v1123 = vld [vmem:[#allocation5 + $0x1a0] sm:$0xff]
    %v1124 = vld [vmem:[#allocation5 + $0x1a8] sm:$0xff]
    %v1125 = vld [vmem:[#allocation5 + $0x1b0] sm:$0xff]
    %v1126 = vld [vmem:[#allocation5 + $0x1b8] sm:$0xff]
    %v1127 = vld [vmem:[#allocation5 + $0x1c0] sm:$0xff]
    %v1128 = vld [vmem:[#allocation5 + $0x1c8] sm:$0xff]
    %v1129 = vld [vmem:[#allocation5 + $0x1d0] sm:$0xff]
    %v1130 = vld [vmem:[#allocation5 + $0x1d8] sm:$0xff]
    %v1131 = vld [vmem:[#allocation5 + $0x1e0] sm:$0xff]
    %v1132 = vld [vmem:[#allocation5 + $0x1e8] sm:$0xff]
    %v1133 = vld [vmem:[#allocation5 + $0x1f0] sm:$0xff]
    %v1134 = vld [vmem:[#allocation5 + $0x1f8] sm:$0xff]
    %v1135 = vld [vmem:[#allocation5 + $0x200] sm:$0xff]
    %v1136 = vld [vmem:[#allocation5 + $0x208] sm:$0xff]
    %v1137 = vld [vmem:[#allocation5 + $0x210] sm:$0xff]
    %v1138 = vld [vmem:[#allocation5 + $0x218] sm:$0xff]
    %v1139 = vld [vmem:[#allocation5 + $0x220] sm:$0xff]
    %v1140 = vld [vmem:[#allocation5 + $0x228] sm:$0xff]
    %v1141 = vld [vmem:[#allocation5 + $0x230] sm:$0xff]
    %v1142 = vld [vmem:[#allocation5 + $0x238] sm:$0xff]
    %v1143 = vld [vmem:[#allocation5 + $0x240] sm:$0xff]
    %v1144 = vld [vmem:[#allocation5 + $0x248] sm:$0xff]
    %v1145 = vld [vmem:[#allocation5 + $0x250] sm:$0xff]
    %v1146 = vld [vmem:[#allocation5 + $0x258] sm:$0xff]
    %v1147 = vld [vmem:[#allocation5 + $0x260] sm:$0xff]
    %v1148 = vld [vmem:[#allocation5 + $0x268] sm:$0xff]
    %v1149 = vld [vmem:[#allocation5 + $0x270] sm:$0xff]
    %v1150 = vld [vmem:[#allocation5 + $0x278] sm:$0xff]
    %v1151 = vld [vmem:[#allocation5 + $0x280] sm:$0xff]
    %v1152 = vld [vmem:[#allocation5 + $0x288] sm:$0xff]
    %v1153 = vld [vmem:[#allocation5 + $0x290] sm:$0xff]
    %v1154 = vld [vmem:[#allocation5 + $0x298] sm:$0xff]
    %v1155 = vld [vmem:[#allocation5 + $0x2a0] sm:$0xff]
    %v1156 = vld [vmem:[#allocation5 + $0x2a8] sm:$0xff]
    %v1157 = vld [vmem:[#allocation5 + $0x2b0] sm:$0xff]
    %v1158 = vld [vmem:[#allocation5 + $0x2b8] sm:$0xff]
    %v1159 = vld [vmem:[#allocation5 + $0x2c0] sm:$0xff]
    %v1160 = vld [vmem:[#allocation5 + $0x2c8] sm:$0xff]
    %v1161 = vld [vmem:[#allocation5 + $0x2d0] sm:$0xff]
    %v1162 = vld [vmem:[#allocation5 + $0x2d8] sm:$0xff]
    %v1163 = vld [vmem:[#allocation5 + $0x2e0] sm:$0xff]
    %v1164 = vld [vmem:[#allocation5 + $0x2e8] sm:$0xff]
    %v1165 = vld [vmem:[#allocation5 + $0x2f0] sm:$0xff]
    %v1166 = vld [vmem:[#allocation5 + $0x2f8] sm:$0xff]
    %v1167 = vld [vmem:[#allocation5 + $0x300] sm:$0xff]
    %v1168 = vld [vmem:[#allocation5 + $0x308] sm:$0xff]
    %v1169 = vld [vmem:[#allocation5 + $0x310] sm:$0xff]
    %v1170 = vld [vmem:[#allocation5 + $0x318] sm:$0xff]
    %v1171 = vld [vmem:[#allocation5 + $0x320] sm:$0xff]
    %v1172 = vld [vmem:[#allocation5 + $0x328] sm:$0xff]
    %v1173 = vld [vmem:[#allocation5 + $0x330] sm:$0xff]
    %v1174 = vld [vmem:[#allocation5 + $0x338] sm:$0xff]
    %v1175 = vld [vmem:[#allocation5 + $0x340] sm:$0xff]
    %v1176 = vld [vmem:[#allocation5 + $0x348] sm:$0xff]
    %v1177 = vld [vmem:[#allocation5 + $0x350] sm:$0xff]
    %v1178 = vld [vmem:[#allocation5 + $0x358] sm:$0xff]
    %v1179 = vld [vmem:[#allocation5 + $0x360] sm:$0xff]
    %v1180 = vld [vmem:[#allocation5 + $0x368] sm:$0xff]
    %v1181 = vld [vmem:[#allocation5 + $0x370] sm:$0xff]
    %v1182 = vld [vmem:[#allocation5 + $0x378] sm:$0xff]
    %v1183 = vld [vmem:[#allocation5 + $0x380] sm:$0xff]
    %v1184 = vld [vmem:[#allocation5 + $0x388] sm:$0xff]
    %v1185 = vld [vmem:[#allocation5 + $0x390] sm:$0xff]
    %v1186 = vld [vmem:[#allocation5 + $0x398] sm:$0xff]
    %v1187 = vld [vmem:[#allocation5 + $0x3a0] sm:$0xff]
    %v1188 = vld [vmem:[#allocation5 + $0x3a8] sm:$0xff]
    %v1189 = vld [vmem:[#allocation5 + $0x3b0] sm:$0xff]
    %v1190 = vld [vmem:[#allocation5 + $0x3b8] sm:$0xff]
    %v1191 = vld [vmem:[#allocation5 + $0x3c0] sm:$0xff]
    %v1192 = vld [vmem:[#allocation5 + $0x3c8] sm:$0xff]
    %v1193 = vld [vmem:[#allocation5 + $0x3d0] sm:$0xff]
    %v1194 = vld [vmem:[#allocation5 + $0x3d8] sm:$0xff]
    %v1195 = vld [vmem:[#allocation5 + $0x3e0] sm:$0xff]
    %v1196 = vld [vmem:[#allocation5 + $0x3e8] sm:$0xff]
    %v1197 = vld [vmem:[#allocation5 + $0x3f0] sm:$0xff]
    %v1198 = vld [vmem:[#allocation5 + $0x3f8] sm:$0xff]
    %v1199 = vld [vmem:[#allocation5 + $0x400] sm:$0xff]
    %v1200 = vld [vmem:[#allocation5 + $0x408] sm:$0xff]
    %v1201 = vld [vmem:[#allocation5 + $0x410] sm:$0xff]
    %v1202 = vld [vmem:[#allocation5 + $0x418] sm:$0xff]
    %v1203 = vld [vmem:[#allocation5 + $0x420] sm:$0xff]
    %v1204 = vld [vmem:[#allocation5 + $0x428] sm:$0xff]
    %v1205 = vld [vmem:[#allocation5 + $0x430] sm:$0xff]
    %v1206 = vld [vmem:[#allocation5 + $0x438] sm:$0xff]
    %v1207 = vld [vmem:[#allocation5 + $0x440] sm:$0xff]
    %v1208 = vld [vmem:[#allocation5 + $0x448] sm:$0xff]
    %v1209 = vld [vmem:[#allocation5 + $0x450] sm:$0xff]
    %v1210 = vld [vmem:[#allocation5 + $0x458] sm:$0xff]
    %v1211 = vld [vmem:[#allocation5 + $0x460] sm:$0xff]
    %v1212 = vld [vmem:[#allocation5 + $0x468] sm:$0xff]
    %v1213 = vld [vmem:[#allocation5 + $0x470] sm:$0xff]
    %v1214 = vld [vmem:[#allocation5 + $0x478] sm:$0xff]
    %v1215 = vld [vmem:[#allocation5 + $0x480] sm:$0xff]
    %v1216 = vld [vmem:[#allocation5 + $0x488] sm:$0xff]
    %v1217 = vld [vmem:[#allocation5 + $0x490] sm:$0xff]
    %v1218 = vld [vmem:[#allocation5 + $0x498] sm:$0xff]
    %v1219 = vld [vmem:[#allocation5 + $0x4a0] sm:$0xff]
    %v1220 = vld [vmem:[#allocation5 + $0x4a8] sm:$0xff]
    %v1221 = vld [vmem:[#allocation5 + $0x4b0] sm:$0xff]
    %v1222 = vld [vmem:[#allocation5 + $0x4b8] sm:$0xff]
    %v1223 = vld [vmem:[#allocation5 + $0x4c0] sm:$0xff]
    %v1224 = vld [vmem:[#allocation5 + $0x4c8] sm:$0xff]
    %v1225 = vld [vmem:[#allocation5 + $0x4d0] sm:$0xff]
    %v1226 = vld [vmem:[#allocation5 + $0x4d8] sm:$0xff]
    %v1227 = vld [vmem:[#allocation5 + $0x4e0] sm:$0xff]
    %v1228 = vld [vmem:[#allocation5 + $0x4e8] sm:$0xff]
    %v1229 = vld [vmem:[#allocation5 + $0x4f0] sm:$0xff]
    %v1230 = vld [vmem:[#allocation5 + $0x4f8] sm:$0xff]
    %v1231 = vld [vmem:[#allocation5 + $0x500] sm:$0xff]
    %v1232 = vld [vmem:[#allocation5 + $0x508] sm:$0xff]
    %v1233 = vld [vmem:[#allocation5 + $0x510] sm:$0xff]
    %v1234 = vld [vmem:[#allocation5 + $0x518] sm:$0xff]
    %v1235 = vld [vmem:[#allocation5 + $0x520] sm:$0xff]
    %v1236 = vld [vmem:[#allocation5 + $0x528] sm:$0xff]
    %v1237 = vld [vmem:[#allocation5 + $0x530] sm:$0xff]
    %v1238 = vld [vmem:[#allocation5 + $0x538] sm:$0xff]
    %v1239 = vld [vmem:[#allocation5 + $0x540] sm:$0xff]
    %v1240 = vld [vmem:[#allocation5 + $0x548] sm:$0xff]
    %v1241 = vld [vmem:[#allocation5 + $0x550] sm:$0xff]
    %v1242 = vld [vmem:[#allocation5 + $0x558] sm:$0xff]
    %v1243 = vld [vmem:[#allocation5 + $0x560] sm:$0xff]
    %v1244 = vld [vmem:[#allocation5 + $0x568] sm:$0xff]
    %v1245 = vld [vmem:[#allocation5 + $0x570] sm:$0xff]
    %v1246 = vld [vmem:[#allocation5 + $0x578] sm:$0xff]
    %v1247 = vld [vmem:[#allocation5 + $0x580] sm:$0xff]
    %v1248 = vld [vmem:[#allocation5 + $0x588] sm:$0xff]
    %v1249 = vld [vmem:[#allocation5 + $0x590] sm:$0xff]
    %v1250 = vld [vmem:[#allocation5 + $0x598] sm:$0xff]
    %v1251 = vld [vmem:[#allocation5 + $0x5a0] sm:$0xff]
    %v1252 = vld [vmem:[#allocation5 + $0x5a8] sm:$0xff]
    %v1253 = vld [vmem:[#allocation5 + $0x5b0] sm:$0xff]
    %v1254 = vld [vmem:[#allocation5 + $0x5b8] sm:$0xff]
    %v1255 = vld [vmem:[#allocation5 + $0x5c0] sm:$0xff]
    %v1256 = vld [vmem:[#allocation5 + $0x5c8] sm:$0xff]
    %v1257 = vld [vmem:[#allocation5 + $0x5d0] sm:$0xff]
    %v1258 = vld [vmem:[#allocation5 + $0x5d8] sm:$0xff]
    %v1259 = vld [vmem:[#allocation5 + $0x5e0] sm:$0xff]
    %v1260 = vld [vmem:[#allocation5 + $0x5e8] sm:$0xff]
    %v1261 = vld [vmem:[#allocation5 + $0x5f0] sm:$0xff]
    %v1262 = vld [vmem:[#allocation5 + $0x5f8] sm:$0xff]
    %v1263 = vld [vmem:[#allocation5 + $0x600] sm:$0xff]
    %v1264 = vld [vmem:[#allocation5 + $0x608] sm:$0xff]
    %v1265 = vld [vmem:[#allocation5 + $0x610] sm:$0xff]
    %v1266 = vld [vmem:[#allocation5 + $0x618] sm:$0xff]
    %v1267 = vld [vmem:[#allocation5 + $0x620] sm:$0xff]
    %v1268 = vld [vmem:[#allocation5 + $0x628] sm:$0xff]
    %v1269 = vld [vmem:[#allocation5 + $0x630] sm:$0xff]
    %v1270 = vld [vmem:[#allocation5 + $0x638] sm:$0xff]
    %v1271 = vld [vmem:[#allocation5 + $0x640] sm:$0xff]
    %v1272 = vld [vmem:[#allocation5 + $0x648] sm:$0xff]
    %v1273 = vld [vmem:[#allocation5 + $0x650] sm:$0xff]
    %v1274 = vld [vmem:[#allocation5 + $0x658] sm:$0xff]
    %v1275 = vld [vmem:[#allocation5 + $0x660] sm:$0xff]
    %v1276 = vld [vmem:[#allocation5 + $0x668] sm:$0xff]
    %v1277 = vld [vmem:[#allocation5 + $0x670] sm:$0xff]
    %v1278 = vld [vmem:[#allocation5 + $0x678] sm:$0xff]
    %v1279 = vld [vmem:[#allocation5 + $0x680] sm:$0xff]
    %v1280 = vld [vmem:[#allocation5 + $0x688] sm:$0xff]
    %v1281 = vld [vmem:[#allocation5 + $0x690] sm:$0xff]
    %v1282 = vld [vmem:[#allocation5 + $0x698] sm:$0xff]
    %v1283 = vld [vmem:[#allocation5 + $0x6a0] sm:$0xff]
    %v1284 = vld [vmem:[#allocation5 + $0x6a8] sm:$0xff]
    %v1285 = vld [vmem:[#allocation5 + $0x6b0] sm:$0xff]
    %v1286 = vld [vmem:[#allocation5 + $0x6b8] sm:$0xff]
    %v1287 = vld [vmem:[#allocation5 + $0x6c0] sm:$0xff]
    %v1288 = vld [vmem:[#allocation5 + $0x6c8] sm:$0xff]
    %v1289 = vld [vmem:[#allocation5 + $0x6d0] sm:$0xff]
    %v1290 = vld [vmem:[#allocation5 + $0x6d8] sm:$0xff]
    %v1291 = vld [vmem:[#allocation5 + $0x6e0] sm:$0xff]
    %v1292 = vld [vmem:[#allocation5 + $0x6e8] sm:$0xff]
    %v1293 = vld [vmem:[#allocation5 + $0x6f0] sm:$0xff]
    %v1294 = vld [vmem:[#allocation5 + $0x6f8] sm:$0xff]
    %v1295 = vld [vmem:[#allocation5 + $0x700] sm:$0xff]
    %v1296 = vld [vmem:[#allocation5 + $0x708] sm:$0xff]
    %v1297 = vld [vmem:[#allocation5 + $0x710] sm:$0xff]
    %v1298 = vld [vmem:[#allocation5 + $0x718] sm:$0xff]
    %v1299 = vld [vmem:[#allocation5 + $0x720] sm:$0xff]
    %v1300 = vld [vmem:[#allocation5 + $0x728] sm:$0xff]
    %v1301 = vld [vmem:[#allocation5 + $0x730] sm:$0xff]
    %v1302 = vld [vmem:[#allocation5 + $0x738] sm:$0xff]
    %v1303 = vld [vmem:[#allocation5 + $0x740] sm:$0xff]
    %v1304 = vld [vmem:[#allocation5 + $0x748] sm:$0xff]
    %v1305 = vld [vmem:[#allocation5 + $0x750] sm:$0xff]
    %v1306 = vld [vmem:[#allocation5 + $0x758] sm:$0xff]
    %v1307 = vld [vmem:[#allocation5 + $0x760] sm:$0xff]
    %v1308 = vld [vmem:[#allocation5 + $0x768] sm:$0xff]
    %v1309 = vld [vmem:[#allocation5 + $0x770] sm:$0xff]
    %v1310 = vld [vmem:[#allocation5 + $0x778] sm:$0xff]
    %v1311 = vld [vmem:[#allocation5 + $0x780] sm:$0xff]
    %v1312 = vld [vmem:[#allocation5 + $0x788] sm:$0xff]
    %v1313 = vld [vmem:[#allocation5 + $0x790] sm:$0xff]
    %v1314 = vld [vmem:[#allocation5 + $0x798] sm:$0xff]
    %v1315 = vld [vmem:[#allocation5 + $0x7a0] sm:$0xff]
    %v1316 = vld [vmem:[#allocation5 + $0x7a8] sm:$0xff]
    %v1317 = vld [vmem:[#allocation5 + $0x7b0] sm:$0xff]
    %v1318 = vld [vmem:[#allocation5 + $0x7b8] sm:$0xff]
    %v1319 = vld [vmem:[#allocation5 + $0x7c0] sm:$0xff]
    %v1320 = vld [vmem:[#allocation5 + $0x7c8] sm:$0xff]
    %v1321 = vld [vmem:[#allocation5 + $0x7d0] sm:$0xff]
    %v1322 = vld [vmem:[#allocation5 + $0x7d8] sm:$0xff]
    %v1323 = vld [vmem:[#allocation5 + $0x7e0] sm:$0xff]
    %v1324 = vld [vmem:[#allocation5 + $0x7e8] sm:$0xff]
    %v1325 = vld [vmem:[#allocation5 + $0x7f0] sm:$0xff]
    %v1326 = vld [vmem:[#allocation5 + $0x7f8] sm:$0xff]
    %v1327 = vld [vmem:[#allocation5 + $0x800] sm:$0xff]
    %v1328 = vld [vmem:[#allocation5 + $0x808] sm:$0xff]
    %v1329 = vld [vmem:[#allocation5 + $0x810] sm:$0xff]
    %v1330 = vld [vmem:[#allocation5 + $0x818] sm:$0xff]
    %v1331 = vld [vmem:[#allocation5 + $0x820] sm:$0xff]
    %v1332 = vld [vmem:[#allocation5 + $0x828] sm:$0xff]
    %v1333 = vld [vmem:[#allocation5 + $0x830] sm:$0xff]
    %v1334 = vld [vmem:[#allocation5 + $0x838] sm:$0xff]
    %v1335 = vld [vmem:[#allocation5 + $0x840] sm:$0xff]
    %v1336 = vld [vmem:[#allocation5 + $0x848] sm:$0xff]
    %v1337 = vld [vmem:[#allocation5 + $0x850] sm:$0xff]
    %v1338 = vld [vmem:[#allocation5 + $0x858] sm:$0xff]
    %v1339 = vld [vmem:[#allocation5 + $0x860] sm:$0xff]
    %v1340 = vld [vmem:[#allocation5 + $0x868] sm:$0xff]
    %v1341 = vld [vmem:[#allocation5 + $0x870] sm:$0xff]
    %v1342 = vld [vmem:[#allocation5 + $0x878] sm:$0xff]
    %v1343 = vld [vmem:[#allocation5 + $0x880] sm:$0xff]
    %v1344 = vld [vmem:[#allocation5 + $0x888] sm:$0xff]
    %v1345 = vld [vmem:[#allocation5 + $0x890] sm:$0xff]
    %v1346 = vld [vmem:[#allocation5 + $0x898] sm:$0xff]
    %v1347 = vld [vmem:[#allocation5 + $0x8a0] sm:$0xff]
    %v1348 = vld [vmem:[#allocation5 + $0x8a8] sm:$0xff]
    %v1349 = vld [vmem:[#allocation5 + $0x8b0] sm:$0xff]
    %v1350 = vld [vmem:[#allocation5 + $0x8b8] sm:$0xff]
    %v1351 = vld [vmem:[#allocation5 + $0x8c0] sm:$0xff]
    %v1352 = vld [vmem:[#allocation5 + $0x8c8] sm:$0xff]
    %v1353 = vld [vmem:[#allocation5 + $0x8d0] sm:$0xff]
    %v1354 = vld [vmem:[#allocation5 + $0x8d8] sm:$0xff]
    %v1355 = vld [vmem:[#allocation5 + $0x8e0] sm:$0xff]
    %v1356 = vld [vmem:[#allocation5 + $0x8e8] sm:$0xff]
    %v1357 = vld [vmem:[#allocation5 + $0x8f0] sm:$0xff]
    %v1358 = vld [vmem:[#allocation5 + $0x8f8] sm:$0xff]
    %v1359 = vld [vmem:[#allocation5 + $0x900] sm:$0xff]
    %v1360 = vld [vmem:[#allocation5 + $0x908] sm:$0xff]
    %v1361 = vld [vmem:[#allocation5 + $0x910] sm:$0xff]
    %v1362 = vld [vmem:[#allocation5 + $0x918] sm:$0xff]
    %v1363 = vld [vmem:[#allocation5 + $0x920] sm:$0xff]
    %v1364 = vld [vmem:[#allocation5 + $0x928] sm:$0xff]
    %v1365 = vld [vmem:[#allocation5 + $0x930] sm:$0xff]
    %v1366 = vld [vmem:[#allocation5 + $0x938] sm:$0xff]
    %v1367 = vld [vmem:[#allocation5 + $0x940] sm:$0xff]
    %v1368 = vld [vmem:[#allocation5 + $0x948] sm:$0xff]
    %v1369 = vld [vmem:[#allocation5 + $0x950] sm:$0xff]
    %v1370 = vld [vmem:[#allocation5 + $0x958] sm:$0xff]
    %v1371 = vld [vmem:[#allocation5 + $0x960] sm:$0xff]
    %v1372 = vld [vmem:[#allocation5 + $0x968] sm:$0xff]
    %v1373 = vld [vmem:[#allocation5 + $0x970] sm:$0xff]
    %v1374 = vld [vmem:[#allocation5 + $0x978] sm:$0xff]
    %v1375 = vld [vmem:[#allocation5 + $0x980] sm:$0xff]
    %v1376 = vld [vmem:[#allocation5 + $0x988] sm:$0xff]
    %v1377 = vld [vmem:[#allocation5 + $0x990] sm:$0xff]
    %v1378 = vld [vmem:[#allocation5 + $0x998] sm:$0xff]
    %v1379 = vld [vmem:[#allocation5 + $0x9a0] sm:$0xff]
    %v1380 = vld [vmem:[#allocation5 + $0x9a8] sm:$0xff]
    %v1381 = vld [vmem:[#allocation5 + $0x9b0] sm:$0xff]
    %v1382 = vld [vmem:[#allocation5 + $0x9b8] sm:$0xff]
    %v1383 = vld [vmem:[#allocation5 + $0x9c0] sm:$0xff]
    %v1384 = vld [vmem:[#allocation5 + $0x9c8] sm:$0xff]
    %v1385 = vld [vmem:[#allocation5 + $0x9d0] sm:$0xff]
    %v1386 = vld [vmem:[#allocation5 + $0x9d8] sm:$0xff]
    %v1387 = vld [vmem:[#allocation5 + $0x9e0] sm:$0xff]
    %v1388 = vld [vmem:[#allocation5 + $0x9e8] sm:$0xff]
    %v1389 = vld [vmem:[#allocation5 + $0x9f0] sm:$0xff]
    %v1390 = vld [vmem:[#allocation5 + $0x9f8] sm:$0xff]
    %v1391 = vld [vmem:[#allocation5 + $0xa00] sm:$0xff]
    %v1392 = vld [vmem:[#allocation5 + $0xa08] sm:$0xff]
    %v1393 = vld [vmem:[#allocation5 + $0xa10] sm:$0xff]
    %v1394 = vld [vmem:[#allocation5 + $0xa18] sm:$0xff]
    %v1395 = vld [vmem:[#allocation5 + $0xa20] sm:$0xff]
    %v1396 = vld [vmem:[#allocation5 + $0xa28] sm:$0xff]
    %v1397 = vld [vmem:[#allocation5 + $0xa30] sm:$0xff]
    %v1398 = vld [vmem:[#allocation5 + $0xa38] sm:$0xff]
    %v1399 = vld [vmem:[#allocation5 + $0xa40] sm:$0xff]
    %v1400 = vld [vmem:[#allocation5 + $0xa48] sm:$0xff]
    %v1401 = vld [vmem:[#allocation5 + $0xa50] sm:$0xff]
    %v1402 = vld [vmem:[#allocation5 + $0xa58] sm:$0xff]
    %v1403 = vld [vmem:[#allocation5 + $0xa60] sm:$0xff]
    %v1404 = vld [vmem:[#allocation5 + $0xa68] sm:$0xff]
    %v1405 = vld [vmem:[#allocation5 + $0xa70] sm:$0xff]
    %v1406 = vld [vmem:[#allocation5 + $0xa78] sm:$0xff]
    %v1407 = vld [vmem:[#allocation5 + $0xa80] sm:$0xff]
    %v1408 = vld [vmem:[#allocation5 + $0xa88] sm:$0xff]
    %v1409 = vld [vmem:[#allocation5 + $0xa90] sm:$0xff]
    %v1410 = vld [vmem:[#allocation5 + $0xa98] sm:$0xff]
    %v1411 = vld [vmem:[#allocation5 + $0xaa0] sm:$0xff]
    %v1412 = vld [vmem:[#allocation5 + $0xaa8] sm:$0xff]
    %v1413 = vld [vmem:[#allocation5 + $0xab0] sm:$0xff]
    %v1414 = vld [vmem:[#allocation5 + $0xab8] sm:$0xff]
    %v1415 = vld [vmem:[#allocation5 + $0xac0] sm:$0xff]
    %v1416 = vld [vmem:[#allocation5 + $0xac8] sm:$0xff]
    %v1417 = vld [vmem:[#allocation5 + $0xad0] sm:$0xff]
    %v1418 = vld [vmem:[#allocation5 + $0xad8] sm:$0xff]
    %v1419 = vld [vmem:[#allocation5 + $0xae0] sm:$0xff]
    %v1420 = vld [vmem:[#allocation5 + $0xae8] sm:$0xff]
    %v1421 = vld [vmem:[#allocation5 + $0xaf0] sm:$0xff]
    %v1422 = vld [vmem:[#allocation5 + $0xaf8] sm:$0xff]
    %v1423 = vld [vmem:[#allocation5 + $0xb00] sm:$0xff]
    %v1424 = vld [vmem:[#allocation5 + $0xb08] sm:$0xff]
    %v1425 = vld [vmem:[#allocation5 + $0xb10] sm:$0xff]
    %v1426 = vld [vmem:[#allocation5 + $0xb18] sm:$0xff]
    %v1427 = vld [vmem:[#allocation5 + $0xb20] sm:$0xff]
    %v1428 = vld [vmem:[#allocation5 + $0xb28] sm:$0xff]
    %v1429 = vld [vmem:[#allocation5 + $0xb30] sm:$0xff]
    %v1430 = vld [vmem:[#allocation5 + $0xb38] sm:$0xff]
    %v1431 = vld [vmem:[#allocation5 + $0xb40] sm:$0xff]
    %v1432 = vld [vmem:[#allocation5 + $0xb48] sm:$0xff]
    %v1433 = vld [vmem:[#allocation5 + $0xb50] sm:$0xff]
    %v1434 = vld [vmem:[#allocation5 + $0xb58] sm:$0xff]
    %v1435 = vld [vmem:[#allocation5 + $0xb60] sm:$0xff]
    %v1436 = vld [vmem:[#allocation5 + $0xb68] sm:$0xff]
    %v1437 = vld [vmem:[#allocation5 + $0xb70] sm:$0xff]
    %v1438 = vld [vmem:[#allocation5 + $0xb78] sm:$0xff]
    %v1439 = vld [vmem:[#allocation5 + $0xb80] sm:$0xff]
    %v1440 = vld [vmem:[#allocation5 + $0xb88] sm:$0xff]
    %v1441 = vld [vmem:[#allocation5 + $0xb90] sm:$0xff]
    %v1442 = vld [vmem:[#allocation5 + $0xb98] sm:$0xff]
    %v1443 = vld [vmem:[#allocation5 + $0xba0] sm:$0xff]
    %v1444 = vld [vmem:[#allocation5 + $0xba8] sm:$0xff]
    %v1445 = vld [vmem:[#allocation5 + $0xbb0] sm:$0xff]
    %v1446 = vld [vmem:[#allocation5 + $0xbb8] sm:$0xff]
    %v1447 = vld [vmem:[#allocation5 + $0xbc0] sm:$0xff]
    %v1448 = vld [vmem:[#allocation5 + $0xbc8] sm:$0xff]
    %v1449 = vld [vmem:[#allocation5 + $0xbd0] sm:$0xff]
    %v1450 = vld [vmem:[#allocation5 + $0xbd8] sm:$0xff]
    %v1451 = vld [vmem:[#allocation5 + $0xbe0] sm:$0xff]
    %v1452 = vld [vmem:[#allocation5 + $0xbe8] sm:$0xff]
    %v1453 = vld [vmem:[#allocation5 + $0xbf0] sm:$0xff]
    %v1454 = vld [vmem:[#allocation5 + $0xbf8] sm:$0xff]
    %v1455 = vld [vmem:[#allocation5 + $0xc00] sm:$0xff]
    %v1456 = vld [vmem:[#allocation5 + $0xc08] sm:$0xff]
    %v1457 = vld [vmem:[#allocation5 + $0xc10] sm:$0xff]
    %v1458 = vld [vmem:[#allocation5 + $0xc18] sm:$0xff]
    %v1459 = vld [vmem:[#allocation5 + $0xc20] sm:$0xff]
    %v1460 = vld [vmem:[#allocation5 + $0xc28] sm:$0xff]
    %v1461 = vld [vmem:[#allocation5 + $0xc30] sm:$0xff]
    %v1462 = vld [vmem:[#allocation5 + $0xc38] sm:$0xff]
    %v1463 = vld [vmem:[#allocation5 + $0xc40] sm:$0xff]
    %v1464 = vld [vmem:[#allocation5 + $0xc48] sm:$0xff]
    %v1465 = vld [vmem:[#allocation5 + $0xc50] sm:$0xff]
    %v1466 = vld [vmem:[#allocation5 + $0xc58] sm:$0xff]
    %v1467 = vld [vmem:[#allocation5 + $0xc60] sm:$0xff]
    %v1468 = vld [vmem:[#allocation5 + $0xc68] sm:$0xff]
    %v1469 = vld [vmem:[#allocation5 + $0xc70] sm:$0xff]
    %v1470 = vld [vmem:[#allocation5 + $0xc78] sm:$0xff]
    %v1471 = vld [vmem:[#allocation5 + $0xc80] sm:$0xff]
    %v1472 = vld [vmem:[#allocation5 + $0xc88] sm:$0xff]
    %v1473 = vld [vmem:[#allocation5 + $0xc90] sm:$0xff]
    %v1474 = vld [vmem:[#allocation5 + $0xc98] sm:$0xff]
    %v1475 = vld [vmem:[#allocation5 + $0xca0] sm:$0xff]
    %v1476 = vld [vmem:[#allocation5 + $0xca8] sm:$0xff]
    %v1477 = vld [vmem:[#allocation5 + $0xcb0] sm:$0xff]
    %v1478 = vld [vmem:[#allocation5 + $0xcb8] sm:$0xff]
    %v1479 = vld [vmem:[#allocation5 + $0xcc0] sm:$0xff]
    %v1480 = vld [vmem:[#allocation5 + $0xcc8] sm:$0xff]
    %v1481 = vld [vmem:[#allocation5 + $0xcd0] sm:$0xff]
    %v1482 = vld [vmem:[#allocation5 + $0xcd8] sm:$0xff]
    %v1483 = vld [vmem:[#allocation5 + $0xce0] sm:$0xff]
    %v1484 = vld [vmem:[#allocation5 + $0xce8] sm:$0xff]
    %v1485 = vld [vmem:[#allocation5 + $0xcf0] sm:$0xff]
    %v1486 = vld [vmem:[#allocation5 + $0xcf8] sm:$0xff]
    %v1487 = vld [vmem:[#allocation5 + $0xd00] sm:$0xff]
    %v1488 = vld [vmem:[#allocation5 + $0xd08] sm:$0xff]
    %v1489 = vld [vmem:[#allocation5 + $0xd10] sm:$0xff]
    %v1490 = vld [vmem:[#allocation5 + $0xd18] sm:$0xff]
    %v1491 = vld [vmem:[#allocation5 + $0xd20] sm:$0xff]
    %v1492 = vld [vmem:[#allocation5 + $0xd28] sm:$0xff]
    %v1493 = vld [vmem:[#allocation5 + $0xd30] sm:$0xff]
    %v1494 = vld [vmem:[#allocation5 + $0xd38] sm:$0xff]
    %v1495 = vld [vmem:[#allocation5 + $0xd40] sm:$0xff]
    %v1496 = vld [vmem:[#allocation5 + $0xd48] sm:$0xff]
    %v1497 = vld [vmem:[#allocation5 + $0xd50] sm:$0xff]
    %v1498 = vld [vmem:[#allocation5 + $0xd58] sm:$0xff]
    %v1499 = vld [vmem:[#allocation5 + $0xd60] sm:$0xff]
    %v1500 = vld [vmem:[#allocation5 + $0xd68] sm:$0xff]
    %v1501 = vld [vmem:[#allocation5 + $0xd70] sm:$0xff]
    %v1502 = vld [vmem:[#allocation5 + $0xd78] sm:$0xff]
    %v1503 = vld [vmem:[#allocation5 + $0xd80] sm:$0xff]
    %v1504 = vld [vmem:[#allocation5 + $0xd88] sm:$0xff]
    %v1505 = vld [vmem:[#allocation5 + $0xd90] sm:$0xff]
    %v1506 = vld [vmem:[#allocation5 + $0xd98] sm:$0xff]
    %v1507 = vld [vmem:[#allocation5 + $0xda0] sm:$0xff]
    %v1508 = vld [vmem:[#allocation5 + $0xda8] sm:$0xff]
    %v1509 = vld [vmem:[#allocation5 + $0xdb0] sm:$0xff]
    %v1510 = vld [vmem:[#allocation5 + $0xdb8] sm:$0xff]
    %v1511 = vld [vmem:[#allocation5 + $0xdc0] sm:$0xff]
    %v1512 = vld [vmem:[#allocation5 + $0xdc8] sm:$0xff]
    %v1513 = vld [vmem:[#allocation5 + $0xdd0] sm:$0xff]
    %v1514 = vld [vmem:[#allocation5 + $0xdd8] sm:$0xff]
    %v1515 = vld [vmem:[#allocation5 + $0xde0] sm:$0xff]
    %v1516 = vld [vmem:[#allocation5 + $0xde8] sm:$0xff]
    %v1517 = vld [vmem:[#allocation5 + $0xdf0] sm:$0xff]
    %v1518 = vld [vmem:[#allocation5 + $0xdf8] sm:$0xff]
    %v1519 = vld [vmem:[#allocation5 + $0xe00] sm:$0xff]
    %v1520 = vld [vmem:[#allocation5 + $0xe08] sm:$0xff]
    %v1521 = vld [vmem:[#allocation5 + $0xe10] sm:$0xff]
    %v1522 = vld [vmem:[#allocation5 + $0xe18] sm:$0xff]
    %v1523 = vld [vmem:[#allocation5 + $0xe20] sm:$0xff]
    %v1524 = vld [vmem:[#allocation5 + $0xe28] sm:$0xff]
    %v1525 = vld [vmem:[#allocation5 + $0xe30] sm:$0xff]
    %v1526 = vld [vmem:[#allocation5 + $0xe38] sm:$0xff]
    %v1527 = vld [vmem:[#allocation5 + $0xe40] sm:$0xff]
    %v1528 = vld [vmem:[#allocation5 + $0xe48] sm:$0xff]
    %v1529 = vld [vmem:[#allocation5 + $0xe50] sm:$0xff]
    %v1530 = vld [vmem:[#allocation5 + $0xe58] sm:$0xff]
    %v1531 = vld [vmem:[#allocation5 + $0xe60] sm:$0xff]
    %v1532 = vld [vmem:[#allocation5 + $0xe68] sm:$0xff]
    %v1533 = vld [vmem:[#allocation5 + $0xe70] sm:$0xff]
    %v1534 = vld [vmem:[#allocation5 + $0xe78] sm:$0xff]
    %v1535 = vld [vmem:[#allocation5 + $0xe80] sm:$0xff]
    %v1536 = vld [vmem:[#allocation5 + $0xe88] sm:$0xff]
    %v1537 = vld [vmem:[#allocation5 + $0xe90] sm:$0xff]
    %v1538 = vld [vmem:[#allocation5 + $0xe98] sm:$0xff]
    %v1539 = vld [vmem:[#allocation5 + $0xea0] sm:$0xff]
    %v1540 = vld [vmem:[#allocation5 + $0xea8] sm:$0xff]
    %v1541 = vld [vmem:[#allocation5 + $0xeb0] sm:$0xff]
    %v1542 = vld [vmem:[#allocation5 + $0xeb8] sm:$0xff]
    %v1543 = vld [vmem:[#allocation5 + $0xec0] sm:$0xff]
    %v1544 = vld [vmem:[#allocation5 + $0xec8] sm:$0xff]
    %v1545 = vld [vmem:[#allocation5 + $0xed0] sm:$0xff]
    %v1546 = vld [vmem:[#allocation5 + $0xed8] sm:$0xff]
    %v1547 = vld [vmem:[#allocation5 + $0xee0] sm:$0xff]
    %v1548 = vld [vmem:[#allocation5 + $0xee8] sm:$0xff]
    %v1549 = vld [vmem:[#allocation5 + $0xef0] sm:$0xff]
    %v1550 = vld [vmem:[#allocation5 + $0xef8] sm:$0xff]
    %v1551 = vld [vmem:[#allocation5 + $0xf00] sm:$0xff]
    %v1552 = vld [vmem:[#allocation5 + $0xf08] sm:$0xff]
    %v1553 = vld [vmem:[#allocation5 + $0xf10] sm:$0xff]
    %v1554 = vld [vmem:[#allocation5 + $0xf18] sm:$0xff]
    %v1555 = vld [vmem:[#allocation5 + $0xf20] sm:$0xff]
    %v1556 = vld [vmem:[#allocation5 + $0xf28] sm:$0xff]
    %v1557 = vld [vmem:[#allocation5 + $0xf30] sm:$0xff]
    %v1558 = vld [vmem:[#allocation5 + $0xf38] sm:$0xff]
    %v1559 = vld [vmem:[#allocation5 + $0xf40] sm:$0xff]
    %v1560 = vld [vmem:[#allocation5 + $0xf48] sm:$0xff]
    %v1561 = vld [vmem:[#allocation5 + $0xf50] sm:$0xff]
    %v1562 = vld [vmem:[#allocation5 + $0xf58] sm:$0xff]
    %v1563 = vld [vmem:[#allocation5 + $0xf60] sm:$0xff]
    %v1564 = vld [vmem:[#allocation5 + $0xf68] sm:$0xff]
    %v1565 = vld [vmem:[#allocation5 + $0xf70] sm:$0xff]
    %v1566 = vld [vmem:[#allocation5 + $0xf78] sm:$0xff]
    %v1567 = vld [vmem:[#allocation5 + $0xf80] sm:$0xff]
    %v1568 = vld [vmem:[#allocation5 + $0xf88] sm:$0xff]
    %v1569 = vld [vmem:[#allocation5 + $0xf90] sm:$0xff]
    %v1570 = vld [vmem:[#allocation5 + $0xf98] sm:$0xff]
    %v1571 = vld [vmem:[#allocation5 + $0xfa0] sm:$0xff]
    %v1572 = vld [vmem:[#allocation5 + $0xfa8] sm:$0xff]
    %v1573 = vld [vmem:[#allocation5 + $0xfb0] sm:$0xff]
    %v1574 = vld [vmem:[#allocation5 + $0xfb8] sm:$0xff]
    %v1575 = vld [vmem:[#allocation5 + $0xfc0] sm:$0xff]
    %v1576 = vld [vmem:[#allocation5 + $0xfc8] sm:$0xff]
    %v1577 = vld [vmem:[#allocation5 + $0xfd0] sm:$0xff]
    %v1578 = vld [vmem:[#allocation5 + $0xfd8] sm:$0xff]
    %v1579 = vld [vmem:[#allocation5 + $0xfe0] sm:$0xff]
    %v1580 = vld [vmem:[#allocation5 + $0xfe8] sm:$0xff]
    %v1581 = vld [vmem:[#allocation5 + $0xff0] sm:$0xff]
    %v1582 = vld [vmem:[#allocation5 + $0xff8] sm:$0xff]
    %1583 = vmatprep.subr.mxu0 0.0
    %1584 = vmatpush1.msra.mxu0 %v1071
    %1585 = vmatprep.subr.mxu0 0.0
    %1586 = vmatpush1.msra.mxu0 %v1072
    %1587 = vmatprep.subr.mxu0 0.0
    %1588 = vmatpush1.msra.mxu0 %v1073
    %1589 = vmatprep.subr.mxu0 0.0
    %1590 = vmatpush1.msra.mxu0 %v1074
    %1591 = vmatprep.subr.mxu0 0.0
    %1592 = vmatpush1.msra.mxu0 %v1075
    %1593 = vmatprep.subr.mxu0 0.0
    %1594 = vmatpush1.msra.mxu0 %v1076
    %1595 = vmatprep.subr.mxu0 0.0
    %1596 = vmatpush1.msra.mxu0 %v1077
    %1597 = vmatprep.subr.mxu0 0.0
    %1598 = vmatpush1.msra.mxu0 %v1078
    %1599 = vmatprep.subr.mxu0 0.0
    %1600 = vmatpush1.msra.mxu0 %v1079
    %1601 = vmatprep.subr.mxu0 0.0
    %1602 = vmatpush1.msra.mxu0 %v1080
    %1603 = vmatprep.subr.mxu0 0.0
    %1604 = vmatpush1.msra.mxu0 %v1081
    %1605 = vmatprep.subr.mxu0 0.0
    %1606 = vmatpush1.msra.mxu0 %v1082
    %1607 = vmatprep.subr.mxu0 0.0
    %1608 = vmatpush1.msra.mxu0 %v1083
    %1609 = vmatprep.subr.mxu0 0.0
    %1610 = vmatpush1.msra.mxu0 %v1084
    %1611 = vmatprep.subr.mxu0 0.0
    %1612 = vmatpush1.msra.mxu0 %v1085
    %1613 = vmatprep.subr.mxu0 0.0
    %1614 = vmatpush1.msra.mxu0 %v1086
    %1615 = vmatprep.subr.mxu0 0.0
    %1616 = vmatpush1.msra.mxu0 %v1087
    %1617 = vmatprep.subr.mxu0 0.0
    %1618 = vmatpush1.msra.mxu0 %v1088
    %1619 = vmatprep.subr.mxu0 0.0
    %1620 = vmatpush1.msra.mxu0 %v1089
    %1621 = vmatprep.subr.mxu0 0.0
    %1622 = vmatpush1.msra.mxu0 %v1090
    %1623 = vmatprep.subr.mxu0 0.0
    %1624 = vmatpush1.msra.mxu0 %v1091
    %1625 = vmatprep.subr.mxu0 0.0
    %1626 = vmatpush1.msra.mxu0 %v1092
    %1627 = vmatprep.subr.mxu0 0.0
    %1628 = vmatpush1.msra.mxu0 %v1093
    %1629 = vmatprep.subr.mxu0 0.0
    %1630 = vmatpush1.msra.mxu0 %v1094
    %1631 = vmatprep.subr.mxu0 0.0
    %1632 = vmatpush1.msra.mxu0 %v1095
    %1633 = vmatprep.subr.mxu0 0.0
    %1634 = vmatpush1.msra.mxu0 %v1096
    %1635 = vmatprep.subr.mxu0 0.0
    %1636 = vmatpush1.msra.mxu0 %v1097
    %1637 = vmatprep.subr.mxu0 0.0
    %1638 = vmatpush1.msra.mxu0 %v1098
    %1639 = vmatprep.subr.mxu0 0.0
    %1640 = vmatpush1.msra.mxu0 %v1099
    %1641 = vmatprep.subr.mxu0 0.0
    %1642 = vmatpush1.msra.mxu0 %v1100
    %1643 = vmatprep.subr.mxu0 0.0
    %1644 = vmatpush1.msra.mxu0 %v1101
    %1645 = vmatprep.subr.mxu0 0.0
    %1646 = vmatpush1.msra.mxu0 %v1102
    %1647 = vmatprep.mubr.f32.mxu0 %v944
    %1648 = vmatmul.mubr.f32.gmra.mrb[0].mxu0 %v943
    %v1649 = vpop.f32.mrb[0].mxu0
    %v1650 = vadd.f32 0.0, %v1649
    %v1651 = vpop.f32.mrb[0].mxu0
    %1652 = vmatprep.mubr.f32.mxu0 %v976
    %1653 = vmatmul.mubr.f32.gmra.mrb[0].mxu0 %v975
    %v1654 = vpop.f32.mrb[0].mxu0
    %v1655 = vadd.f32 0.0, %v1654
    %v1656 = vpop.f32.mrb[0].mxu0
    %1657 = vmatprep.mubr.f32.mxu0 %v1008
    %1658 = vmatmul.mubr.f32.gmra.mrb[0].mxu0 %v1007
    %v1659 = vpop.f32.mrb[0].mxu0
    %v1660 = vadd.f32 0.0, %v1659
    %v1661 = vpop.f32.mrb[0].mxu0
    %1662 = vmatprep.mubr.f32.mxu0 %v1040
    %1663 = vmatmul.mubr.f32.gmra.mrb[0].mxu0 %v1039
    %v1664 = vpop.f32.mrb[0].mxu0
    %v1665 = vadd.f32 0.0, %v1664
    %v1666 = vpop.f32.mrb[0].mxu0
    %1667 = vdwg.mxu0
    %1668 = vmatprep.subr.mxu0 0.0
    %1669 = vmatpush1.msra.mxu0 %v1103
    %1670 = vmatprep.subr.mxu0 0.0
    %1671 = vmatpush1.msra.mxu0 %v1104
    %1672 = vmatprep.subr.mxu0 0.0
    %1673 = vmatpush1.msra.mxu0 %v1105
    %1674 = vmatprep.subr.mxu0 0.0
    %1675 = vmatpush1.msra.mxu0 %v1106
    %1676 = vmatprep.subr.mxu0 0.0
    %1677 = vmatpush1.msra.mxu0 %v1107
    %1678 = vmatprep.subr.mxu0 0.0
    %1679 = vmatpush1.msra.mxu0 %v1108
    %1680 = vmatprep.subr.mxu0 0.0
    %1681 = vmatpush1.msra.mxu0 %v1109
    %1682 = vmatprep.subr.mxu0 0.0
    %1683 = vmatpush1.msra.mxu0 %v1110
    %1684 = vmatprep.subr.mxu0 0.0
    %1685 = vmatpush1.msra.mxu0 %v1111
    %1686 = vmatprep.subr.mxu0 0.0
    %1687 = vmatpush1.msra.mxu0 %v1112
    %1688 = vmatprep.subr.mxu0 0.0
    %1689 = vmatpush1.msra.mxu0 %v1113
    %1690 = vmatprep.subr.mxu0 0.0
    %1691 = vmatpush1.msra.mxu0 %v1114
    %1692 = vmatprep.subr.mxu0 0.0
    %1693 = vmatpush1.msra.mxu0 %v1115
    %1694 = vmatprep.subr.mxu0 0.0
    %1695 = vmatpush1.msra.mxu0 %v1116
    %1696 = vmatprep.subr.mxu0 0.0
    %1697 = vmatpush1.msra.mxu0 %v1117
    %1698 = vmatprep.subr.mxu0 0.0
    %1699 = vmatpush1.msra.mxu0 %v1118
    %1700 = vmatprep.subr.mxu0 0.0
    %1701 = vmatpush1.msra.mxu0 %v1119
    %1702 = vmatprep.subr.mxu0 0.0
    %1703 = vmatpush1.msra.mxu0 %v1120
    %1704 = vmatprep.subr.mxu0 0.0
    %1705 = vmatpush1.msra.mxu0 %v1121
    %1706 = vmatprep.subr.mxu0 0.0
    %1707 = vmatpush1.msra.mxu0 %v1122
    %1708 = vmatprep.subr.mxu0 0.0
    %1709 = vmatpush1.msra.mxu0 %v1123
    %1710 = vmatprep.subr.mxu0 0.0
    %1711 = vmatpush1.msra.mxu0 %v1124
    %1712 = vmatprep.subr.mxu0 0.0
    %1713 = vmatpush1.msra.mxu0 %v1125
    %1714 = vmatprep.subr.mxu0 0.0
    %1715 = vmatpush1.msra.mxu0 %v1126
    %1716 = vmatprep.subr.mxu0 0.0
    %1717 = vmatpush1.msra.mxu0 %v1127
    %1718 = vmatprep.subr.mxu0 0.0
    %1719 = vmatpush1.msra.mxu0 %v1128
    %1720 = vmatprep.subr.mxu0 0.0
    %1721 = vmatpush1.msra.mxu0 %v1129
    %1722 = vmatprep.subr.mxu0 0.0
    %1723 = vmatpush1.msra.mxu0 %v1130
    %1724 = vmatprep.subr.mxu0 0.0
    %1725 = vmatpush1.msra.mxu0 %v1131
    %1726 = vmatprep.subr.mxu0 0.0
    %1727 = vmatpush1.msra.mxu0 %v1132
    %1728 = vmatprep.subr.mxu0 0.0
    %1729 = vmatpush1.msra.mxu0 %v1133
    %1730 = vmatprep.subr.mxu0 0.0
    %1731 = vmatpush1.msra.mxu0 %v1134
    %1732 = vmatprep.mubr.f32.mxu0 %v946
    %1733 = vmatmul.mubr.f32.gmra.mrb[0].mxu0 %v945
    %v1734 = vpop.f32.mrb[0].mxu0
    %v1735 = vadd.f32 %v1650, %v1734
    %v1736 = vpop.f32.mrb[0].mxu0
    %1737 = vmatprep.mubr.f32.mxu0 %v978
    %1738 = vmatmul.mubr.f32.gmra.mrb[0].mxu0 %v977
    %v1739 = vpop.f32.mrb[0].mxu0
    %v1740 = vadd.f32 %v1655, %v1739
    %v1741 = vpop.f32.mrb[0].mxu0
    %1742 = vmatprep.mubr.f32.mxu0 %v1010
    %1743 = vmatmul.mubr.f32.gmra.mrb[0].mxu0 %v1009
    %v1744 = vpop.f32.mrb[0].mxu0
    %v1745 = vadd.f32 %v1660, %v1744
    %v1746 = vpop.f32.mrb[0].mxu0
    %1747 = vmatprep.mubr.f32.mxu0 %v1042
    %1748 = vmatmul.mubr.f32.gmra.mrb[0].mxu0 %v1041
    %v1749 = vpop.f32.mrb[0].mxu0
    %v1750 = vadd.f32 %v1665, %v1749
    %v1751 = vpop.f32.mrb[0].mxu0
    %1752 = vdwg.mxu0
    %1753 = vmatprep.subr.mxu0 0.0
    %1754 = vmatpush1.msra.mxu0 %v1135
    %1755 = vmatprep.subr.mxu0 0.0
    %1756 = vmatpush1.msra.mxu0 %v1136
    %1757 = vmatprep.subr.mxu0 0.0
    %1758 = vmatpush1.msra.mxu0 %v1137
    %1759 = vmatprep.subr.mxu0 0.0
    %1760 = vmatpush1.msra.mxu0 %v1138
    %1761 = vmatprep.subr.mxu0 0.0
    %1762 = vmatpush1.msra.mxu0 %v1139
    %1763 = vmatprep.subr.mxu0 0.0
    %1764 = vmatpush1.msra.mxu0 %v1140
    %1765 = vmatprep.subr.mxu0 0.0
    %1766 = vmatpush1.msra.mxu0 %v1141
    %1767 = vmatprep.subr.mxu0 0.0
    %1768 = vmatpush1.msra.mxu0 %v1142
    %1769 = vmatprep.subr.mxu0 0.0
    %1770 = vmatpush1.msra.mxu0 %v1143
    %1771 = vmatprep.subr.mxu0 0.0
    %1772 = vmatpush1.msra.mxu0 %v1144
    %1773 = vmatprep.subr.mxu0 0.0
    %1774 = vmatpush1.msra.mxu0 %v1145
    %1775 = vmatprep.subr.mxu0 0.0
    %1776 = vmatpush1.msra.mxu0 %v1146
    %1777 = vmatprep.subr.mxu0 0.0
    %1778 = vmatpush1.msra.mxu0 %v1147
    %1779 = vmatprep.subr.mxu0 0.0
    %1780 = vmatpush1.msra.mxu0 %v1148
    %1781 = vmatprep.subr.mxu0 0.0
    %1782 = vmatpush1.msra.mxu0 %v1149
    %1783 = vmatprep.subr.mxu0 0.0
    %1784 = vmatpush1.msra.mxu0 %v1150
    %1785 = vmatprep.subr.mxu0 0.0
    %1786 = vmatpush1.msra.mxu0 %v1151
    %1787 = vmatprep.subr.mxu0 0.0
    %1788 = vmatpush1.msra.mxu0 %v1152
    %1789 = vmatprep.subr.mxu0 0.0
    %1790 = vmatpush1.msra.mxu0 %v1153
    %1791 = vmatprep.subr.mxu0 0.0
    %1792 = vmatpush1.msra.mxu0 %v1154
    %1793 = vmatprep.subr.mxu0 0.0
    %1794 = vmatpush1.msra.mxu0 %v1155
    %1795 = vmatprep.subr.mxu0 0.0
    %1796 = vmatpush1.msra.mxu0 %v1156
    %1797 = vmatprep.subr.mxu0 0.0
    %1798 = vmatpush1.msra.mxu0 %v1157
    %1799 = vmatprep.subr.mxu0 0.0
    %1800 = vmatpush1.msra.mxu0 %v1158
    %1801 = vmatprep.subr.mxu0 0.0
    %1802 = vmatpush1.msra.mxu0 %v1159
    %1803 = vmatprep.subr.mxu0 0.0
    %1804 = vmatpush1.msra.mxu0 %v1160
    %1805 = vmatprep.subr.mxu0 0.0
    %1806 = vmatpush1.msra.mxu0 %v1161
    %1807 = vmatprep.subr.mxu0 0.0
    %1808 = vmatpush1.msra.mxu0 %v1162
    %1809 = vmatprep.subr.mxu0 0.0
    %1810 = vmatpush1.msra.mxu0 %v1163
    %1811 = vmatprep.subr.mxu0 0.0
    %1812 = vmatpush1.msra.mxu0 %v1164
    %1813 = vmatprep.subr.mxu0 0.0
    %1814 = vmatpush1.msra.mxu0 %v1165
    %1815 = vmatprep.subr.mxu0 0.0
    %1816 = vmatpush1.msra.mxu0 %v1166
    %1817 = vmatprep.mubr.f32.mxu0 %v948
    %1818 = vmatmul.mubr.f32.gmra.mrb[0].mxu0 %v947
    %v1819 = vpop.f32.mrb[0].mxu0
    %v1820 = vadd.f32 %v1735, %v1819
    %v1821 = vpop.f32.mrb[0].mxu0
    %1822 = vmatprep.mubr.f32.mxu0 %v980
    %1823 = vmatmul.mubr.f32.gmra.mrb[0].mxu0 %v979
    %v1824 = vpop.f32.mrb[0].mxu0
    %v1825 = vadd.f32 %v1740, %v1824
    %v1826 = vpop.f32.mrb[0].mxu0
    %1827 = vmatprep.mubr.f32.mxu0 %v1012
    %1828 = vmatmul.mubr.f32.gmra.mrb[0].mxu0 %v1011
    %v1829 = vpop.f32.mrb[0].mxu0
    %v1830 = vadd.f32 %v1745, %v1829
    %v1831 = vpop.f32.mrb[0].mxu0
    %1832 = vmatprep.mubr.f32.mxu0 %v1044
    %1833 = vmatmul.mubr.f32.gmra.mrb[0].mxu0 %v1043
    %v1834 = vpop.f32.mrb[0].mxu0
    %v1835 = vadd.f32 %v1750, %v1834
    %v1836 = vpop.f32.mrb[0].mxu0
    %1837 = vdwg.mxu0
    %1838 = vmatprep.subr.mxu0 0.0
    %1839 = vmatpush1.msra.mxu0 %v1167
    %1840 = vmatprep.subr.mxu0 0.0
    %1841 = vmatpush1.msra.mxu0 %v1168
    %1842 = vmatprep.subr.mxu0 0.0
    %1843 = vmatpush1.msra.mxu0 %v1169
    %1844 = vmatprep.subr.mxu0 0.0
    %1845 = vmatpush1.msra.mxu0 %v1170
    %1846 = vmatprep.subr.mxu0 0.0
    %1847 = vmatpush1.msra.mxu0 %v1171
    %1848 = vmatprep.subr.mxu0 0.0
    %1849 = vmatpush1.msra.mxu0 %v1172
    %1850 = vmatprep.subr.mxu0 0.0
    %1851 = vmatpush1.msra.mxu0 %v1173
    %1852 = vmatprep.subr.mxu0 0.0
    %1853 = vmatpush1.msra.mxu0 %v1174
    %1854 = vmatprep.subr.mxu0 0.0
    %1855 = vmatpush1.msra.mxu0 %v1175
    %1856 = vmatprep.subr.mxu0 0.0
    %1857 = vmatpush1.msra.mxu0 %v1176
    %1858 = vmatprep.subr.mxu0 0.0
    %1859 = vmatpush1.msra.mxu0 %v1177
    %1860 = vmatprep.subr.mxu0 0.0
    %1861 = vmatpush1.msra.mxu0 %v1178
    %1862 = vmatprep.subr.mxu0 0.0
    %1863 = vmatpush1.msra.mxu0 %v1179
    %1864 = vmatprep.subr.mxu0 0.0
    %1865 = vmatpush1.msra.mxu0 %v1180
    %1866 = vmatprep.subr.mxu0 0.0
    %1867 = vmatpush1.msra.mxu0 %v1181
    %1868 = vmatprep.subr.mxu0 0.0
    %1869 = vmatpush1.msra.mxu0 %v1182
    %1870 = vmatprep.subr.mxu0 0.0
    %1871 = vmatpush1.msra.mxu0 %v1183
    %1872 = vmatprep.subr.mxu0 0.0
    %1873 = vmatpush1.msra.mxu0 %v1184
    %1874 = vmatprep.subr.mxu0 0.0
    %1875 = vmatpush1.msra.mxu0 %v1185
    %1876 = vmatprep.subr.mxu0 0.0
    %1877 = vmatpush1.msra.mxu0 %v1186
    %1878 = vmatprep.subr.mxu0 0.0
    %1879 = vmatpush1.msra.mxu0 %v1187
    %1880 = vmatprep.subr.mxu0 0.0
    %1881 = vmatpush1.msra.mxu0 %v1188
    %1882 = vmatprep.subr.mxu0 0.0
    %1883 = vmatpush1.msra.mxu0 %v1189
    %1884 = vmatprep.subr.mxu0 0.0
    %1885 = vmatpush1.msra.mxu0 %v1190
    %1886 = vmatprep.subr.mxu0 0.0
    %1887 = vmatpush1.msra.mxu0 %v1191
    %1888 = vmatprep.subr.mxu0 0.0
    %1889 = vmatpush1.msra.mxu0 %v1192
    %1890 = vmatprep.subr.mxu0 0.0
    %1891 = vmatpush1.msra.mxu0 %v1193
    %1892 = vmatprep.subr.mxu0 0.0
    %1893 = vmatpush1.msra.mxu0 %v1194
    %1894 = vmatprep.subr.mxu0 0.0
    %1895 = vmatpush1.msra.mxu0 %v1195
    %1896 = vmatprep.subr.mxu0 0.0
    %1897 = vmatpush1.msra.mxu0 %v1196
    %1898 = vmatprep.subr.mxu0 0.0
    %1899 = vmatpush1.msra.mxu0 %v1197
    %1900 = vmatprep.subr.mxu0 0.0
    %1901 = vmatpush1.msra.mxu0 %v1198
    %1902 = vmatprep.mubr.f32.mxu0 %v950
    %1903 = vmatmul.mubr.f32.gmra.mrb[0].mxu0 %v949
    %v1904 = vpop.f32.mrb[0].mxu0
    %v1905 = vadd.f32 %v1820, %v1904
    %v1906 = vpop.f32.mrb[0].mxu0
    %1907 = vmatprep.mubr.f32.mxu0 %v982
    %1908 = vmatmul.mubr.f32.gmra.mrb[0].mxu0 %v981
    %v1909 = vpop.f32.mrb[0].mxu0
    %v1910 = vadd.f32 %v1825, %v1909
    %v1911 = vpop.f32.mrb[0].mxu0
    %1912 = vmatprep.mubr.f32.mxu0 %v1014
    %1913 = vmatmul.mubr.f32.gmra.mrb[0].mxu0 %v1013
    %v1914 = vpop.f32.mrb[0].mxu0
    %v1915 = vadd.f32 %v1830, %v1914
    %v1916 = vpop.f32.mrb[0].mxu0
    %1917 = vmatprep.mubr.f32.mxu0 %v1046
    %1918 = vmatmul.mubr.f32.gmra.mrb[0].mxu0 %v1045
    %v1919 = vpop.f32.mrb[0].mxu0
    %v1920 = vadd.f32 %v1835, %v1919
    %v1921 = vpop.f32.mrb[0].mxu0
    %1922 = vdwg.mxu0
    %1923 = vmatprep.subr.mxu0 0.0
    %1924 = vmatpush1.msra.mxu0 %v1199
    %1925 = vmatprep.subr.mxu0 0.0
    %1926 = vmatpush1.msra.mxu0 %v1200
    %1927 = vmatprep.subr.mxu0 0.0
    %1928 = vmatpush1.msra.mxu0 %v1201
    %1929 = vmatprep.subr.mxu0 0.0
    %1930 = vmatpush1.msra.mxu0 %v1202
    %1931 = vmatprep.subr.mxu0 0.0
    %1932 = vmatpush1.msra.mxu0 %v1203
    %1933 = vmatprep.subr.mxu0 0.0
    %1934 = vmatpush1.msra.mxu0 %v1204
    %1935 = vmatprep.subr.mxu0 0.0
    %1936 = vmatpush1.msra.mxu0 %v1205
    %1937 = vmatprep.subr.mxu0 0.0
    %1938 = vmatpush1.msra.mxu0 %v1206
    %1939 = vmatprep.subr.mxu0 0.0
    %1940 = vmatpush1.msra.mxu0 %v1207
    %1941 = vmatprep.subr.mxu0 0.0
    %1942 = vmatpush1.msra.mxu0 %v1208
    %1943 = vmatprep.subr.mxu0 0.0
    %1944 = vmatpush1.msra.mxu0 %v1209
    %1945 = vmatprep.subr.mxu0 0.0
    %1946 = vmatpush1.msra.mxu0 %v1210
    %1947 = vmatprep.subr.mxu0 0.0
    %1948 = vmatpush1.msra.mxu0 %v1211
    %1949 = vmatprep.subr.mxu0 0.0
    %1950 = vmatpush1.msra.mxu0 %v1212
    %1951 = vmatprep.subr.mxu0 0.0
    %1952 = vmatpush1.msra.mxu0 %v1213
    %1953 = vmatprep.subr.mxu0 0.0
    %1954 = vmatpush1.msra.mxu0 %v1214
    %1955 = vmatprep.subr.mxu0 0.0
    %1956 = vmatpush1.msra.mxu0 %v1215
    %1957 = vmatprep.subr.mxu0 0.0
    %1958 = vmatpush1.msra.mxu0 %v1216
    %1959 = vmatprep.subr.mxu0 0.0
    %1960 = vmatpush1.msra.mxu0 %v1217
    %1961 = vmatprep.subr.mxu0 0.0
    %1962 = vmatpush1.msra.mxu0 %v1218
    %1963 = vmatprep.subr.mxu0 0.0
    %1964 = vmatpush1.msra.mxu0 %v1219
    %1965 = vmatprep.subr.mxu0 0.0
    %1966 = vmatpush1.msra.mxu0 %v1220
    %1967 = vmatprep.subr.mxu0 0.0
    %1968 = vmatpush1.msra.mxu0 %v1221
    %1969 = vmatprep.subr.mxu0 0.0
    %1970 = vmatpush1.msra.mxu0 %v1222
    %1971 = vmatprep.subr.mxu0 0.0
    %1972 = vmatpush1.msra.mxu0 %v1223
    %1973 = vmatprep.subr.mxu0 0.0
    %1974 = vmatpush1.msra.mxu0 %v1224
    %1975 = vmatprep.subr.mxu0 0.0
    %1976 = vmatpush1.msra.mxu0 %v1225
    %1977 = vmatprep.subr.mxu0 0.0
    %1978 = vmatpush1.msra.mxu0 %v1226
    %1979 = vmatprep.subr.mxu0 0.0
    %1980 = vmatpush1.msra.mxu0 %v1227
    %1981 = vmatprep.subr.mxu0 0.0
    %1982 = vmatpush1.msra.mxu0 %v1228
    %1983 = vmatprep.subr.mxu0 0.0
    %1984 = vmatpush1.msra.mxu0 %v1229
    %1985 = vmatprep.subr.mxu0 0.0
    %1986 = vmatpush1.msra.mxu0 %v1230
    %1987 = vmatprep.mubr.f32.mxu0 %v952
    %1988 = vmatmul.mubr.f32.gmra.mrb[0].mxu0 %v951
    %v1989 = vpop.f32.mrb[0].mxu0
    %v1990 = vadd.f32 %v1905, %v1989
    %v1991 = vpop.f32.mrb[0].mxu0
    %1992 = vmatprep.mubr.f32.mxu0 %v984
    %1993 = vmatmul.mubr.f32.gmra.mrb[0].mxu0 %v983
    %v1994 = vpop.f32.mrb[0].mxu0
    %v1995 = vadd.f32 %v1910, %v1994
    %v1996 = vpop.f32.mrb[0].mxu0
    %1997 = vmatprep.mubr.f32.mxu0 %v1016
    %1998 = vmatmul.mubr.f32.gmra.mrb[0].mxu0 %v1015
    %v1999 = vpop.f32.mrb[0].mxu0
    %v2000 = vadd.f32 %v1915, %v1999
    %v2001 = vpop.f32.mrb[0].mxu0
    %2002 = vmatprep.mubr.f32.mxu0 %v1048
    %2003 = vmatmul.mubr.f32.gmra.mrb[0].mxu0 %v1047
    %v2004 = vpop.f32.mrb[0].mxu0
    %v2005 = vadd.f32 %v1920, %v2004
    %v2006 = vpop.f32.mrb[0].mxu0
    %2007 = vdwg.mxu0
    %2008 = vmatprep.subr.mxu0 0.0
    %2009 = vmatpush1.msra.mxu0 %v1231
    %2010 = vmatprep.subr.mxu0 0.0
    %2011 = vmatpush1.msra.mxu0 %v1232
    %2012 = vmatprep.subr.mxu0 0.0
    %2013 = vmatpush1.msra.mxu0 %v1233
    %2014 = vmatprep.subr.mxu0 0.0
    %2015 = vmatpush1.msra.mxu0 %v1234
    %2016 = vmatprep.subr.mxu0 0.0
    %2017 = vmatpush1.msra.mxu0 %v1235
    %2018 = vmatprep.subr.mxu0 0.0
    %2019 = vmatpush1.msra.mxu0 %v1236
    %2020 = vmatprep.subr.mxu0 0.0
    %2021 = vmatpush1.msra.mxu0 %v1237
    %2022 = vmatprep.subr.mxu0 0.0
    %2023 = vmatpush1.msra.mxu0 %v1238
    %2024 = vmatprep.subr.mxu0 0.0
    %2025 = vmatpush1.msra.mxu0 %v1239
    %2026 = vmatprep.subr.mxu0 0.0
    %2027 = vmatpush1.msra.mxu0 %v1240
    %2028 = vmatprep.subr.mxu0 0.0
    %2029 = vmatpush1.msra.mxu0 %v1241
    %2030 = vmatprep.subr.mxu0 0.0
    %2031 = vmatpush1.msra.mxu0 %v1242
    %2032 = vmatprep.subr.mxu0 0.0
    %2033 = vmatpush1.msra.mxu0 %v1243
    %2034 = vmatprep.subr.mxu0 0.0
    %2035 = vmatpush1.msra.mxu0 %v1244
    %2036 = vmatprep.subr.mxu0 0.0
    %2037 = vmatpush1.msra.mxu0 %v1245
    %2038 = vmatprep.subr.mxu0 0.0
    %2039 = vmatpush1.msra.mxu0 %v1246
    %2040 = vmatprep.subr.mxu0 0.0
    %2041 = vmatpush1.msra.mxu0 %v1247
    %2042 = vmatprep.subr.mxu0 0.0
    %2043 = vmatpush1.msra.mxu0 %v1248
    %2044 = vmatprep.subr.mxu0 0.0
    %2045 = vmatpush1.msra.mxu0 %v1249
    %2046 = vmatprep.subr.mxu0 0.0
    %2047 = vmatpush1.msra.mxu0 %v1250
    %2048 = vmatprep.subr.mxu0 0.0
    %2049 = vmatpush1.msra.mxu0 %v1251
    %2050 = vmatprep.subr.mxu0 0.0
    %2051 = vmatpush1.msra.mxu0 %v1252
    %2052 = vmatprep.subr.mxu0 0.0
    %2053 = vmatpush1.msra.mxu0 %v1253
    %2054 = vmatprep.subr.mxu0 0.0
    %2055 = vmatpush1.msra.mxu0 %v1254
    %2056 = vmatprep.subr.mxu0 0.0
    %2057 = vmatpush1.msra.mxu0 %v1255
    %2058 = vmatprep.subr.mxu0 0.0
    %2059 = vmatpush1.msra.mxu0 %v1256
    %2060 = vmatprep.subr.mxu0 0.0
    %2061 = vmatpush1.msra.mxu0 %v1257
    %2062 = vmatprep.subr.mxu0 0.0
    %2063 = vmatpush1.msra.mxu0 %v1258
    %2064 = vmatprep.subr.mxu0 0.0
    %2065 = vmatpush1.msra.mxu0 %v1259
    %2066 = vmatprep.subr.mxu0 0.0
    %2067 = vmatpush1.msra.mxu0 %v1260
    %2068 = vmatprep.subr.mxu0 0.0
    %2069 = vmatpush1.msra.mxu0 %v1261
    %2070 = vmatprep.subr.mxu0 0.0
    %2071 = vmatpush1.msra.mxu0 %v1262
    %2072 = vmatprep.mubr.f32.mxu0 %v954
    %2073 = vmatmul.mubr.f32.gmra.mrb[0].mxu0 %v953
    %v2074 = vpop.f32.mrb[0].mxu0
    %v2075 = vadd.f32 %v1990, %v2074
    %v2076 = vpop.f32.mrb[0].mxu0
    %2077 = vmatprep.mubr.f32.mxu0 %v986
    %2078 = vmatmul.mubr.f32.gmra.mrb[0].mxu0 %v985
    %v2079 = vpop.f32.mrb[0].mxu0
    %v2080 = vadd.f32 %v1995, %v2079
    %v2081 = vpop.f32.mrb[0].mxu0
    %2082 = vmatprep.mubr.f32.mxu0 %v1018
    %2083 = vmatmul.mubr.f32.gmra.mrb[0].mxu0 %v1017
    %v2084 = vpop.f32.mrb[0].mxu0
    %v2085 = vadd.f32 %v2000, %v2084
    %v2086 = vpop.f32.mrb[0].mxu0
    %2087 = vmatprep.mubr.f32.mxu0 %v1050
    %2088 = vmatmul.mubr.f32.gmra.mrb[0].mxu0 %v1049
    %v2089 = vpop.f32.mrb[0].mxu0
    %v2090 = vadd.f32 %v2005, %v2089
    %v2091 = vpop.f32.mrb[0].mxu0
    %2092 = vdwg.mxu0
    %2093 = vmatprep.subr.mxu0 0.0
    %2094 = vmatpush1.msra.mxu0 %v1263
    %2095 = vmatprep.subr.mxu0 0.0
    %2096 = vmatpush1.msra.mxu0 %v1264
    %2097 = vmatprep.subr.mxu0 0.0
    %2098 = vmatpush1.msra.mxu0 %v1265
    %2099 = vmatprep.subr.mxu0 0.0
    %2100 = vmatpush1.msra.mxu0 %v1266
    %2101 = vmatprep.subr.mxu0 0.0
    %2102 = vmatpush1.msra.mxu0 %v1267
    %2103 = vmatprep.subr.mxu0 0.0
    %2104 = vmatpush1.msra.mxu0 %v1268
    %2105 = vmatprep.subr.mxu0 0.0
    %2106 = vmatpush1.msra.mxu0 %v1269
    %2107 = vmatprep.subr.mxu0 0.0
    %2108 = vmatpush1.msra.mxu0 %v1270
    %2109 = vmatprep.subr.mxu0 0.0
    %2110 = vmatpush1.msra.mxu0 %v1271
    %2111 = vmatprep.subr.mxu0 0.0
    %2112 = vmatpush1.msra.mxu0 %v1272
    %2113 = vmatprep.subr.mxu0 0.0
    %2114 = vmatpush1.msra.mxu0 %v1273
    %2115 = vmatprep.subr.mxu0 0.0
    %2116 = vmatpush1.msra.mxu0 %v1274
    %2117 = vmatprep.subr.mxu0 0.0
    %2118 = vmatpush1.msra.mxu0 %v1275
    %2119 = vmatprep.subr.mxu0 0.0
    %2120 = vmatpush1.msra.mxu0 %v1276
    %2121 = vmatprep.subr.mxu0 0.0
    %2122 = vmatpush1.msra.mxu0 %v1277
    %2123 = vmatprep.subr.mxu0 0.0
    %2124 = vmatpush1.msra.mxu0 %v1278
    %2125 = vmatprep.subr.mxu0 0.0
    %2126 = vmatpush1.msra.mxu0 %v1279
    %2127 = vmatprep.subr.mxu0 0.0
    %2128 = vmatpush1.msra.mxu0 %v1280
    %2129 = vmatprep.subr.mxu0 0.0
    %2130 = vmatpush1.msra.mxu0 %v1281
    %2131 = vmatprep.subr.mxu0 0.0
    %2132 = vmatpush1.msra.mxu0 %v1282
    %2133 = vmatprep.subr.mxu0 0.0
    %2134 = vmatpush1.msra.mxu0 %v1283
    %2135 = vmatprep.subr.mxu0 0.0
    %2136 = vmatpush1.msra.mxu0 %v1284
    %2137 = vmatprep.subr.mxu0 0.0
    %2138 = vmatpush1.msra.mxu0 %v1285
    %2139 = vmatprep.subr.mxu0 0.0
    %2140 = vmatpush1.msra.mxu0 %v1286
    %2141 = vmatprep.subr.mxu0 0.0
    %2142 = vmatpush1.msra.mxu0 %v1287
    %2143 = vmatprep.subr.mxu0 0.0
    %2144 = vmatpush1.msra.mxu0 %v1288
    %2145 = vmatprep.subr.mxu0 0.0
    %2146 = vmatpush1.msra.mxu0 %v1289
    %2147 = vmatprep.subr.mxu0 0.0
    %2148 = vmatpush1.msra.mxu0 %v1290
    %2149 = vmatprep.subr.mxu0 0.0
    %2150 = vmatpush1.msra.mxu0 %v1291
    %2151 = vmatprep.subr.mxu0 0.0
    %2152 = vmatpush1.msra.mxu0 %v1292
    %2153 = vmatprep.subr.mxu0 0.0
    %2154 = vmatpush1.msra.mxu0 %v1293
    %2155 = vmatprep.subr.mxu0 0.0
    %2156 = vmatpush1.msra.mxu0 %v1294
    %2157 = vmatprep.mubr.f32.mxu0 %v956
    %2158 = vmatmul.mubr.f32.gmra.mrb[0].mxu0 %v955
    %v2159 = vpop.f32.mrb[0].mxu0
    %v2160 = vadd.f32 %v2075, %v2159
    %v2161 = vpop.f32.mrb[0].mxu0
    %2162 = vmatprep.mubr.f32.mxu0 %v988
    %2163 = vmatmul.mubr.f32.gmra.mrb[0].mxu0 %v987
    %v2164 = vpop.f32.mrb[0].mxu0
    %v2165 = vadd.f32 %v2080, %v2164
    %v2166 = vpop.f32.mrb[0].mxu0
    %2167 = vmatprep.mubr.f32.mxu0 %v1020
    %2168 = vmatmul.mubr.f32.gmra.mrb[0].mxu0 %v1019
    %v2169 = vpop.f32.mrb[0].mxu0
    %v2170 = vadd.f32 %v2085, %v2169
    %v2171 = vpop.f32.mrb[0].mxu0
    %2172 = vmatprep.mubr.f32.mxu0 %v1052
    %2173 = vmatmul.mubr.f32.gmra.mrb[0].mxu0 %v1051
    %v2174 = vpop.f32.mrb[0].mxu0
    %v2175 = vadd.f32 %v2090, %v2174
    %v2176 = vpop.f32.mrb[0].mxu0
    %2177 = vdwg.mxu0
    %2178 = vmatprep.subr.mxu0 0.0
    %2179 = vmatpush1.msra.mxu0 %v1295
    %2180 = vmatprep.subr.mxu0 0.0
    %2181 = vmatpush1.msra.mxu0 %v1296
    %2182 = vmatprep.subr.mxu0 0.0
    %2183 = vmatpush1.msra.mxu0 %v1297
    %2184 = vmatprep.subr.mxu0 0.0
    %2185 = vmatpush1.msra.mxu0 %v1298
    %2186 = vmatprep.subr.mxu0 0.0
    %2187 = vmatpush1.msra.mxu0 %v1299
    %2188 = vmatprep.subr.mxu0 0.0
    %2189 = vmatpush1.msra.mxu0 %v1300
    %2190 = vmatprep.subr.mxu0 0.0
    %2191 = vmatpush1.msra.mxu0 %v1301
    %2192 = vmatprep.subr.mxu0 0.0
    %2193 = vmatpush1.msra.mxu0 %v1302
    %2194 = vmatprep.subr.mxu0 0.0
    %2195 = vmatpush1.msra.mxu0 %v1303
    %2196 = vmatprep.subr.mxu0 0.0
    %2197 = vmatpush1.msra.mxu0 %v1304
    %2198 = vmatprep.subr.mxu0 0.0
    %2199 = vmatpush1.msra.mxu0 %v1305
    %2200 = vmatprep.subr.mxu0 0.0
    %2201 = vmatpush1.msra.mxu0 %v1306
    %2202 = vmatprep.subr.mxu0 0.0
    %2203 = vmatpush1.msra.mxu0 %v1307
    %2204 = vmatprep.subr.mxu0 0.0
    %2205 = vmatpush1.msra.mxu0 %v1308
    %2206 = vmatprep.subr.mxu0 0.0
    %2207 = vmatpush1.msra.mxu0 %v1309
    %2208 = vmatprep.subr.mxu0 0.0
    %2209 = vmatpush1.msra.mxu0 %v1310
    %2210 = vmatprep.subr.mxu0 0.0
    %2211 = vmatpush1.msra.mxu0 %v1311
    %2212 = vmatprep.subr.mxu0 0.0
    %2213 = vmatpush1.msra.mxu0 %v1312
    %2214 = vmatprep.subr.mxu0 0.0
    %2215 = vmatpush1.msra.mxu0 %v1313
    %2216 = vmatprep.subr.mxu0 0.0
    %2217 = vmatpush1.msra.mxu0 %v1314
    %2218 = vmatprep.subr.mxu0 0.0
    %2219 = vmatpush1.msra.mxu0 %v1315
    %2220 = vmatprep.subr.mxu0 0.0
    %2221 = vmatpush1.msra.mxu0 %v1316
    %2222 = vmatprep.subr.mxu0 0.0
    %2223 = vmatpush1.msra.mxu0 %v1317
    %2224 = vmatprep.subr.mxu0 0.0
    %2225 = vmatpush1.msra.mxu0 %v1318
    %2226 = vmatprep.subr.mxu0 0.0
    %2227 = vmatpush1.msra.mxu0 %v1319
    %2228 = vmatprep.subr.mxu0 0.0
    %2229 = vmatpush1.msra.mxu0 %v1320
    %2230 = vmatprep.subr.mxu0 0.0
    %2231 = vmatpush1.msra.mxu0 %v1321
    %2232 = vmatprep.subr.mxu0 0.0
    %2233 = vmatpush1.msra.mxu0 %v1322
    %2234 = vmatprep.subr.mxu0 0.0
    %2235 = vmatpush1.msra.mxu0 %v1323
    %2236 = vmatprep.subr.mxu0 0.0
    %2237 = vmatpush1.msra.mxu0 %v1324
    %2238 = vmatprep.subr.mxu0 0.0
    %2239 = vmatpush1.msra.mxu0 %v1325
    %2240 = vmatprep.subr.mxu0 0.0
    %2241 = vmatpush1.msra.mxu0 %v1326
    %2242 = vmatprep.mubr.f32.mxu0 %v958
    %2243 = vmatmul.mubr.f32.gmra.mrb[0].mxu0 %v957
    %v2244 = vpop.f32.mrb[0].mxu0
    %v2245 = vadd.f32 %v2160, %v2244
    %v2246 = vpop.f32.mrb[0].mxu0
    %2247 = vmatprep.mubr.f32.mxu0 %v990
    %2248 = vmatmul.mubr.f32.gmra.mrb[0].mxu0 %v989
    %v2249 = vpop.f32.mrb[0].mxu0
    %v2250 = vadd.f32 %v2165, %v2249
    %v2251 = vpop.f32.mrb[0].mxu0
    %2252 = vmatprep.mubr.f32.mxu0 %v1022
    %2253 = vmatmul.mubr.f32.gmra.mrb[0].mxu0 %v1021
    %v2254 = vpop.f32.mrb[0].mxu0
    %v2255 = vadd.f32 %v2170, %v2254
    %v2256 = vpop.f32.mrb[0].mxu0
    %2257 = vmatprep.mubr.f32.mxu0 %v1054
    %2258 = vmatmul.mubr.f32.gmra.mrb[0].mxu0 %v1053
    %v2259 = vpop.f32.mrb[0].mxu0
    %v2260 = vadd.f32 %v2175, %v2259
    %v2261 = vpop.f32.mrb[0].mxu0
    %2262 = vdwg.mxu0
    %2263 = vmatprep.subr.mxu0 0.0
    %2264 = vmatpush1.msra.mxu0 %v1327
    %2265 = vmatprep.subr.mxu0 0.0
    %2266 = vmatpush1.msra.mxu0 %v1328
    %2267 = vmatprep.subr.mxu0 0.0
    %2268 = vmatpush1.msra.mxu0 %v1329
    %2269 = vmatprep.subr.mxu0 0.0
    %2270 = vmatpush1.msra.mxu0 %v1330
    %2271 = vmatprep.subr.mxu0 0.0
    %2272 = vmatpush1.msra.mxu0 %v1331
    %2273 = vmatprep.subr.mxu0 0.0
    %2274 = vmatpush1.msra.mxu0 %v1332
    %2275 = vmatprep.subr.mxu0 0.0
    %2276 = vmatpush1.msra.mxu0 %v1333
    %2277 = vmatprep.subr.mxu0 0.0
    %2278 = vmatpush1.msra.mxu0 %v1334
    %2279 = vmatprep.subr.mxu0 0.0
    %2280 = vmatpush1.msra.mxu0 %v1335
    %2281 = vmatprep.subr.mxu0 0.0
    %2282 = vmatpush1.msra.mxu0 %v1336
    %2283 = vmatprep.subr.mxu0 0.0
    %2284 = vmatpush1.msra.mxu0 %v1337
    %2285 = vmatprep.subr.mxu0 0.0
    %2286 = vmatpush1.msra.mxu0 %v1338
    %2287 = vmatprep.subr.mxu0 0.0
    %2288 = vmatpush1.msra.mxu0 %v1339
    %2289 = vmatprep.subr.mxu0 0.0
    %2290 = vmatpush1.msra.mxu0 %v1340
    %2291 = vmatprep.subr.mxu0 0.0
    %2292 = vmatpush1.msra.mxu0 %v1341
    %2293 = vmatprep.subr.mxu0 0.0
    %2294 = vmatpush1.msra.mxu0 %v1342
    %2295 = vmatprep.subr.mxu0 0.0
    %2296 = vmatpush1.msra.mxu0 %v1343
    %2297 = vmatprep.subr.mxu0 0.0
    %2298 = vmatpush1.msra.mxu0 %v1344
    %2299 = vmatprep.subr.mxu0 0.0
    %2300 = vmatpush1.msra.mxu0 %v1345
    %2301 = vmatprep.subr.mxu0 0.0
    %2302 = vmatpush1.msra.mxu0 %v1346
    %2303 = vmatprep.subr.mxu0 0.0
    %2304 = vmatpush1.msra.mxu0 %v1347
    %2305 = vmatprep.subr.mxu0 0.0
    %2306 = vmatpush1.msra.mxu0 %v1348
    %2307 = vmatprep.subr.mxu0 0.0
    %2308 = vmatpush1.msra.mxu0 %v1349
    %2309 = vmatprep.subr.mxu0 0.0
    %2310 = vmatpush1.msra.mxu0 %v1350
    %2311 = vmatprep.subr.mxu0 0.0
    %2312 = vmatpush1.msra.mxu0 %v1351
    %2313 = vmatprep.subr.mxu0 0.0
    %2314 = vmatpush1.msra.mxu0 %v1352
    %2315 = vmatprep.subr.mxu0 0.0
    %2316 = vmatpush1.msra.mxu0 %v1353
    %2317 = vmatprep.subr.mxu0 0.0
    %2318 = vmatpush1.msra.mxu0 %v1354
    %2319 = vmatprep.subr.mxu0 0.0
    %2320 = vmatpush1.msra.mxu0 %v1355
    %2321 = vmatprep.subr.mxu0 0.0
    %2322 = vmatpush1.msra.mxu0 %v1356
    %2323 = vmatprep.subr.mxu0 0.0
    %2324 = vmatpush1.msra.mxu0 %v1357
    %2325 = vmatprep.subr.mxu0 0.0
    %2326 = vmatpush1.msra.mxu0 %v1358
    %2327 = vmatprep.mubr.f32.mxu0 %v960
    %2328 = vmatmul.mubr.f32.gmra.mrb[0].mxu0 %v959
    %v2329 = vpop.f32.mrb[0].mxu0
    %v2330 = vadd.f32 %v2245, %v2329
    %v2331 = vpop.f32.mrb[0].mxu0
    %2332 = vmatprep.mubr.f32.mxu0 %v992
    %2333 = vmatmul.mubr.f32.gmra.mrb[0].mxu0 %v991
    %v2334 = vpop.f32.mrb[0].mxu0
    %v2335 = vadd.f32 %v2250, %v2334
    %v2336 = vpop.f32.mrb[0].mxu0
    %2337 = vmatprep.mubr.f32.mxu0 %v1024
    %2338 = vmatmul.mubr.f32.gmra.mrb[0].mxu0 %v1023
    %v2339 = vpop.f32.mrb[0].mxu0
    %v2340 = vadd.f32 %v2255, %v2339
    %v2341 = vpop.f32.mrb[0].mxu0
    %2342 = vmatprep.mubr.f32.mxu0 %v1056
    %2343 = vmatmul.mubr.f32.gmra.mrb[0].mxu0 %v1055
    %v2344 = vpop.f32.mrb[0].mxu0
    %v2345 = vadd.f32 %v2260, %v2344
    %v2346 = vpop.f32.mrb[0].mxu0
    %2347 = vdwg.mxu0
    %2348 = vmatprep.subr.mxu0 0.0
    %2349 = vmatpush1.msra.mxu0 %v1359
    %2350 = vmatprep.subr.mxu0 0.0
    %2351 = vmatpush1.msra.mxu0 %v1360
    %2352 = vmatprep.subr.mxu0 0.0
    %2353 = vmatpush1.msra.mxu0 %v1361
    %2354 = vmatprep.subr.mxu0 0.0
    %2355 = vmatpush1.msra.mxu0 %v1362
    %2356 = vmatprep.subr.mxu0 0.0
    %2357 = vmatpush1.msra.mxu0 %v1363
    %2358 = vmatprep.subr.mxu0 0.0
    %2359 = vmatpush1.msra.mxu0 %v1364
    %2360 = vmatprep.subr.mxu0 0.0
    %2361 = vmatpush1.msra.mxu0 %v1365
    %2362 = vmatprep.subr.mxu0 0.0
    %2363 = vmatpush1.msra.mxu0 %v1366
    %2364 = vmatprep.subr.mxu0 0.0
    %2365 = vmatpush1.msra.mxu0 %v1367
    %2366 = vmatprep.subr.mxu0 0.0
    %2367 = vmatpush1.msra.mxu0 %v1368
    %2368 = vmatprep.subr.mxu0 0.0
    %2369 = vmatpush1.msra.mxu0 %v1369
    %2370 = vmatprep.subr.mxu0 0.0
    %2371 = vmatpush1.msra.mxu0 %v1370
    %2372 = vmatprep.subr.mxu0 0.0
    %2373 = vmatpush1.msra.mxu0 %v1371
    %2374 = vmatprep.subr.mxu0 0.0
    %2375 = vmatpush1.msra.mxu0 %v1372
    %2376 = vmatprep.subr.mxu0 0.0
    %2377 = vmatpush1.msra.mxu0 %v1373
    %2378 = vmatprep.subr.mxu0 0.0
    %2379 = vmatpush1.msra.mxu0 %v1374
    %2380 = vmatprep.subr.mxu0 0.0
    %2381 = vmatpush1.msra.mxu0 %v1375
    %2382 = vmatprep.subr.mxu0 0.0
    %2383 = vmatpush1.msra.mxu0 %v1376
    %2384 = vmatprep.subr.mxu0 0.0
    %2385 = vmatpush1.msra.mxu0 %v1377
    %2386 = vmatprep.subr.mxu0 0.0
    %2387 = vmatpush1.msra.mxu0 %v1378
    %2388 = vmatprep.subr.mxu0 0.0
    %2389 = vmatpush1.msra.mxu0 %v1379
    %2390 = vmatprep.subr.mxu0 0.0
    %2391 = vmatpush1.msra.mxu0 %v1380
    %2392 = vmatprep.subr.mxu0 0.0
    %2393 = vmatpush1.msra.mxu0 %v1381
    %2394 = vmatprep.subr.mxu0 0.0
    %2395 = vmatpush1.msra.mxu0 %v1382
    %2396 = vmatprep.subr.mxu0 0.0
    %2397 = vmatpush1.msra.mxu0 %v1383
    %2398 = vmatprep.subr.mxu0 0.0
    %2399 = vmatpush1.msra.mxu0 %v1384
    %2400 = vmatprep.subr.mxu0 0.0
    %2401 = vmatpush1.msra.mxu0 %v1385
    %2402 = vmatprep.subr.mxu0 0.0
    %2403 = vmatpush1.msra.mxu0 %v1386
    %2404 = vmatprep.subr.mxu0 0.0
    %2405 = vmatpush1.msra.mxu0 %v1387
    %2406 = vmatprep.subr.mxu0 0.0
    %2407 = vmatpush1.msra.mxu0 %v1388
    %2408 = vmatprep.subr.mxu0 0.0
    %2409 = vmatpush1.msra.mxu0 %v1389
    %2410 = vmatprep.subr.mxu0 0.0
    %2411 = vmatpush1.msra.mxu0 %v1390
    %2412 = vmatprep.mubr.f32.mxu0 %v962
    %2413 = vmatmul.mubr.f32.gmra.mrb[0].mxu0 %v961
    %v2414 = vpop.f32.mrb[0].mxu0
    %v2415 = vadd.f32 %v2330, %v2414
    %v2416 = vpop.f32.mrb[0].mxu0
    %2417 = vmatprep.mubr.f32.mxu0 %v994
    %2418 = vmatmul.mubr.f32.gmra.mrb[0].mxu0 %v993
    %v2419 = vpop.f32.mrb[0].mxu0
    %v2420 = vadd.f32 %v2335, %v2419
    %v2421 = vpop.f32.mrb[0].mxu0
    %2422 = vmatprep.mubr.f32.mxu0 %v1026
    %2423 = vmatmul.mubr.f32.gmra.mrb[0].mxu0 %v1025
    %v2424 = vpop.f32.mrb[0].mxu0
    %v2425 = vadd.f32 %v2340, %v2424
    %v2426 = vpop.f32.mrb[0].mxu0
    %2427 = vmatprep.mubr.f32.mxu0 %v1058
    %2428 = vmatmul.mubr.f32.gmra.mrb[0].mxu0 %v1057
    %v2429 = vpop.f32.mrb[0].mxu0
    %v2430 = vadd.f32 %v2345, %v2429
    %v2431 = vpop.f32.mrb[0].mxu0
    %2432 = vdwg.mxu0
    %2433 = vmatprep.subr.mxu0 0.0
    %2434 = vmatpush1.msra.mxu0 %v1391
    %2435 = vmatprep.subr.mxu0 0.0
    %2436 = vmatpush1.msra.mxu0 %v1392
    %2437 = vmatprep.subr.mxu0 0.0
    %2438 = vmatpush1.msra.mxu0 %v1393
    %2439 = vmatprep.subr.mxu0 0.0
    %2440 = vmatpush1.msra.mxu0 %v1394
    %2441 = vmatprep.subr.mxu0 0.0
    %2442 = vmatpush1.msra.mxu0 %v1395
    %2443 = vmatprep.subr.mxu0 0.0
    %2444 = vmatpush1.msra.mxu0 %v1396
    %2445 = vmatprep.subr.mxu0 0.0
    %2446 = vmatpush1.msra.mxu0 %v1397
    %2447 = vmatprep.subr.mxu0 0.0
    %2448 = vmatpush1.msra.mxu0 %v1398
    %2449 = vmatprep.subr.mxu0 0.0
    %2450 = vmatpush1.msra.mxu0 %v1399
    %2451 = vmatprep.subr.mxu0 0.0
    %2452 = vmatpush1.msra.mxu0 %v1400
    %2453 = vmatprep.subr.mxu0 0.0
    %2454 = vmatpush1.msra.mxu0 %v1401
    %2455 = vmatprep.subr.mxu0 0.0
    %2456 = vmatpush1.msra.mxu0 %v1402
    %2457 = vmatprep.subr.mxu0 0.0
    %2458 = vmatpush1.msra.mxu0 %v1403
    %2459 = vmatprep.subr.mxu0 0.0
    %2460 = vmatpush1.msra.mxu0 %v1404
    %2461 = vmatprep.subr.mxu0 0.0
    %2462 = vmatpush1.msra.mxu0 %v1405
    %2463 = vmatprep.subr.mxu0 0.0
    %2464 = vmatpush1.msra.mxu0 %v1406
    %2465 = vmatprep.subr.mxu0 0.0
    %2466 = vmatpush1.msra.mxu0 %v1407
    %2467 = vmatprep.subr.mxu0 0.0
    %2468 = vmatpush1.msra.mxu0 %v1408
    %2469 = vmatprep.subr.mxu0 0.0
    %2470 = vmatpush1.msra.mxu0 %v1409
    %2471 = vmatprep.subr.mxu0 0.0
    %2472 = vmatpush1.msra.mxu0 %v1410
    %2473 = vmatprep.subr.mxu0 0.0
    %2474 = vmatpush1.msra.mxu0 %v1411
    %2475 = vmatprep.subr.mxu0 0.0
    %2476 = vmatpush1.msra.mxu0 %v1412
    %2477 = vmatprep.subr.mxu0 0.0
    %2478 = vmatpush1.msra.mxu0 %v1413
    %2479 = vmatprep.subr.mxu0 0.0
    %2480 = vmatpush1.msra.mxu0 %v1414
    %2481 = vmatprep.subr.mxu0 0.0
    %2482 = vmatpush1.msra.mxu0 %v1415
    %2483 = vmatprep.subr.mxu0 0.0
    %2484 = vmatpush1.msra.mxu0 %v1416
    %2485 = vmatprep.subr.mxu0 0.0
    %2486 = vmatpush1.msra.mxu0 %v1417
    %2487 = vmatprep.subr.mxu0 0.0
    %2488 = vmatpush1.msra.mxu0 %v1418
    %2489 = vmatprep.subr.mxu0 0.0
    %2490 = vmatpush1.msra.mxu0 %v1419
    %2491 = vmatprep.subr.mxu0 0.0
    %2492 = vmatpush1.msra.mxu0 %v1420
    %2493 = vmatprep.subr.mxu0 0.0
    %2494 = vmatpush1.msra.mxu0 %v1421
    %2495 = vmatprep.subr.mxu0 0.0
    %2496 = vmatpush1.msra.mxu0 %v1422
    %2497 = vmatprep.mubr.f32.mxu0 %v964
    %2498 = vmatmul.mubr.f32.gmra.mrb[0].mxu0 %v963
    %v2499 = vpop.f32.mrb[0].mxu0
    %v2500 = vadd.f32 %v2415, %v2499
    %v2501 = vpop.f32.mrb[0].mxu0
    %2502 = vmatprep.mubr.f32.mxu0 %v996
    %2503 = vmatmul.mubr.f32.gmra.mrb[0].mxu0 %v995
    %v2504 = vpop.f32.mrb[0].mxu0
    %v2505 = vadd.f32 %v2420, %v2504
    %v2506 = vpop.f32.mrb[0].mxu0
    %2507 = vmatprep.mubr.f32.mxu0 %v1028
    %2508 = vmatmul.mubr.f32.gmra.mrb[0].mxu0 %v1027
    %v2509 = vpop.f32.mrb[0].mxu0
    %v2510 = vadd.f32 %v2425, %v2509
    %v2511 = vpop.f32.mrb[0].mxu0
    %2512 = vmatprep.mubr.f32.mxu0 %v1060
    %2513 = vmatmul.mubr.f32.gmra.mrb[0].mxu0 %v1059
    %v2514 = vpop.f32.mrb[0].mxu0
    %v2515 = vadd.f32 %v2430, %v2514
    %v2516 = vpop.f32.mrb[0].mxu0
    %2517 = vdwg.mxu0
    %2518 = vmatprep.subr.mxu0 0.0
    %2519 = vmatpush1.msra.mxu0 %v1423
    %2520 = vmatprep.subr.mxu0 0.0
    %2521 = vmatpush1.msra.mxu0 %v1424
    %2522 = vmatprep.subr.mxu0 0.0
    %2523 = vmatpush1.msra.mxu0 %v1425
    %2524 = vmatprep.subr.mxu0 0.0
    %2525 = vmatpush1.msra.mxu0 %v1426
    %2526 = vmatprep.subr.mxu0 0.0
    %2527 = vmatpush1.msra.mxu0 %v1427
    %2528 = vmatprep.subr.mxu0 0.0
    %2529 = vmatpush1.msra.mxu0 %v1428
    %2530 = vmatprep.subr.mxu0 0.0
    %2531 = vmatpush1.msra.mxu0 %v1429
    %2532 = vmatprep.subr.mxu0 0.0
    %2533 = vmatpush1.msra.mxu0 %v1430
    %2534 = vmatprep.subr.mxu0 0.0
    %2535 = vmatpush1.msra.mxu0 %v1431
    %2536 = vmatprep.subr.mxu0 0.0
    %2537 = vmatpush1.msra.mxu0 %v1432
    %2538 = vmatprep.subr.mxu0 0.0
    %2539 = vmatpush1.msra.mxu0 %v1433
    %2540 = vmatprep.subr.mxu0 0.0
    %2541 = vmatpush1.msra.mxu0 %v1434
    %2542 = vmatprep.subr.mxu0 0.0
    %2543 = vmatpush1.msra.mxu0 %v1435
    %2544 = vmatprep.subr.mxu0 0.0
    %2545 = vmatpush1.msra.mxu0 %v1436
    %2546 = vmatprep.subr.mxu0 0.0
    %2547 = vmatpush1.msra.mxu0 %v1437
    %2548 = vmatprep.subr.mxu0 0.0
    %2549 = vmatpush1.msra.mxu0 %v1438
    %2550 = vmatprep.subr.mxu0 0.0
    %2551 = vmatpush1.msra.mxu0 %v1439
    %2552 = vmatprep.subr.mxu0 0.0
    %2553 = vmatpush1.msra.mxu0 %v1440
    %2554 = vmatprep.subr.mxu0 0.0
    %2555 = vmatpush1.msra.mxu0 %v1441
    %2556 = vmatprep.subr.mxu0 0.0
    %2557 = vmatpush1.msra.mxu0 %v1442
    %2558 = vmatprep.subr.mxu0 0.0
    %2559 = vmatpush1.msra.mxu0 %v1443
    %2560 = vmatprep.subr.mxu0 0.0
    %2561 = vmatpush1.msra.mxu0 %v1444
    %2562 = vmatprep.subr.mxu0 0.0
    %2563 = vmatpush1.msra.mxu0 %v1445
    %2564 = vmatprep.subr.mxu0 0.0
    %2565 = vmatpush1.msra.mxu0 %v1446
    %2566 = vmatprep.subr.mxu0 0.0
    %2567 = vmatpush1.msra.mxu0 %v1447
    %2568 = vmatprep.subr.mxu0 0.0
    %2569 = vmatpush1.msra.mxu0 %v1448
    %2570 = vmatprep.subr.mxu0 0.0
    %2571 = vmatpush1.msra.mxu0 %v1449
    %2572 = vmatprep.subr.mxu0 0.0
    %2573 = vmatpush1.msra.mxu0 %v1450
    %2574 = vmatprep.subr.mxu0 0.0
    %2575 = vmatpush1.msra.mxu0 %v1451
    %2576 = vmatprep.subr.mxu0 0.0
    %2577 = vmatpush1.msra.mxu0 %v1452
    %2578 = vmatprep.subr.mxu0 0.0
    %2579 = vmatpush1.msra.mxu0 %v1453
    %2580 = vmatprep.subr.mxu0 0.0
    %2581 = vmatpush1.msra.mxu0 %v1454
    %2582 = vmatprep.mubr.f32.mxu0 %v966
    %2583 = vmatmul.mubr.f32.gmra.mrb[0].mxu0 %v965
    %v2584 = vpop.f32.mrb[0].mxu0
    %v2585 = vadd.f32 %v2500, %v2584
    %v2586 = vpop.f32.mrb[0].mxu0
    %2587 = vmatprep.mubr.f32.mxu0 %v998
    %2588 = vmatmul.mubr.f32.gmra.mrb[0].mxu0 %v997
    %v2589 = vpop.f32.mrb[0].mxu0
    %v2590 = vadd.f32 %v2505, %v2589
    %v2591 = vpop.f32.mrb[0].mxu0
    %2592 = vmatprep.mubr.f32.mxu0 %v1030
    %2593 = vmatmul.mubr.f32.gmra.mrb[0].mxu0 %v1029
    %v2594 = vpop.f32.mrb[0].mxu0
    %v2595 = vadd.f32 %v2510, %v2594
    %v2596 = vpop.f32.mrb[0].mxu0
    %2597 = vmatprep.mubr.f32.mxu0 %v1062
    %2598 = vmatmul.mubr.f32.gmra.mrb[0].mxu0 %v1061
    %v2599 = vpop.f32.mrb[0].mxu0
    %v2600 = vadd.f32 %v2515, %v2599
    %v2601 = vpop.f32.mrb[0].mxu0
    %2602 = vdwg.mxu0
    %2603 = vmatprep.subr.mxu0 0.0
    %2604 = vmatpush1.msra.mxu0 %v1455
    %2605 = vmatprep.subr.mxu0 0.0
    %2606 = vmatpush1.msra.mxu0 %v1456
    %2607 = vmatprep.subr.mxu0 0.0
    %2608 = vmatpush1.msra.mxu0 %v1457
    %2609 = vmatprep.subr.mxu0 0.0
    %2610 = vmatpush1.msra.mxu0 %v1458
    %2611 = vmatprep.subr.mxu0 0.0
    %2612 = vmatpush1.msra.mxu0 %v1459
    %2613 = vmatprep.subr.mxu0 0.0
    %2614 = vmatpush1.msra.mxu0 %v1460
    %2615 = vmatprep.subr.mxu0 0.0
    %2616 = vmatpush1.msra.mxu0 %v1461
    %2617 = vmatprep.subr.mxu0 0.0
    %2618 = vmatpush1.msra.mxu0 %v1462
    %2619 = vmatprep.subr.mxu0 0.0
    %2620 = vmatpush1.msra.mxu0 %v1463
    %2621 = vmatprep.subr.mxu0 0.0
    %2622 = vmatpush1.msra.mxu0 %v1464
    %2623 = vmatprep.subr.mxu0 0.0
    %2624 = vmatpush1.msra.mxu0 %v1465
    %2625 = vmatprep.subr.mxu0 0.0
    %2626 = vmatpush1.msra.mxu0 %v1466
    %2627 = vmatprep.subr.mxu0 0.0
    %2628 = vmatpush1.msra.mxu0 %v1467
    %2629 = vmatprep.subr.mxu0 0.0
    %2630 = vmatpush1.msra.mxu0 %v1468
    %2631 = vmatprep.subr.mxu0 0.0
    %2632 = vmatpush1.msra.mxu0 %v1469
    %2633 = vmatprep.subr.mxu0 0.0
    %2634 = vmatpush1.msra.mxu0 %v1470
    %2635 = vmatprep.subr.mxu0 0.0
    %2636 = vmatpush1.msra.mxu0 %v1471
    %2637 = vmatprep.subr.mxu0 0.0
    %2638 = vmatpush1.msra.mxu0 %v1472
    %2639 = vmatprep.subr.mxu0 0.0
    %2640 = vmatpush1.msra.mxu0 %v1473
    %2641 = vmatprep.subr.mxu0 0.0
    %2642 = vmatpush1.msra.mxu0 %v1474
    %2643 = vmatprep.subr.mxu0 0.0
    %2644 = vmatpush1.msra.mxu0 %v1475
    %2645 = vmatprep.subr.mxu0 0.0
    %2646 = vmatpush1.msra.mxu0 %v1476
    %2647 = vmatprep.subr.mxu0 0.0
    %2648 = vmatpush1.msra.mxu0 %v1477
    %2649 = vmatprep.subr.mxu0 0.0
    %2650 = vmatpush1.msra.mxu0 %v1478
    %2651 = vmatprep.subr.mxu0 0.0
    %2652 = vmatpush1.msra.mxu0 %v1479
    %2653 = vmatprep.subr.mxu0 0.0
    %2654 = vmatpush1.msra.mxu0 %v1480
    %2655 = vmatprep.subr.mxu0 0.0
    %2656 = vmatpush1.msra.mxu0 %v1481
    %2657 = vmatprep.subr.mxu0 0.0
    %2658 = vmatpush1.msra.mxu0 %v1482
    %2659 = vmatprep.subr.mxu0 0.0
    %2660 = vmatpush1.msra.mxu0 %v1483
    %2661 = vmatprep.subr.mxu0 0.0
    %2662 = vmatpush1.msra.mxu0 %v1484
    %2663 = vmatprep.subr.mxu0 0.0
    %2664 = vmatpush1.msra.mxu0 %v1485
    %2665 = vmatprep.subr.mxu0 0.0
    %2666 = vmatpush1.msra.mxu0 %v1486
    %2667 = vmatprep.mubr.f32.mxu0 %v968
    %2668 = vmatmul.mubr.f32.gmra.mrb[0].mxu0 %v967
    %v2669 = vpop.f32.mrb[0].mxu0
    %v2670 = vadd.f32 %v2585, %v2669
    %v2671 = vpop.f32.mrb[0].mxu0
    %2672 = vmatprep.mubr.f32.mxu0 %v1000
    %2673 = vmatmul.mubr.f32.gmra.mrb[0].mxu0 %v999
    %v2674 = vpop.f32.mrb[0].mxu0
    %v2675 = vadd.f32 %v2590, %v2674
    %v2676 = vpop.f32.mrb[0].mxu0
    %2677 = vmatprep.mubr.f32.mxu0 %v1032
    %2678 = vmatmul.mubr.f32.gmra.mrb[0].mxu0 %v1031
    %v2679 = vpop.f32.mrb[0].mxu0
    %v2680 = vadd.f32 %v2595, %v2679
    %v2681 = vpop.f32.mrb[0].mxu0
    %2682 = vmatprep.mubr.f32.mxu0 %v1064
    %2683 = vmatmul.mubr.f32.gmra.mrb[0].mxu0 %v1063
    %v2684 = vpop.f32.mrb[0].mxu0
    %v2685 = vadd.f32 %v2600, %v2684
    %v2686 = vpop.f32.mrb[0].mxu0
    %2687 = vdwg.mxu0
    %2688 = vmatprep.subr.mxu0 0.0
    %2689 = vmatpush1.msra.mxu0 %v1487
    %2690 = vmatprep.subr.mxu0 0.0
    %2691 = vmatpush1.msra.mxu0 %v1488
    %2692 = vmatprep.subr.mxu0 0.0
    %2693 = vmatpush1.msra.mxu0 %v1489
    %2694 = vmatprep.subr.mxu0 0.0
    %2695 = vmatpush1.msra.mxu0 %v1490
    %2696 = vmatprep.subr.mxu0 0.0
    %2697 = vmatpush1.msra.mxu0 %v1491
    %2698 = vmatprep.subr.mxu0 0.0
    %2699 = vmatpush1.msra.mxu0 %v1492
    %2700 = vmatprep.subr.mxu0 0.0
    %2701 = vmatpush1.msra.mxu0 %v1493
    %2702 = vmatprep.subr.mxu0 0.0
    %2703 = vmatpush1.msra.mxu0 %v1494
    %2704 = vmatprep.subr.mxu0 0.0
    %2705 = vmatpush1.msra.mxu0 %v1495
    %2706 = vmatprep.subr.mxu0 0.0
    %2707 = vmatpush1.msra.mxu0 %v1496
    %2708 = vmatprep.subr.mxu0 0.0
    %2709 = vmatpush1.msra.mxu0 %v1497
    %2710 = vmatprep.subr.mxu0 0.0
    %2711 = vmatpush1.msra.mxu0 %v1498
    %2712 = vmatprep.subr.mxu0 0.0
    %2713 = vmatpush1.msra.mxu0 %v1499
    %2714 = vmatprep.subr.mxu0 0.0
    %2715 = vmatpush1.msra.mxu0 %v1500
    %2716 = vmatprep.subr.mxu0 0.0
    %2717 = vmatpush1.msra.mxu0 %v1501
    %2718 = vmatprep.subr.mxu0 0.0
    %2719 = vmatpush1.msra.mxu0 %v1502
    %2720 = vmatprep.subr.mxu0 0.0
    %2721 = vmatpush1.msra.mxu0 %v1503
    %2722 = vmatprep.subr.mxu0 0.0
    %2723 = vmatpush1.msra.mxu0 %v1504
    %2724 = vmatprep.subr.mxu0 0.0
    %2725 = vmatpush1.msra.mxu0 %v1505
    %2726 = vmatprep.subr.mxu0 0.0
    %2727 = vmatpush1.msra.mxu0 %v1506
    %2728 = vmatprep.subr.mxu0 0.0
    %2729 = vmatpush1.msra.mxu0 %v1507
    %2730 = vmatprep.subr.mxu0 0.0
    %2731 = vmatpush1.msra.mxu0 %v1508
    %2732 = vmatprep.subr.mxu0 0.0
    %2733 = vmatpush1.msra.mxu0 %v1509
    %2734 = vmatprep.subr.mxu0 0.0
    %2735 = vmatpush1.msra.mxu0 %v1510
    %2736 = vmatprep.subr.mxu0 0.0
    %2737 = vmatpush1.msra.mxu0 %v1511
    %2738 = vmatprep.subr.mxu0 0.0
    %2739 = vmatpush1.msra.mxu0 %v1512
    %2740 = vmatprep.subr.mxu0 0.0
    %2741 = vmatpush1.msra.mxu0 %v1513
    %2742 = vmatprep.subr.mxu0 0.0
    %2743 = vmatpush1.msra.mxu0 %v1514
    %2744 = vmatprep.subr.mxu0 0.0
    %2745 = vmatpush1.msra.mxu0 %v1515
    %2746 = vmatprep.subr.mxu0 0.0
    %2747 = vmatpush1.msra.mxu0 %v1516
    %2748 = vmatprep.subr.mxu0 0.0
    %2749 = vmatpush1.msra.mxu0 %v1517
    %2750 = vmatprep.subr.mxu0 0.0
    %2751 = vmatpush1.msra.mxu0 %v1518
    %2752 = vmatprep.mubr.f32.mxu0 %v970
    %2753 = vmatmul.mubr.f32.gmra.mrb[0].mxu0 %v969
    %v2754 = vpop.f32.mrb[0].mxu0
    %v2755 = vadd.f32 %v2670, %v2754
    %v2756 = vpop.f32.mrb[0].mxu0
    %2757 = vmatprep.mubr.f32.mxu0 %v1002
    %2758 = vmatmul.mubr.f32.gmra.mrb[0].mxu0 %v1001
    %v2759 = vpop.f32.mrb[0].mxu0
    %v2760 = vadd.f32 %v2675, %v2759
    %v2761 = vpop.f32.mrb[0].mxu0
    %2762 = vmatprep.mubr.f32.mxu0 %v1034
    %2763 = vmatmul.mubr.f32.gmra.mrb[0].mxu0 %v1033
    %v2764 = vpop.f32.mrb[0].mxu0
    %v2765 = vadd.f32 %v2680, %v2764
    %v2766 = vpop.f32.mrb[0].mxu0
    %2767 = vmatprep.mubr.f32.mxu0 %v1066
    %2768 = vmatmul.mubr.f32.gmra.mrb[0].mxu0 %v1065
    %v2769 = vpop.f32.mrb[0].mxu0
    %v2770 = vadd.f32 %v2685, %v2769
    %v2771 = vpop.f32.mrb[0].mxu0
    %2772 = vdwg.mxu0
    %2773 = vmatprep.subr.mxu0 0.0
    %2774 = vmatpush1.msra.mxu0 %v1519
    %2775 = vmatprep.subr.mxu0 0.0
    %2776 = vmatpush1.msra.mxu0 %v1520
    %2777 = vmatprep.subr.mxu0 0.0
    %2778 = vmatpush1.msra.mxu0 %v1521
    %2779 = vmatprep.subr.mxu0 0.0
    %2780 = vmatpush1.msra.mxu0 %v1522
    %2781 = vmatprep.subr.mxu0 0.0
    %2782 = vmatpush1.msra.mxu0 %v1523
    %2783 = vmatprep.subr.mxu0 0.0
    %2784 = vmatpush1.msra.mxu0 %v1524
    %2785 = vmatprep.subr.mxu0 0.0
    %2786 = vmatpush1.msra.mxu0 %v1525
    %2787 = vmatprep.subr.mxu0 0.0
    %2788 = vmatpush1.msra.mxu0 %v1526
    %2789 = vmatprep.subr.mxu0 0.0
    %2790 = vmatpush1.msra.mxu0 %v1527
    %2791 = vmatprep.subr.mxu0 0.0
    %2792 = vmatpush1.msra.mxu0 %v1528
    %2793 = vmatprep.subr.mxu0 0.0
    %2794 = vmatpush1.msra.mxu0 %v1529
    %2795 = vmatprep.subr.mxu0 0.0
    %2796 = vmatpush1.msra.mxu0 %v1530
    %2797 = vmatprep.subr.mxu0 0.0
    %2798 = vmatpush1.msra.mxu0 %v1531
    %2799 = vmatprep.subr.mxu0 0.0
    %2800 = vmatpush1.msra.mxu0 %v1532
    %2801 = vmatprep.subr.mxu0 0.0
    %2802 = vmatpush1.msra.mxu0 %v1533
    %2803 = vmatprep.subr.mxu0 0.0
    %2804 = vmatpush1.msra.mxu0 %v1534
    %2805 = vmatprep.subr.mxu0 0.0
    %2806 = vmatpush1.msra.mxu0 %v1535
    %2807 = vmatprep.subr.mxu0 0.0
    %2808 = vmatpush1.msra.mxu0 %v1536
    %2809 = vmatprep.subr.mxu0 0.0
    %2810 = vmatpush1.msra.mxu0 %v1537
    %2811 = vmatprep.subr.mxu0 0.0
    %2812 = vmatpush1.msra.mxu0 %v1538
    %2813 = vmatprep.subr.mxu0 0.0
    %2814 = vmatpush1.msra.mxu0 %v1539
    %2815 = vmatprep.subr.mxu0 0.0
    %2816 = vmatpush1.msra.mxu0 %v1540
    %2817 = vmatprep.subr.mxu0 0.0
    %2818 = vmatpush1.msra.mxu0 %v1541
    %2819 = vmatprep.subr.mxu0 0.0
    %2820 = vmatpush1.msra.mxu0 %v1542
    %2821 = vmatprep.subr.mxu0 0.0
    %2822 = vmatpush1.msra.mxu0 %v1543
    %2823 = vmatprep.subr.mxu0 0.0
    %2824 = vmatpush1.msra.mxu0 %v1544
    %2825 = vmatprep.subr.mxu0 0.0
    %2826 = vmatpush1.msra.mxu0 %v1545
    %2827 = vmatprep.subr.mxu0 0.0
    %2828 = vmatpush1.msra.mxu0 %v1546
    %2829 = vmatprep.subr.mxu0 0.0
    %2830 = vmatpush1.msra.mxu0 %v1547
    %2831 = vmatprep.subr.mxu0 0.0
    %2832 = vmatpush1.msra.mxu0 %v1548
    %2833 = vmatprep.subr.mxu0 0.0
    %2834 = vmatpush1.msra.mxu0 %v1549
    %2835 = vmatprep.subr.mxu0 0.0
    %2836 = vmatpush1.msra.mxu0 %v1550
    %2837 = vmatprep.mubr.f32.mxu0 %v972
    %2838 = vmatmul.mubr.f32.gmra.mrb[0].mxu0 %v971
    %v2839 = vpop.f32.mrb[0].mxu0
    %v2840 = vadd.f32 %v2755, %v2839
    %v2841 = vpop.f32.mrb[0].mxu0
    %2842 = vmatprep.mubr.f32.mxu0 %v1004
    %2843 = vmatmul.mubr.f32.gmra.mrb[0].mxu0 %v1003
    %v2844 = vpop.f32.mrb[0].mxu0
    %v2845 = vadd.f32 %v2760, %v2844
    %v2846 = vpop.f32.mrb[0].mxu0
    %2847 = vmatprep.mubr.f32.mxu0 %v1036
    %2848 = vmatmul.mubr.f32.gmra.mrb[0].mxu0 %v1035
    %v2849 = vpop.f32.mrb[0].mxu0
    %v2850 = vadd.f32 %v2765, %v2849
    %v2851 = vpop.f32.mrb[0].mxu0
    %2852 = vmatprep.mubr.f32.mxu0 %v1068
    %2853 = vmatmul.mubr.f32.gmra.mrb[0].mxu0 %v1067
    %v2854 = vpop.f32.mrb[0].mxu0
    %v2855 = vadd.f32 %v2770, %v2854
    %v2856 = vpop.f32.mrb[0].mxu0
    %2857 = vdwg.mxu0
    %2858 = vmatprep.subr.mxu0 0.0
    %2859 = vmatpush1.msra.mxu0 %v1551
    %2860 = vmatprep.subr.mxu0 0.0
    %2861 = vmatpush1.msra.mxu0 %v1552
    %2862 = vmatprep.subr.mxu0 0.0
    %2863 = vmatpush1.msra.mxu0 %v1553
    %2864 = vmatprep.subr.mxu0 0.0
    %2865 = vmatpush1.msra.mxu0 %v1554
    %2866 = vmatprep.subr.mxu0 0.0
    %2867 = vmatpush1.msra.mxu0 %v1555
    %2868 = vmatprep.subr.mxu0 0.0
    %2869 = vmatpush1.msra.mxu0 %v1556
    %2870 = vmatprep.subr.mxu0 0.0
    %2871 = vmatpush1.msra.mxu0 %v1557
    %2872 = vmatprep.subr.mxu0 0.0
    %2873 = vmatpush1.msra.mxu0 %v1558
    %2874 = vmatprep.subr.mxu0 0.0
    %2875 = vmatpush1.msra.mxu0 %v1559
    %2876 = vmatprep.subr.mxu0 0.0
    %2877 = vmatpush1.msra.mxu0 %v1560
    %2878 = vmatprep.subr.mxu0 0.0
    %2879 = vmatpush1.msra.mxu0 %v1561
    %2880 = vmatprep.subr.mxu0 0.0
    %2881 = vmatpush1.msra.mxu0 %v1562
    %2882 = vmatprep.subr.mxu0 0.0
    %2883 = vmatpush1.msra.mxu0 %v1563
    %2884 = vmatprep.subr.mxu0 0.0
    %2885 = vmatpush1.msra.mxu0 %v1564
    %2886 = vmatprep.subr.mxu0 0.0
    %2887 = vmatpush1.msra.mxu0 %v1565
    %2888 = vmatprep.subr.mxu0 0.0
    %2889 = vmatpush1.msra.mxu0 %v1566
    %2890 = vmatprep.subr.mxu0 0.0
    %2891 = vmatpush1.msra.mxu0 %v1567
    %2892 = vmatprep.subr.mxu0 0.0
    %2893 = vmatpush1.msra.mxu0 %v1568
    %2894 = vmatprep.subr.mxu0 0.0
    %2895 = vmatpush1.msra.mxu0 %v1569
    %2896 = vmatprep.subr.mxu0 0.0
    %2897 = vmatpush1.msra.mxu0 %v1570
    %2898 = vmatprep.subr.mxu0 0.0
    %2899 = vmatpush1.msra.mxu0 %v1571
    %2900 = vmatprep.subr.mxu0 0.0
    %2901 = vmatpush1.msra.mxu0 %v1572
    %2902 = vmatprep.subr.mxu0 0.0
    %2903 = vmatpush1.msra.mxu0 %v1573
    %2904 = vmatprep.subr.mxu0 0.0
    %2905 = vmatpush1.msra.mxu0 %v1574
    %2906 = vmatprep.subr.mxu0 0.0
    %2907 = vmatpush1.msra.mxu0 %v1575
    %2908 = vmatprep.subr.mxu0 0.0
    %2909 = vmatpush1.msra.mxu0 %v1576
    %2910 = vmatprep.subr.mxu0 0.0
    %2911 = vmatpush1.msra.mxu0 %v1577
    %2912 = vmatprep.subr.mxu0 0.0
    %2913 = vmatpush1.msra.mxu0 %v1578
    %2914 = vmatprep.subr.mxu0 0.0
    %2915 = vmatpush1.msra.mxu0 %v1579
    %2916 = vmatprep.subr.mxu0 0.0
    %2917 = vmatpush1.msra.mxu0 %v1580
    %2918 = vmatprep.subr.mxu0 0.0
    %2919 = vmatpush1.msra.mxu0 %v1581
    %2920 = vmatprep.subr.mxu0 0.0
    %2921 = vmatpush1.msra.mxu0 %v1582
    %2922 = vmatprep.mubr.f32.mxu0 %v974
    %2923 = vmatmul.mubr.f32.gmra.mrb[0].mxu0 %v973
    %v2924 = vpop.f32.mrb[0].mxu0
    %v2925 = vadd.f32 %v2840, %v2924
    %v2926 = vpop.f32.mrb[0].mxu0
    %2927 = vmatprep.mubr.f32.mxu0 %v1006
    %2928 = vmatmul.mubr.f32.gmra.mrb[0].mxu0 %v1005
    %v2929 = vpop.f32.mrb[0].mxu0
    %v2930 = vadd.f32 %v2845, %v2929
    %v2931 = vpop.f32.mrb[0].mxu0
    %2932 = vmatprep.mubr.f32.mxu0 %v1038
    %2933 = vmatmul.mubr.f32.gmra.mrb[0].mxu0 %v1037
    %v2934 = vpop.f32.mrb[0].mxu0
    %v2935 = vadd.f32 %v2850, %v2934
    %v2936 = vpop.f32.mrb[0].mxu0
    %2937 = vmatprep.mubr.f32.mxu0 %v1070
    %2938 = vmatmul.mubr.f32.gmra.mrb[0].mxu0 %v1069
    %v2939 = vpop.f32.mrb[0].mxu0
    %v2940 = vadd.f32 %v2855, %v2939
    %v2941 = vpop.f32.mrb[0].mxu0
    %2942 = vdwg.mxu0
    %v2943 = vadd.f32 %v939, %v2925
    %v2944 = vadd.f32 %v940, %v2930
    %v2945 = vadd.f32 %v941, %v2935
    %v2946 = vadd.f32 %v942, %v2940
    %2947 = vst [vmem:[#allocation4] sm:$0xff] %v2943
    %2948 = vst [vmem:[#allocation4 + $0x8] sm:$0xff] %v2944
    %2949 = vst [vmem:[#allocation4 + $0x10] sm:$0xff] %v2945
    %2950 = vst [vmem:[#allocation4 + $0x18] sm:$0xff] %v2946
    // Predicated region
    $region54: #{tucker_forward.2} parent=1 // pred_check
      %p2951 = pneg %p86
    $region55: #{tucker_forward.2} parent=1 // pred_check_branch
      %2953 = sbr.rel (%p2951) target = $region57
    $region56: #{tucker_forward.2} parent=1 // pred_region
      %v2954 = vld [vmem:[#allocation4] sm:$0xff]
      %v2955 = vld [vmem:[#allocation4 + $0x8] sm:$0xff]
      %v2956 = vld [vmem:[#allocation4 + $0x10] sm:$0xff]
      %v2957 = vld [vmem:[#allocation4 + $0x18] sm:$0xff]
      %v2958 = vadd.f32 %v2954, %v2955
      %v2959 = vadd.f32 %v2958, %v2956
      %v2960 = vadd.f32 %v2959, %v2957
      %v2961 = vrot.slane %v2960, 4
      %v2962 = vadd.f32 %v2960, %v2961
      %v2963 = vrot.slane %v2962, 2
      %v2964 = vadd.f32 %v2962, %v2963
      %v2965 = vrot.slane %v2964, 1
      %v2966 = vadd.f32 %v2964, %v2965
      %v2967 = vrcp.pop 32.0
      %v2968 = vmul.f32 %v2966, %v2967
      %v2969 = vsub.f32 %v2954, %v2968
      %v2970 = vsub.f32 %v2955, %v2968
      %v2971 = vsub.f32 %v2956, %v2968
      %v2972 = vsub.f32 %v2957, %v2968
      %v2973 = vmul.f32 %v2969, %v2969
      %v2974 = vmul.f32 %v2970, %v2970
      %v2975 = vmul.f32 %v2971, %v2971
      %v2976 = vmul.f32 %v2972, %v2972
      %v2977 = vadd.f32 %v2973, %v2974
      %v2978 = vadd.f32 %v2977, %v2975
      %v2979 = vadd.f32 %v2978, %v2976
      %v2980 = vrot.slane %v2979, 4
      %v2981 = vadd.f32 %v2979, %v2980
      %v2982 = vrot.slane %v2981, 2
      %v2983 = vadd.f32 %v2981, %v2982
      %v2984 = vrot.slane %v2983, 1
      %v2985 = vadd.f32 %v2983, %v2984
      %v2986 = vmul.f32 %v2985, %v2967
      %v2987 = vadd.f32 %v2986, 1e-05
      %v2988 = vrsqrt.pop %v2987
      %v2989 = vmul.f32 %v2969, %v2988
      %v2990 = vmul.f32 %v2970, %v2988
      %v2991 = vmul.f32 %v2971, %v2988
      %v2992 = vmul.f32 %v2972, %v2988
      %v2993 = vld [vmem:[#allocation10] sm:$0x1]
      %v2995 = vlaneseq
      %v2996 = vshrl.u32 %v2995, 7
      %v2997 = vsub.s32 0, %v2996
      %v2998 = vrot.slane %v2993, %v2997
      %v3000 = vmul.f32 %v2989, %v2998
      %v3001 = vmul.f32 %v2990, %v2998
      %v3002 = vmul.f32 %v2991, %v2998
      %v3003 = vmul.f32 %v2992, %v2998
      %v3004 = vld [vmem:[#allocation12] sm:$0x1]
      %v3006 = vlaneseq
      %v3007 = vshrl.u32 %v3006, 7
      %v3008 = vsub.s32 0, %v3007
      %v3009 = vrot.slane %v3004, %v3008
      %v3011 = vadd.f32 %v3000, %v3009
      %v3012 = vadd.f32 %v3001, %v3009
      %v3013 = vadd.f32 %v3002, %v3009
      %v3014 = vadd.f32 %v3003, %v3009
      %3015 = vst [vmem:[%s7] sm:$0xff] %v3011
      %3016 = vst [vmem:[%s7 + $0x8] sm:$0xff] %v3012
      %3017 = vst [vmem:[%s7 + $0x10] sm:$0xff] %v3013
      %3018 = vst [vmem:[%s7 + $0x18] sm:$0xff] %v3014
    $region57: #{tucker_forward.2} parent=1 // pred_fallthru
      _
    // Predicated region
    $region58: #{tucker_forward.2} parent=1 // pred_check
      _
    $region59: #{tucker_forward.2} parent=1 // pred_check_branch
      %3020 = sbr.rel (0) target = $region61
    $region60: #{tucker_forward.2} parent=1 // pred_region
      _
    $region61: #{tucker_forward.2} parent=1 // pred_fallthru
      _
    // Predicated region
    $region62: #{tucker_forward.2} parent=1 // pred_check
      _
    $region63: #{tucker_forward.2} parent=1 // pred_check_branch
      %3022 = sbr.rel (0) target = $region65
    $region64: #{tucker_forward.2} parent=1 // pred_region
      _
    $region65: #{tucker_forward.2} parent=1 // pred_fallthru
      _
    %3023 = vsyncpa [#allocation6], 1
    %3024 = vsyncpa [#allocation8], 1
    %3025 = vsyncpa [#allocation11], 1

</llo_original>
